<compile_context>
chip_gen: v5e
topology: v5e:2x2
jax: 0.10.0
libtpu: 0.0.40
codegen_flags: <defaults>
</compile_context>

<pallas_src>
import jax
import jax.numpy as jnp
from jax import lax
from jax.experimental import pallas as pl
from jax.experimental.pallas import tpu as pltpu

HIDDEN = 768   # hard-coded 768 inside BertFinetun (proj_t / dense / LayerNorm)
PROJ = 30      # Conv1d output channels in BertFinetun


# --------------------------- Fused Pallas kernel ------------------------------

def _fused_kernel(scal_ref,    # SMEM (4,): [text_weight_1, audio_weight_1, att_bias, clf_bias]
                  ahblk_ref,   # (B*S, S*(A+1)) block-diagonal audio (ones column included)
                  vhblk_ref,   # (B*S, S*(V+1)) block-diagonal vision
                  fa2_ref,     # (S*(A+1), R*O) stacked audio factors (fusion_weights folded in)
                  fv2_ref,     # (S*(V+1), R*O) stacked vision factors
                  waf_ref,     # (R*O, PROJ)    rank-reduction + proj_a weight, folded
                  apb_ref,     # (B*S, PROJ)    fusion_bias @ proj_a weight, tiled over batch
                  h_ref,       # (B*S, H)       encoder hidden states (flattened)
                  mask_ref,    # (B, S, S)      extended attention mask (key + query side, summed)
                  wt_ref,      # (H, PROJ)      proj_t weight (transposed)
                  vecs_ref,    # (4, H)         rows: dense_b, ln_w, ln_b, clf_w
                  wd_hbm,      # (H, H) bf16    dense weight (transposed), left in HBM
                  logits_ref,  # out (B, 1)
                  tatt_ref,    # out (B, S, S)
                  fatt_ref,    # out (B, S, S)
                  wd_vmem,     # scratch (H, H) bf16
                  dma_sem):    # scratch DMA semaphore
    text_w = scal_ref[0]
    audio_w = scal_ref[1]
    att_bias = scal_ref[2]
    clf_b = scal_ref[3]

    B = mask_ref.shape[0]
    S = mask_ref.shape[1]

    # Start the dense-weight DMA immediately so it overlaps the LMF / attention
    # phase (no grid -> no auto pipelining to hide it otherwise).
    wd_copy = pltpu.make_async_copy(wd_hbm, wd_vmem, dma_sem)
    wd_copy.start()

    # ---------------- LMF fusion + proj_a (folded), fully batched ------------
    # Block-diagonal LHS x stacked RHS computes every utterance step's LMF in
    # one matmul each; rank-reduction + proj_a are folded into waf/apb.
    fa = jnp.dot(ahblk_ref[...], fa2_ref[...], preferred_element_type=jnp.float32)   # (B*S, R*O)
    fv = jnp.dot(vhblk_ref[...], fv2_ref[...], preferred_element_type=jnp.float32)   # (B*S, R*O)
    zy = fa * fv
    ap = jnp.dot(zy, waf_ref[...], preferred_element_type=jnp.float32) + apb_ref[...]  # (B*S, PROJ)

    # ---------------- text projection + global scaling weight ----------------
    tp = jnp.dot(h_ref[...], wt_ref[...], preferred_element_type=jnp.float32)        # (B*S, PROJ)
    sq = jnp.sum(tp * tp, axis=-1, keepdims=True)                                    # (B*S, 1)
    sum_sq = jnp.sum(sq, axis=0, keepdims=True)                                      # (1, 1)
    inv_w = lax.rsqrt(jnp.sqrt(sum_sq) + 1e-12)   # 1 / sqrt(||text_proj||_2), eps-guarded

    # ---------------- cross-modal attention (per batch element) --------------
    contract = (((1,), (1,)), ((), ()))
    fusion_rows = []
    for bi in range(B):
        t = tp[bi * S:(bi + 1) * S, :] * inv_w                                        # (S, PROJ)
        a = ap[bi * S:(bi + 1) * S, :]                                                # (S, PROJ)
        text_att = lax.dot_general(t, t, contract, preferred_element_type=jnp.float32)
        text_att1 = jnp.maximum(text_att, 0.0)
        audio_att = jnp.maximum(
            lax.dot_general(a, a, contract, preferred_element_type=jnp.float32), 0.0)
        fusion_att = text_w * text_att1 + audio_w * audio_att + att_bias
        fusion_att1 = jnp.maximum(fusion_att, 0.0)
        tatt_ref[bi] = text_att1
        fatt_ref[bi] = fusion_att1

        # mask added on both key and query side (pre-summed on host); the
        # softmax runs on the pre-ReLU fusion_att, matching the reference.
        fm = fusion_att + mask_ref[bi]
        fm = fm - jnp.max(fm, axis=-1, keepdims=True)
        e = jnp.exp(fm)
        p = e / jnp.sum(e, axis=-1, keepdims=True)                                    # exact softmax
        hb = h_ref[bi * S:(bi + 1) * S, :]                                            # (S, H)
        fusion_rows.append(jnp.dot(p, hb, preferred_element_type=jnp.float32) + hb)

    # ---------------- batched dense (bf16 MXU) + LayerNorm -------------------
    fd = jnp.concatenate(fusion_rows, axis=0).astype(jnp.bfloat16)                    # (B*S, H)
    wd_copy.wait()
    hs = jnp.dot(fd, wd_vmem[...], preferred_element_type=jnp.float32) + vecs_ref[0:1, :]
    u = jnp.mean(hs, axis=-1, keepdims=True)
    var = jnp.mean((hs - u) ** 2, axis=-1, keepdims=True)
    hs = (hs - u) * lax.rsqrt(var + 1e-12)                                            # BertLayerNorm
    hs = vecs_ref[1:2, :] * hs + vecs_ref[2:3, :]

    # ---------------- classifier: static pooled rows + VPU lane reduce -------
    pooled = jnp.concatenate([hs[bi * S:bi * S + 1, :] for bi in range(B)], axis=0)   # (B, H)
    logits_ref[...] = jnp.sum(pooled * vecs_ref[3:4, :], axis=-1, keepdims=True) + clf_b


# --------------------------- Forward wrapper ----------------------------------

def forward(params, input_ids, all_audio, all_vision, attention_mask, fusion_dim):
    # TODO(synk): the pretrained HuggingFace BertModel (LanguageEmbeddingLayer)
    # cannot be reproduced without a checkpoint; a deterministic token+position
    # embedding stands in for encoder_lastoutput [B, S, 768].
    hidden = (params["emb"][input_ids] + params["pos"][None, :, :]).astype(jnp.float32)  # (B, S, H)
    B, S, H = hidden.shape
    A = all_audio.shape[-1]
    V = all_vision.shape[-1]
    R = params["lmf_a_factor"].shape[1]
    O = fusion_dim

    # extended attention mask, added on both key and query side (per reference),
    # pre-summed into one tensor.
    ext = (1.0 - attention_mask.astype(jnp.float32)) * -10000.0                   # (B, S)
    mask = ext[:, None, :] + ext[:, :, None]                                      # (B, S, S)

    # LMF inputs with the leading ones column, laid out block-diagonally so the
    # per-utterance-step LMF loop collapses into three batched matmuls.
    ones = jnp.ones((B, S, 1), jnp.float32)
    ah = jnp.concatenate([ones, all_audio.astype(jnp.float32)], axis=-1)          # (B, S, A+1)
    vh = jnp.concatenate([ones, all_vision.astype(jnp.float32)], axis=-1)         # (B, S, V+1)
    eye_s = jnp.eye(S, dtype=jnp.float32)
    ah_blk = (ah[:, :, None, :] * eye_s[None, :, :, None]).reshape(B * S, S * (A + 1))
    vh_blk = (vh[:, :, None, :] * eye_s[None, :, :, None]).reshape(B * S, S * (V + 1))

    # Fold fusion_weights into the audio factor; flatten rank onto the lane axis;
    # stack per-step factors vertically to match the block-diagonal LHS.
    fw = params["lmf_w"][:, 0, :]                                                 # (S, R)
    fa_scaled = params["lmf_a_factor"] * fw[:, :, None, None]                     # (S, R, A+1, O)
    fa2 = jnp.transpose(fa_scaled, (0, 2, 1, 3)).reshape(S * (A + 1), R * O)
    fv2 = jnp.transpose(params["lmf_v_factor"], (0, 2, 1, 3)).reshape(S * (V + 1), R * O)

    # Fold the LMF rank-reduction and proj_a (Conv1d k=1, bias=False) together:
    #   audio_proj = zy @ tile(Wa, (R,1)) + (fusion_bias @ Wa), pre-tiled over batch.
    waf = jnp.tile(params["proj_a_w"], (R, 1))                                    # (R*O, PROJ)
    fbw = params["lmf_b"][:, 0, :] @ params["proj_a_w"]                           # (S, PROJ)
    apb = jnp.tile(fbw, (B, 1))                                                   # (B*S, PROJ)

    vecs = jnp.concatenate([params["dense_b"], params["ln_w"],
                            params["ln_b"], params["clf_w"]], axis=0)             # (4, H)
    scal = jnp.stack([params["text_weight_1"], params["audio_weight_1"],
                      params["att_bias"], params["clf_b"]]).astype(jnp.float32)

    hidden_flat = hidden.reshape(B * S, H)
    wd_bf16 = params["dense_w"].astype(jnp.bfloat16)   # dominant DMA halved; f32 accumulation

    vmem = pl.BlockSpec(memory_space=pltpu.MemorySpace.VMEM)
    smem = pl.BlockSpec(memory_space=pltpu.MemorySpace.SMEM)
    hbm = pl.BlockSpec(memory_space=pl.ANY)

    logits, tatt, fatt = pl.pallas_call(
        _fused_kernel,
        out_shape=(jax.ShapeDtypeStruct((B, 1), jnp.float32),
                   jax.ShapeDtypeStruct((B, S, S), jnp.float32),
                   jax.ShapeDtypeStruct((B, S, S), jnp.float32)),
        in_specs=[smem] + [vmem] * 10 + [hbm],
        out_specs=(vmem, vmem, vmem),
        scratch_shapes=[pltpu.VMEM((H, H), jnp.bfloat16),
                        pltpu.SemaphoreType.DMA(())],
    )(scal, ah_blk, vh_blk, fa2, fv2, waf, apb, hidden_flat, mask,
      params["proj_t_w"], vecs, wd_bf16)
    return logits, tatt, fatt


# --------------------------- Parameter init ------------------------------------

def init_params(key, fusion_dim, audio_dim, vision_dim, seq_len, vocab):
    ks = jax.random.split(key, 10)
    H = HIDDEN
    R = max(audio_dim, vision_dim)
    O = fusion_dim
    p = {}
    p["emb"] = 0.02 * jax.random.normal(ks[0], (vocab, H), jnp.float32)
    p["pos"] = 0.02 * jax.random.normal(ks[1], (seq_len, H), jnp.float32)
    # Conv1d(768->30, k=1, bias=False) and Conv1d(fusion_dim->30, k=1, bias=False)
    # weights in transposed (in, out) layout.
    p["proj_t_w"] = 0.02 * jax.random.normal(ks[2], (H, PROJ), jnp.float32)
    p["proj_a_w"] = 0.05 * jax.random.normal(ks[3], (fusion_dim, PROJ), jnp.float32)
    p["text_weight_1"] = jnp.float32(1.0)
    p["audio_weight_1"] = jnp.float32(1.0)
    p["att_bias"] = jnp.float32(0.0)
    p["dense_w"] = 0.02 * jax.random.normal(ks[4], (H, H), jnp.float32)   # W^T layout
    p["dense_b"] = jnp.zeros((1, H), jnp.float32)
    p["ln_w"] = jnp.ones((1, H), jnp.float32)
    p["ln_b"] = jnp.zeros((1, H), jnp.float32)
    p["clf_w"] = 0.02 * jax.random.normal(ks[5], (1, H), jnp.float32)     # Linear(768, 1) weight
    p["clf_b"] = jnp.float32(0.0)
    # A fresh LMF module is constructed per utterance step inside A_V, so the
    # low-rank factors are independent per step (xavier-normal-style init).
    std_a = (2.0 / ((audio_dim + 1) * O + R * O)) ** 0.5
    std_v = (2.0 / ((vision_dim + 1) * O + R * O)) ** 0.5
    p["lmf_a_factor"] = std_a * jax.random.normal(ks[6], (seq_len, R, audio_dim + 1, O), jnp.float32)
    p["lmf_v_factor"] = std_v * jax.random.normal(ks[7], (seq_len, R, vision_dim + 1, O), jnp.float32)
    p["lmf_w"] = (2.0 / (1 + R)) ** 0.5 * jax.random.normal(ks[8], (seq_len, 1, R), jnp.float32)
    p["lmf_b"] = jnp.zeros((seq_len, 1, O), jnp.float32)
    return p


# --------------------------- Main -----------------------------------------------

if __name__ == "__main__":
    B, S = 2, 8
    audio_dim, vision_dim, fusion_dim = 12, 20, 32
    vocab = 100

    key = jax.random.PRNGKey(0)
    kp, k1, k2, k3 = jax.random.split(key, 4)
    params = init_params(kp, fusion_dim, audio_dim, vision_dim, S, vocab)

    input_ids = jax.random.randint(k1, (B, S), 0, vocab)
    all_audio = jax.random.normal(k2, (B, S, audio_dim), jnp.float32)
    all_vision = jax.random.normal(k3, (B, S, vision_dim), jnp.float32)
    attention_mask = jnp.ones((B, S), jnp.float32).at[1, 6:].set(0.0)

    fwd = jax.jit(lambda ii, aa, vv, mm: forward(params, ii, aa, vv, mm, fusion_dim))
    logits, text_att, fusion_att = fwd(input_ids, all_audio, all_vision, attention_mask)
    jax.block_until_ready((logits, text_att, fusion_att))
    assert logits.shape == (B, 1)
    assert text_att.shape == (B, S, S) and fusion_att.shape == (B, S, S)
    print("KERNEL_OK")
</pallas_src>

<mosaic_0001>
module attributes {stable_mosaic.version = 11 : i64} {
  func.func @_fused_kernel(%arg0: memref<4xf32, #tpu.memory_space<smem>>, %arg1: memref<16x104xf32, #tpu.memory_space<vmem>>, %arg2: memref<16x168xf32, #tpu.memory_space<vmem>>, %arg3: memref<104x640xf32, #tpu.memory_space<vmem>>, %arg4: memref<168x640xf32, #tpu.memory_space<vmem>>, %arg5: memref<640x30xf32, #tpu.memory_space<vmem>>, %arg6: memref<16x30xf32, #tpu.memory_space<vmem>>, %arg7: memref<16x768xf32, #tpu.memory_space<vmem>>, %arg8: memref<2x8x8xf32, #tpu.memory_space<vmem>>, %arg9: memref<768x30xf32, #tpu.memory_space<vmem>>, %arg10: memref<4x768xf32, #tpu.memory_space<vmem>>, %arg11: memref<768x768xbf16, #tpu.memory_space<any>>, %arg12: memref<2x1xf32, #tpu.memory_space<vmem>>, %arg13: memref<2x8x8xf32, #tpu.memory_space<vmem>>, %arg14: memref<2x8x8xf32, #tpu.memory_space<vmem>>, %arg15: memref<768x768xbf16, #tpu.memory_space<vmem>>, %arg16: memref<!tpu.dma_semaphore, #tpu.memory_space<semaphore_mem>>) attributes {dimension_semantics = [], scalar_prefetch = 0 : i64, scratch_operands = 2 : i64, tpu.core_type = #tpu.core_type<tc>} {
    %c0 = arith.constant 0 : index
    %0 = memref.load %arg0[%c0] : memref<4xf32, #tpu.memory_space<smem>>
    %c1 = arith.constant 1 : index
    %1 = memref.load %arg0[%c1] : memref<4xf32, #tpu.memory_space<smem>>
    %c2 = arith.constant 2 : index
    %2 = memref.load %arg0[%c2] : memref<4xf32, #tpu.memory_space<smem>>
    %c3 = arith.constant 3 : index
    %3 = memref.load %arg0[%c3] : memref<4xf32, #tpu.memory_space<smem>>
    tpu.enqueue_dma source(%arg11 : memref<768x768xbf16, #tpu.memory_space<any>>) target(%arg15 : memref<768x768xbf16, #tpu.memory_space<vmem>>) target_semaphore(%arg16 : memref<!tpu.dma_semaphore, #tpu.memory_space<semaphore_mem>>)
    %c0_0 = arith.constant 0 : index
    %c0_1 = arith.constant 0 : index
    %4 = vector.load %arg1[%c0_0, %c0_1] : memref<16x104xf32, #tpu.memory_space<vmem>>, vector<16x104xf32>
    %c0_2 = arith.constant 0 : index
    %c0_3 = arith.constant 0 : index
    %5 = vector.load %arg3[%c0_2, %c0_3] : memref<104x640xf32, #tpu.memory_space<vmem>>, vector<104x640xf32>
    %cst = arith.constant dense<0.000000e+00> : vector<16x640xf32>
    %6 = tpu.matmul %4, %5, %cst {dimension_numbers = #tpu.dot_dimension_numbers<[1], [0], [0], [1], [0, 0, 1, 1], [], []>} : vector<16x104xf32>, vector<104x640xf32>, vector<16x640xf32> -> vector<16x640xf32>
    %c0_4 = arith.constant 0 : index
    %c0_5 = arith.constant 0 : index
    %7 = vector.load %arg2[%c0_4, %c0_5] : memref<16x168xf32, #tpu.memory_space<vmem>>, vector<16x168xf32>
    %c0_6 = arith.constant 0 : index
    %c0_7 = arith.constant 0 : index
    %8 = vector.load %arg4[%c0_6, %c0_7] : memref<168x640xf32, #tpu.memory_space<vmem>>, vector<168x640xf32>
    %cst_8 = arith.constant dense<0.000000e+00> : vector<16x640xf32>
    %9 = tpu.matmul %7, %8, %cst_8 {dimension_numbers = #tpu.dot_dimension_numbers<[1], [0], [0], [1], [0, 0, 1, 1], [], []>} : vector<16x168xf32>, vector<168x640xf32>, vector<16x640xf32> -> vector<16x640xf32>
    %10 = arith.mulf %6, %9 : vector<16x640xf32>
    %c0_9 = arith.constant 0 : index
    %c0_10 = arith.constant 0 : index
    %11 = vector.load %arg5[%c0_9, %c0_10] : memref<640x30xf32, #tpu.memory_space<vmem>>, vector<640x30xf32>
    %cst_11 = arith.constant dense<0.000000e+00> : vector<16x30xf32>
    %12 = tpu.matmul %10, %11, %cst_11 {dimension_numbers = #tpu.dot_dimension_numbers<[1], [0], [0], [1], [0, 0, 1, 1], [], []>} : vector<16x640xf32>, vector<640x30xf32>, vector<16x30xf32> -> vector<16x30xf32>
    %c0_12 = arith.constant 0 : index
    %c0_13 = arith.constant 0 : index
    %13 = vector.load %arg6[%c0_12, %c0_13] : memref<16x30xf32, #tpu.memory_space<vmem>>, vector<16x30xf32>
    %14 = arith.addf %12, %13 : vector<16x30xf32>
    %c0_14 = arith.constant 0 : index
    %c0_15 = arith.constant 0 : index
    %15 = vector.load %arg7[%c0_14, %c0_15] : memref<16x768xf32, #tpu.memory_space<vmem>>, vector<16x768xf32>
    %c0_16 = arith.constant 0 : index
    %c0_17 = arith.constant 0 : index
    %16 = vector.load %arg9[%c0_16, %c0_17] : memref<768x30xf32, #tpu.memory_space<vmem>>, vector<768x30xf32>
    %cst_18 = arith.constant dense<0.000000e+00> : vector<16x30xf32>
    %17 = tpu.matmul %15, %16, %cst_18 {dimension_numbers = #tpu.dot_dimension_numbers<[1], [0], [0], [1], [0, 0, 1, 1], [], []>} : vector<16x768xf32>, vector<768x30xf32>, vector<16x30xf32> -> vector<16x30xf32>
    %18 = arith.mulf %17, %17 : vector<16x30xf32>
    %cst_19 = arith.constant dense<0.000000e+00> : vector<16xf32>
    %19 = vector.multi_reduction <add>, %18, %cst_19 [1] : vector<16x30xf32> to vector<16xf32>
    %20 = vector.shape_cast %19 : vector<16xf32> to vector<16x1xf32>
    %cst_20 = arith.constant dense<0.000000e+00> : vector<1xf32>
    %21 = vector.multi_reduction <add>, %20, %cst_20 [0] : vector<16x1xf32> to vector<1xf32>
    %22 = vector.shape_cast %21 : vector<1xf32> to vector<1x1xf32>
    %23 = math.sqrt %22 : vector<1x1xf32>
    %cst_21 = arith.constant 9.99999996E-13 : f32
    %24 = vector.broadcast %cst_21 : f32 to vector<1x1xf32>
    %25 = arith.addf %23, %24 : vector<1x1xf32>
    %26 = math.rsqrt %25 : vector<1x1xf32>
    %27 = vector.extract_strided_slice %17 {offsets = [0, 0], sizes = [8, 30], strides = [1, 1]} : vector<16x30xf32> to vector<8x30xf32>
    %28 = vector.broadcast %26 : vector<1x1xf32> to vector<8x30xf32>
    %29 = arith.mulf %27, %28 : vector<8x30xf32>
    %30 = vector.extract_strided_slice %14 {offsets = [0, 0], sizes = [8, 30], strides = [1, 1]} : vector<16x30xf32> to vector<8x30xf32>
    %cst_22 = arith.constant dense<0.000000e+00> : vector<8x8xf32>
    %31 = tpu.matmul %29, %29, %cst_22 {dimension_numbers = #tpu.dot_dimension_numbers<[1], [1], [0], [0], [0, 0, 1, 0], [], []>} : vector<8x30xf32>, vector<8x30xf32>, vector<8x8xf32> -> vector<8x8xf32>
    %cst_23 = arith.constant 0.000000e+00 : f32
    %32 = vector.broadcast %cst_23 : f32 to vector<8x8xf32>
    %33 = arith.maximumf %31, %32 : vector<8x8xf32>
    %cst_24 = arith.constant dense<0.000000e+00> : vector<8x8xf32>
    %34 = tpu.matmul %30, %30, %cst_24 {dimension_numbers = #tpu.dot_dimension_numbers<[1], [1], [0], [0], [0, 0, 1, 0], [], []>} : vector<8x30xf32>, vector<8x30xf32>, vector<8x8xf32> -> vector<8x8xf32>
    %cst_25 = arith.constant 0.000000e+00 : f32
    %35 = vector.broadcast %cst_25 : f32 to vector<8x8xf32>
    %36 = arith.maximumf %34, %35 : vector<8x8xf32>
    %37 = vector.broadcast %0 : f32 to vector<8x8xf32>
    %38 = arith.mulf %37, %33 : vector<8x8xf32>
    %39 = vector.broadcast %1 : f32 to vector<8x8xf32>
    %40 = arith.mulf %39, %36 : vector<8x8xf32>
    %41 = arith.addf %38, %40 : vector<8x8xf32>
    %42 = vector.broadcast %2 : f32 to vector<8x8xf32>
    %43 = arith.addf %41, %42 : vector<8x8xf32>
    %cst_26 = arith.constant 0.000000e+00 : f32
    %44 = vector.broadcast %cst_26 : f32 to vector<8x8xf32>
    %45 = arith.maximumf %43, %44 : vector<8x8xf32>
    %c0_27 = arith.constant 0 : index
    %c0_28 = arith.constant 0 : index
    %c0_29 = arith.constant 0 : index
    %46 = vector.load %arg13[%c0_27, %c0_28, %c0_29] : memref<2x8x8xf32, #tpu.memory_space<vmem>>, vector<1x8x8xf32>
    %47 = vector.shape_cast %46 : vector<1x8x8xf32> to vector<8x8xf32>
    %48 = vector.shape_cast %33 : vector<8x8xf32> to vector<1x8x8xf32>
    tpu.vector_store %arg13[%c0_27, %c0_28, %c0_29], %48 {strides = array<i32>} : memref<2x8x8xf32, #tpu.memory_space<vmem>>, vector<1x8x8xf32>,
    %c0_30 = arith.constant 0 : index
    %c0_31 = arith.constant 0 : index
    %c0_32 = arith.constant 0 : index
    %49 = vector.load %arg14[%c0_30, %c0_31, %c0_32] : memref<2x8x8xf32, #tpu.memory_space<vmem>>, vector<1x8x8xf32>
    %50 = vector.shape_cast %49 : vector<1x8x8xf32> to vector<8x8xf32>
    %51 = vector.shape_cast %45 : vector<8x8xf32> to vector<1x8x8xf32>
    tpu.vector_store %arg14[%c0_30, %c0_31, %c0_32], %51 {strides = array<i32>} : memref<2x8x8xf32, #tpu.memory_space<vmem>>, vector<1x8x8xf32>,
    %c0_33 = arith.constant 0 : index
    %c0_34 = arith.constant 0 : index
    %c0_35 = arith.constant 0 : index
    %52 = vector.load %arg8[%c0_33, %c0_34, %c0_35] : memref<2x8x8xf32, #tpu.memory_space<vmem>>, vector<1x8x8xf32>
    %53 = vector.shape_cast %52 : vector<1x8x8xf32> to vector<8x8xf32>
    %54 = arith.addf %43, %53 : vector<8x8xf32>
    %cst_36 = arith.constant dense<0xFF800000> : vector<8xf32>
    %55 = vector.multi_reduction <maximumf>, %54, %cst_36 [1] : vector<8x8xf32> to vector<8xf32>
    %56 = vector.shape_cast %55 : vector<8xf32> to vector<8x1xf32>
    %57 = vector.broadcast %56 : vector<8x1xf32> to vector<8x8xf32>
    %58 = arith.subf %54, %57 : vector<8x8xf32>
    %59 = math.exp %58 : vector<8x8xf32>
    %cst_37 = arith.constant dense<0.000000e+00> : vector<8xf32>
    %60 = vector.multi_reduction <add>, %59, %cst_37 [1] : vector<8x8xf32> to vector<8xf32>
    %61 = vector.shape_cast %60 : vector<8xf32> to vector<8x1xf32>
    %62 = vector.broadcast %61 : vector<8x1xf32> to vector<8x8xf32>
    %63 = arith.divf %59, %62 : vector<8x8xf32>
    %c0_38 = arith.constant 0 : index
    %c0_39 = arith.constant 0 : index
    %64 = vector.load %arg7[%c0_38, %c0_39] : memref<16x768xf32, #tpu.memory_space<vmem>>, vector<8x768xf32>
    %cst_40 = arith.constant dense<0.000000e+00> : vector<8x768xf32>
    %65 = tpu.matmul %63, %64, %cst_40 {dimension_numbers = #tpu.dot_dimension_numbers<[1], [0], [0], [1], [0, 0, 1, 1], [], []>} : vector<8x8xf32>, vector<8x768xf32>, vector<8x768xf32> -> vector<8x768xf32>
    %66 = arith.addf %65, %64 : vector<8x768xf32>
    %67 = vector.extract_strided_slice %17 {offsets = [8, 0], sizes = [8, 30], strides = [1, 1]} : vector<16x30xf32> to vector<8x30xf32>
    %68 = vector.broadcast %26 : vector<1x1xf32> to vector<8x30xf32>
    %69 = arith.mulf %67, %68 : vector<8x30xf32>
    %70 = vector.extract_strided_slice %14 {offsets = [8, 0], sizes = [8, 30], strides = [1, 1]} : vector<16x30xf32> to vector<8x30xf32>
    %cst_41 = arith.constant dense<0.000000e+00> : vector<8x8xf32>
    %71 = tpu.matmul %69, %69, %cst_41 {dimension_numbers = #tpu.dot_dimension_numbers<[1], [1], [0], [0], [0, 0, 1, 0], [], []>} : vector<8x30xf32>, vector<8x30xf32>, vector<8x8xf32> -> vector<8x8xf32>
    %cst_42 = arith.constant 0.000000e+00 : f32
    %72 = vector.broadcast %cst_42 : f32 to vector<8x8xf32>
    %73 = arith.maximumf %71, %72 : vector<8x8xf32>
    %cst_43 = arith.constant dense<0.000000e+00> : vector<8x8xf32>
    %74 = tpu.matmul %70, %70, %cst_43 {dimension_numbers = #tpu.dot_dimension_numbers<[1], [1], [0], [0], [0, 0, 1, 0], [], []>} : vector<8x30xf32>, vector<8x30xf32>, vector<8x8xf32> -> vector<8x8xf32>
    %cst_44 = arith.constant 0.000000e+00 : f32
    %75 = vector.broadcast %cst_44 : f32 to vector<8x8xf32>
    %76 = arith.maximumf %74, %75 : vector<8x8xf32>
    %77 = vector.broadcast %0 : f32 to vector<8x8xf32>
    %78 = arith.mulf %77, %73 : vector<8x8xf32>
    %79 = vector.broadcast %1 : f32 to vector<8x8xf32>
    %80 = arith.mulf %79, %76 : vector<8x8xf32>
    %81 = arith.addf %78, %80 : vector<8x8xf32>
    %82 = vector.broadcast %2 : f32 to vector<8x8xf32>
    %83 = arith.addf %81, %82 : vector<8x8xf32>
    %cst_45 = arith.constant 0.000000e+00 : f32
    %84 = vector.broadcast %cst_45 : f32 to vector<8x8xf32>
    %85 = arith.maximumf %83, %84 : vector<8x8xf32>
    %c1_46 = arith.constant 1 : index
    %c0_47 = arith.constant 0 : index
    %c0_48 = arith.constant 0 : index
    %86 = vector.load %arg13[%c1_46, %c0_47, %c0_48] : memref<2x8x8xf32, #tpu.memory_space<vmem>>, vector<1x8x8xf32>
    %87 = vector.shape_cast %86 : vector<1x8x8xf32> to vector<8x8xf32>
    %88 = vector.shape_cast %73 : vector<8x8xf32> to vector<1x8x8xf32>
    tpu.vector_store %arg13[%c1_46, %c0_47, %c0_48], %88 {strides = array<i32>} : memref<2x8x8xf32, #tpu.memory_space<vmem>>, vector<1x8x8xf32>,
    %c1_49 = arith.constant 1 : index
    %c0_50 = arith.constant 0 : index
    %c0_51 = arith.constant 0 : index
    %89 = vector.load %arg14[%c1_49, %c0_50, %c0_51] : memref<2x8x8xf32, #tpu.memory_space<vmem>>, vector<1x8x8xf32>
    %90 = vector.shape_cast %89 : vector<1x8x8xf32> to vector<8x8xf32>
    %91 = vector.shape_cast %85 : vector<8x8xf32> to vector<1x8x8xf32>
    tpu.vector_store %arg14[%c1_49, %c0_50, %c0_51], %91 {strides = array<i32>} : memref<2x8x8xf32, #tpu.memory_space<vmem>>, vector<1x8x8xf32>,
    %c1_52 = arith.constant 1 : index
    %c0_53 = arith.constant 0 : index
    %c0_54 = arith.constant 0 : index
    %92 = vector.load %arg8[%c1_52, %c0_53, %c0_54] : memref<2x8x8xf32, #tpu.memory_space<vmem>>, vector<1x8x8xf32>
    %93 = vector.shape_cast %92 : vector<1x8x8xf32> to vector<8x8xf32>
    %94 = arith.addf %83, %93 : vector<8x8xf32>
    %cst_55 = arith.constant dense<0xFF800000> : vector<8xf32>
    %95 = vector.multi_reduction <maximumf>, %94, %cst_55 [1] : vector<8x8xf32> to vector<8xf32>
    %96 = vector.shape_cast %95 : vector<8xf32> to vector<8x1xf32>
    %97 = vector.broadcast %96 : vector<8x1xf32> to vector<8x8xf32>
    %98 = arith.subf %94, %97 : vector<8x8xf32>
    %99 = math.exp %98 : vector<8x8xf32>
    %cst_56 = arith.constant dense<0.000000e+00> : vector<8xf32>
    %100 = vector.multi_reduction <add>, %99, %cst_56 [1] : vector<8x8xf32> to vector<8xf32>
    %101 = vector.shape_cast %100 : vector<8xf32> to vector<8x1xf32>
    %102 = vector.broadcast %101 : vector<8x1xf32> to vector<8x8xf32>
    %103 = arith.divf %99, %102 : vector<8x8xf32>
    %c8 = arith.constant 8 : index
    %c0_57 = arith.constant 0 : index
    %104 = vector.load %arg7[%c8, %c0_57] : memref<16x768xf32, #tpu.memory_space<vmem>>, vector<8x768xf32>
    %cst_58 = arith.constant dense<0.000000e+00> : vector<8x768xf32>
    %105 = tpu.matmul %103, %104, %cst_58 {dimension_numbers = #tpu.dot_dimension_numbers<[1], [0], [0], [1], [0, 0, 1, 1], [], []>} : vector<8x8xf32>, vector<8x768xf32>, vector<8x768xf32> -> vector<8x768xf32>
    %106 = arith.addf %105, %104 : vector<8x768xf32>
    %107 = tpu.concatenate %66, %106 in 0 : vector<8x768xf32>, vector<8x768xf32> -> vector<16x768xf32>
    %108 = arith.truncf %107 : vector<16x768xf32> to vector<16x768xbf16>
    tpu.wait_dma2 semaphore(%arg16 : memref<!tpu.dma_semaphore, #tpu.memory_space<semaphore_mem>>) src(%arg11 : memref<768x768xbf16, #tpu.memory_space<any>>) dst(%arg15 : memref<768x768xbf16, #tpu.memory_space<vmem>>)
    %c0_59 = arith.constant 0 : index
    %c0_60 = arith.constant 0 : index
    %109 = vector.load %arg15[%c0_59, %c0_60] : memref<768x768xbf16, #tpu.memory_space<vmem>>, vector<768x768xbf16>
    %cst_61 = arith.constant dense<0.000000e+00> : vector<16x768xf32>
    %110 = tpu.matmul %108, %109, %cst_61 {dimension_numbers = #tpu.dot_dimension_numbers<[1], [0], [0], [1], [0, 0, 1, 1], [], []>} : vector<16x768xbf16>, vector<768x768xbf16>, vector<16x768xf32> -> vector<16x768xf32>
    %c0_62 = arith.constant 0 : index
    %c0_63 = arith.constant 0 : index
    %111 = vector.load %arg10[%c0_62, %c0_63] : memref<4x768xf32, #tpu.memory_space<vmem>>, vector<1x768xf32>
    %112 = vector.broadcast %111 : vector<1x768xf32> to vector<16x768xf32>
    %113 = arith.addf %110, %112 : vector<16x768xf32>
    %cst_64 = arith.constant dense<0.000000e+00> : vector<16xf32>
    %114 = vector.multi_reduction <add>, %113, %cst_64 [1] : vector<16x768xf32> to vector<16xf32>
    %115 = vector.shape_cast %114 : vector<16xf32> to vector<16x1xf32>
    %cst_65 = arith.constant 7.680000e+02 : f32
    %116 = vector.broadcast %cst_65 : f32 to vector<16x1xf32>
    %117 = arith.divf %115, %116 : vector<16x1xf32>
    %118 = vector.broadcast %117 : vector<16x1xf32> to vector<16x768xf32>
    %119 = arith.subf %113, %118 : vector<16x768xf32>
    %120 = arith.mulf %119, %119 : vector<16x768xf32>
    %cst_66 = arith.constant dense<0.000000e+00> : vector<16xf32>
    %121 = vector.multi_reduction <add>, %120, %cst_66 [1] : vector<16x768xf32> to vector<16xf32>
    %122 = vector.shape_cast %121 : vector<16xf32> to vector<16x1xf32>
    %cst_67 = arith.constant 7.680000e+02 : f32
    %123 = vector.broadcast %cst_67 : f32 to vector<16x1xf32>
    %124 = arith.divf %122, %123 : vector<16x1xf32>
    %125 = vector.broadcast %117 : vector<16x1xf32> to vector<16x768xf32>
    %126 = arith.subf %113, %125 : vector<16x768xf32>
    %cst_68 = arith.constant 9.99999996E-13 : f32
    %127 = vector.broadcast %cst_68 : f32 to vector<16x1xf32>
    %128 = arith.addf %124, %127 : vector<16x1xf32>
    %129 = math.rsqrt %128 : vector<16x1xf32>
    %130 = vector.broadcast %129 : vector<16x1xf32> to vector<16x768xf32>
    %131 = arith.mulf %126, %130 : vector<16x768xf32>
    %c1_69 = arith.constant 1 : index
    %c0_70 = arith.constant 0 : index
    %132 = vector.load %arg10[%c1_69, %c0_70] : memref<4x768xf32, #tpu.memory_space<vmem>>, vector<1x768xf32>
    %133 = vector.broadcast %132 : vector<1x768xf32> to vector<16x768xf32>
    %134 = arith.mulf %133, %131 : vector<16x768xf32>
    %c2_71 = arith.constant 2 : index
    %c0_72 = arith.constant 0 : index
    %135 = vector.load %arg10[%c2_71, %c0_72] : memref<4x768xf32, #tpu.memory_space<vmem>>, vector<1x768xf32>
    %136 = vector.broadcast %135 : vector<1x768xf32> to vector<16x768xf32>
    %137 = arith.addf %134, %136 : vector<16x768xf32>
    %138 = vector.extract_strided_slice %137 {offsets = [0, 0], sizes = [1, 768], strides = [1, 1]} : vector<16x768xf32> to vector<1x768xf32>
    %139 = vector.extract_strided_slice %137 {offsets = [8, 0], sizes = [1, 768], strides = [1, 1]} : vector<16x768xf32> to vector<1x768xf32>
    %140 = tpu.concatenate %138, %139 in 0 : vector<1x768xf32>, vector<1x768xf32> -> vector<2x768xf32>
    %c3_73 = arith.constant 3 : index
    %c0_74 = arith.constant 0 : index
    %141 = vector.load %arg10[%c3_73, %c0_74] : memref<4x768xf32, #tpu.memory_space<vmem>>, vector<1x768xf32>
    %142 = vector.broadcast %141 : vector<1x768xf32> to vector<2x768xf32>
    %143 = arith.mulf %140, %142 : vector<2x768xf32>
    %cst_75 = arith.constant dense<0.000000e+00> : vector<2xf32>
    %144 = vector.multi_reduction <add>, %143, %cst_75 [1] : vector<2x768xf32> to vector<2xf32>
    %145 = vector.shape_cast %144 : vector<2xf32> to vector<2x1xf32>
    %146 = vector.broadcast %3 : f32 to vector<2x1xf32>
    %147 = arith.addf %145, %146 : vector<2x1xf32>
    %c0_76 = arith.constant 0 : index
    %c0_77 = arith.constant 0 : index
    %148 = vector.load %arg12[%c0_76, %c0_77] : memref<2x1xf32, #tpu.memory_space<vmem>>, vector<2x1xf32>
    tpu.vector_store %arg12[%c0_76, %c0_77], %147 {strides = array<i32>} : memref<2x1xf32, #tpu.memory_space<vmem>>, vector<2x1xf32>,
    return
  }
}

</mosaic_0001>

<llo_original>
// kernel: _lambda_.1
$region0: #{_lambda_.1}
  #allocation0 [shape = 'u32[]', space=smem, size = 0x4, offset = 0x4, fixed_abs, tag = 'smem constant byte address 0x4 - core index']
  #allocation1 [shape = 'u32[72,128]{1,0:T(1,128)}', space=vmem, size = 0x9000, scoped, tag = 'internal scratch']
  #allocation2 [shape = 'bf16[768,768]{1,0:T(8,128)(2,1)}', space=vmem, size = 0x120000, scoped, tag = 'scratch operand']
  #allocation3 [shape = 's32[1]{0}', space=sflag, size = 0x4, scoped, tag = 'scratch operand']
  #allocation15 [shape = 's32[]', space=sflag, size = 0x4, offset = 0, fixed_abs, tag = 'sflag constant byte address 0x0 - dummy sync flag']
  %s0 = inlined_call_operand.vmem [shape: f32[4], index: 0, kind: input, shape index: {}]
  %s1 = inlined_call_operand.vmem [shape: f32[16,104], index: 1, kind: input, shape index: {}]
  %s2 = inlined_call_operand.vmem [shape: f32[16,168], index: 2, kind: input, shape index: {}]
  %s3 = inlined_call_operand.hbm [shape: f32[104,640], index: 3, kind: input, shape index: {}]
  %s4 = inlined_call_operand.hbm [shape: f32[168,640], index: 4, kind: input, shape index: {}]
  %s5 = inlined_call_operand.vmem [shape: f32[640,30], index: 5, kind: input, shape index: {}]
  %s6 = inlined_call_operand.vmem [shape: f32[16,30], index: 6, kind: input, shape index: {}]
  %s7 = inlined_call_operand.vmem [shape: f32[16,768], index: 7, kind: input, shape index: {}]
  %s8 = inlined_call_operand.vmem [shape: f32[2,8,8], index: 8, kind: input, shape index: {}]
  %s9 = inlined_call_operand.hbm [shape: f32[768,30], index: 9, kind: input, shape index: {}]
  %s10 = inlined_call_operand.vmem [shape: f32[4,768], index: 10, kind: input, shape index: {}]
  %s11 = inlined_call_operand.vmem [shape: bf16[768,768], index: 11, kind: input, shape index: {}]
  %s12 = inlined_call_operand.vmem [shape: f32[2,1], index: 12, kind: output, shape index: {0}]
  %s13 = inlined_call_operand.hbm [shape: f32[2,8,8], index: 13, kind: output, shape index: {1}]
  %s14 = inlined_call_operand.hbm [shape: f32[2,8,8], index: 14, kind: output, shape index: {2}]
  %15 = xla_tuple %s12, %s13, %s14
  %s16 = sld [smem:[#allocation0]]
  $region105: #{_lambda_.1} parent=0
    _
  %s18 = ssub.s32 1, %s16
  %s19 = scalar_select 0, %s18, %s16
  $region1: #{_lambda_.1} parent=0
    #allocation4 [shape = 'u8[512]{0}', space=smem, size = 0x200, scoped, tag = 'input window, operand 0, single buffered']
    #allocation5 [shape = 's32[1]{0}', space=sflag, size = 0x4, scoped, tag = 'scoped memory for _lambda_.1']
    #allocation6 [shape = 's32[1]{0}', space=sflag, size = 0x4, scoped, tag = 'scoped memory for _lambda_.1']
    #allocation7 [shape = 's32[1]{0}', space=sflag, size = 0x4, scoped, tag = 'scoped memory for _lambda_.1']
    #allocation8 [shape = 'u8[266240]{0}', space=vmem, size = 0x41000, scoped, tag = 'input window, operand 3, single buffered']
    #allocation9 [shape = 'u8[430080]{0}', space=vmem, size = 0x69000, scoped, tag = 'input window, operand 4, single buffered']
    #allocation10 [shape = 's32[1]{0}', space=sflag, size = 0x4, scoped, tag = 'scoped memory for _lambda_.1']
    #allocation11 [shape = 'u8[393216]{0}', space=vmem, size = 0x60000, scoped, tag = 'input window, operand 9, single buffered']
    #allocation12 [shape = 'u8[8192]{0}', space=vmem, size = 0x2000, scoped, tag = 'output window, operand 1, single buffered']
    #allocation13 [shape = 'u8[8192]{0}', space=vmem, size = 0x2000, scoped, tag = 'output window, operand 2, single buffered']
    #allocation14 [shape = 's32[1]{0}', space=sflag, size = 0x4, scoped, tag = 'scoped memory for _lambda_.1']
    %20 = vsyncpa [#allocation7], 0
    %21 = vsyncpa [#allocation5], 0
    %22 = vsyncpa [#allocation10], 0
    %23 = vsyncpa [#allocation6], 0
    %24 = vsyncpa [#allocation14], 0
    // Predicated region
    $region2: #{_lambda_.1} parent=1 // pred_check
      _
    $region3: #{_lambda_.1} parent=1 // pred_check_branch
      %26 = sbr.rel (0) target = $region5
    $region4: #{_lambda_.1} parent=1 // pred_region
      %28 = vsyncadd [#allocation7], 0
      %s30 = sshll.u32 %s0, 4
      %s31 = int_to_ptr.vmem [resolvable:$true] %s30
      %33 = dma.vmem_to_smem %s31, 16, [#allocation4], [#allocation7]
    $region5: #{_lambda_.1} parent=1 // pred_fallthru
      _
    // Predicated region
    $region6: #{_lambda_.1} parent=1 // pred_check
      _
    $region7: #{_lambda_.1} parent=1 // pred_check_branch
      %35 = sbr.rel (0) target = $region9
    $region8: #{_lambda_.1} parent=1 // pred_region
      _
    $region9: #{_lambda_.1} parent=1 // pred_fallthru
      _
    // Predicated region
    $region10: #{_lambda_.1} parent=1 // pred_check
      _
    $region11: #{_lambda_.1} parent=1 // pred_check_branch
      %37 = sbr.rel (0) target = $region13
    $region12: #{_lambda_.1} parent=1 // pred_region
      _
    $region13: #{_lambda_.1} parent=1 // pred_fallthru
      _
    // Predicated region
    $region14: #{_lambda_.1} parent=1 // pred_check
      _
    $region15: #{_lambda_.1} parent=1 // pred_check_branch
      %39 = sbr.rel (0) target = $region17
    $region16: #{_lambda_.1} parent=1 // pred_region
      %41 = vsyncadd [#allocation5], 0
      %s42 = sshll.u32 %s3, 4
      %s43 = int_to_ptr.hbm [resolvable:$true] %s42
      %s44 = sshll.u32 [#allocation8], 4
      %s45 = int_to_ptr.vmem [resolvable:$true] %s44
      %50 = dma.hbm_to_vmem [thread:$0]  %s43, 8320, %s45, [#allocation5], 640, 640, 40
    $region17: #{_lambda_.1} parent=1 // pred_fallthru
      _
    // Predicated region
    $region18: #{_lambda_.1} parent=1 // pred_check
      _
    $region19: #{_lambda_.1} parent=1 // pred_check_branch
      %52 = sbr.rel (0) target = $region21
    $region20: #{_lambda_.1} parent=1 // pred_region
      %54 = vsyncadd [#allocation10], 0
      %s55 = sshll.u32 %s4, 4
      %s56 = int_to_ptr.hbm [resolvable:$true] %s55
      %s57 = sshll.u32 [#allocation9], 4
      %s58 = int_to_ptr.vmem [resolvable:$true] %s57
      %63 = dma.hbm_to_vmem [thread:$0]  %s56, 13440, %s58, [#allocation10], 640, 640, 40
    $region21: #{_lambda_.1} parent=1 // pred_fallthru
      _
    // Predicated region
    $region22: #{_lambda_.1} parent=1 // pred_check
      _
    $region23: #{_lambda_.1} parent=1 // pred_check_branch
      %65 = sbr.rel (0) target = $region25
    $region24: #{_lambda_.1} parent=1 // pred_region
      _
    $region25: #{_lambda_.1} parent=1 // pred_fallthru
      _
    // Predicated region
    $region26: #{_lambda_.1} parent=1 // pred_check
      _
    $region27: #{_lambda_.1} parent=1 // pred_check_branch
      %67 = sbr.rel (0) target = $region29
    $region28: #{_lambda_.1} parent=1 // pred_region
      _
    $region29: #{_lambda_.1} parent=1 // pred_fallthru
      _
    // Predicated region
    $region30: #{_lambda_.1} parent=1 // pred_check
      _
    $region31: #{_lambda_.1} parent=1 // pred_check_branch
      %69 = sbr.rel (0) target = $region33
    $region32: #{_lambda_.1} parent=1 // pred_region
      _
    $region33: #{_lambda_.1} parent=1 // pred_fallthru
      _
    // Predicated region
    $region34: #{_lambda_.1} parent=1 // pred_check
      _
    $region35: #{_lambda_.1} parent=1 // pred_check_branch
      %71 = sbr.rel (0) target = $region37
    $region36: #{_lambda_.1} parent=1 // pred_region
      _
    $region37: #{_lambda_.1} parent=1 // pred_fallthru
      _
    // Predicated region
    $region38: #{_lambda_.1} parent=1 // pred_check
      _
    $region39: #{_lambda_.1} parent=1 // pred_check_branch
      %73 = sbr.rel (0) target = $region41
    $region40: #{_lambda_.1} parent=1 // pred_region
      %75 = vsyncadd [#allocation10], 0
      %s76 = sshll.u32 %s9, 4
      %s77 = int_to_ptr.hbm [resolvable:$true] %s76
      %s78 = sshll.u32 [#allocation11], 4
      %s79 = int_to_ptr.vmem [resolvable:$true] %s78
      %84 = dma.hbm_to_vmem [thread:$0]  %s77, 12288, %s79, [#allocation10], 128, 128, 8
    $region41: #{_lambda_.1} parent=1 // pred_fallthru
      _
    // Predicated region
    $region42: #{_lambda_.1} parent=1 // pred_check
      _
    $region43: #{_lambda_.1} parent=1 // pred_check_branch
      %86 = sbr.rel (0) target = $region45
    $region44: #{_lambda_.1} parent=1 // pred_region
      _
    $region45: #{_lambda_.1} parent=1 // pred_fallthru
      _
    // Predicated region
    $region46: #{_lambda_.1} parent=1 // pred_check
      _
    $region47: #{_lambda_.1} parent=1 // pred_check_branch
      %88 = sbr.rel (0) target = $region49
    $region48: #{_lambda_.1} parent=1 // pred_region
      %90 = dma.done [#allocation7], 16
    $region49: #{_lambda_.1} parent=1 // pred_fallthru
      _
    // Predicated region
    $region50: #{_lambda_.1} parent=1 // pred_check
      _
    $region51: #{_lambda_.1} parent=1 // pred_check_branch
      %92 = sbr.rel (0) target = $region53
    $region52: #{_lambda_.1} parent=1 // pred_region
      %94 = dma.done [#allocation5], 8320
    $region53: #{_lambda_.1} parent=1 // pred_fallthru
      _
    // Predicated region
    $region54: #{_lambda_.1} parent=1 // pred_check
      _
    $region55: #{_lambda_.1} parent=1 // pred_check_branch
      %96 = sbr.rel (0) target = $region57
    $region56: #{_lambda_.1} parent=1 // pred_region
      %98 = dma.done [#allocation10], 13440
    $region57: #{_lambda_.1} parent=1 // pred_fallthru
      _
    // Predicated region
    $region58: #{_lambda_.1} parent=1 // pred_check
      _
    $region59: #{_lambda_.1} parent=1 // pred_check_branch
      %100 = sbr.rel (0) target = $region61
    $region60: #{_lambda_.1} parent=1 // pred_region
      %102 = dma.done [#allocation10], 12288
    $region61: #{_lambda_.1} parent=1 // pred_fallthru
      _
    %103 = sfence
    %s104 = sld [smem:[#allocation4]]
    %s105 = sld [smem:[#allocation4 + $0x1]]
    %s106 = sld [smem:[#allocation4 + $0x2]]
    %s107 = sld [smem:[#allocation4 + $0x3]]
    // Predicated region
    $region62: #{_lambda_.1} parent=1 // pred_check
      _
    $region63: #{_lambda_.1} parent=1 // pred_check_branch
      %109 = sbr.rel (0) target = $region65
    $region64: #{_lambda_.1} parent=1 // pred_region
      loop: start=0, step=1, limit=1
      $region66: #{_lambda_.1} parent=64 // loop_pre_header
        _
      $region67: #{_lambda_.1} parent=64 // loop_header
        %s111 = sphi 0, %s115
        %p112 = scmp.ge.s32.totalorder %s111, 1
        %s116 = sphi %s11, %s11
        %s117 = sphi [#allocation2], [#allocation2]
      $region68: #{_lambda_.1} parent=64 // loop_header_branch
        %114 = sbr.rel (%p112) target = $region72
      $region69: #{_lambda_.1} parent=64 // loop_body
        %v118 = vld [vmem:[%s116] sm:$0xff]
        %119 = vst [vmem:[%s117] sm:$0xff] %v118
        %v120 = vld [vmem:[%s116 + $0x8] sm:$0xff]
        %121 = vst [vmem:[%s117 + $0x8] sm:$0xff] %v120
        %v122 = vld [vmem:[%s116 + $0x10] sm:$0xff]
        %123 = vst [vmem:[%s117 + $0x10] sm:$0xff] %v122
        %v124 = vld [vmem:[%s116 + $0x18] sm:$0xff]
        %125 = vst [vmem:[%s117 + $0x18] sm:$0xff] %v124
        %v126 = vld [vmem:[%s116 + $0x20] sm:$0xff]
        %127 = vst [vmem:[%s117 + $0x20] sm:$0xff] %v126
        %v128 = vld [vmem:[%s116 + $0x28] sm:$0xff]
        %129 = vst [vmem:[%s117 + $0x28] sm:$0xff] %v128
        %v130 = vld [vmem:[%s116 + $0x30] sm:$0xff]
        %131 = vst [vmem:[%s117 + $0x30] sm:$0xff] %v130
        %v132 = vld [vmem:[%s116 + $0x38] sm:$0xff]
        %133 = vst [vmem:[%s117 + $0x38] sm:$0xff] %v132
        %v134 = vld [vmem:[%s116 + $0x40] sm:$0xff]
        %135 = vst [vmem:[%s117 + $0x40] sm:$0xff] %v134
        %v136 = vld [vmem:[%s116 + $0x48] sm:$0xff]
        %137 = vst [vmem:[%s117 + $0x48] sm:$0xff] %v136
        %v138 = vld [vmem:[%s116 + $0x50] sm:$0xff]
        %139 = vst [vmem:[%s117 + $0x50] sm:$0xff] %v138
        %v140 = vld [vmem:[%s116 + $0x58] sm:$0xff]
        %141 = vst [vmem:[%s117 + $0x58] sm:$0xff] %v140
        %v142 = vld [vmem:[%s116 + $0x60] sm:$0xff]
        %143 = vst [vmem:[%s117 + $0x60] sm:$0xff] %v142
        %v144 = vld [vmem:[%s116 + $0x68] sm:$0xff]
        %145 = vst [vmem:[%s117 + $0x68] sm:$0xff] %v144
        %v146 = vld [vmem:[%s116 + $0x70] sm:$0xff]
        %147 = vst [vmem:[%s117 + $0x70] sm:$0xff] %v146
        %v148 = vld [vmem:[%s116 + $0x78] sm:$0xff]
        %149 = vst [vmem:[%s117 + $0x78] sm:$0xff] %v148
        %v150 = vld [vmem:[%s116 + $0x80] sm:$0xff]
        %151 = vst [vmem:[%s117 + $0x80] sm:$0xff] %v150
        %v152 = vld [vmem:[%s116 + $0x88] sm:$0xff]
        %153 = vst [vmem:[%s117 + $0x88] sm:$0xff] %v152
        %v154 = vld [vmem:[%s116 + $0x90] sm:$0xff]
        %155 = vst [vmem:[%s117 + $0x90] sm:$0xff] %v154
        %v156 = vld [vmem:[%s116 + $0x98] sm:$0xff]
        %157 = vst [vmem:[%s117 + $0x98] sm:$0xff] %v156
        %v158 = vld [vmem:[%s116 + $0xa0] sm:$0xff]
        %159 = vst [vmem:[%s117 + $0xa0] sm:$0xff] %v158
        %v160 = vld [vmem:[%s116 + $0xa8] sm:$0xff]
        %161 = vst [vmem:[%s117 + $0xa8] sm:$0xff] %v160
        %v162 = vld [vmem:[%s116 + $0xb0] sm:$0xff]
        %163 = vst [vmem:[%s117 + $0xb0] sm:$0xff] %v162
        %v164 = vld [vmem:[%s116 + $0xb8] sm:$0xff]
        %165 = vst [vmem:[%s117 + $0xb8] sm:$0xff] %v164
        %v166 = vld [vmem:[%s116 + $0xc0] sm:$0xff]
        %167 = vst [vmem:[%s117 + $0xc0] sm:$0xff] %v166
        %v168 = vld [vmem:[%s116 + $0xc8] sm:$0xff]
        %169 = vst [vmem:[%s117 + $0xc8] sm:$0xff] %v168
        %v170 = vld [vmem:[%s116 + $0xd0] sm:$0xff]
        %171 = vst [vmem:[%s117 + $0xd0] sm:$0xff] %v170
        %v172 = vld [vmem:[%s116 + $0xd8] sm:$0xff]
        %173 = vst [vmem:[%s117 + $0xd8] sm:$0xff] %v172
        %v174 = vld [vmem:[%s116 + $0xe0] sm:$0xff]
        %175 = vst [vmem:[%s117 + $0xe0] sm:$0xff] %v174
        %v176 = vld [vmem:[%s116 + $0xe8] sm:$0xff]
        %177 = vst [vmem:[%s117 + $0xe8] sm:$0xff] %v176
        %v178 = vld [vmem:[%s116 + $0xf0] sm:$0xff]
        %179 = vst [vmem:[%s117 + $0xf0] sm:$0xff] %v178
        %v180 = vld [vmem:[%s116 + $0xf8] sm:$0xff]
        %181 = vst [vmem:[%s117 + $0xf8] sm:$0xff] %v180
        %v182 = vld [vmem:[%s116 + $0x100] sm:$0xff]
        %183 = vst [vmem:[%s117 + $0x100] sm:$0xff] %v182
        %v184 = vld [vmem:[%s116 + $0x108] sm:$0xff]
        %185 = vst [vmem:[%s117 + $0x108] sm:$0xff] %v184
        %v186 = vld [vmem:[%s116 + $0x110] sm:$0xff]
        %187 = vst [vmem:[%s117 + $0x110] sm:$0xff] %v186
        %v188 = vld [vmem:[%s116 + $0x118] sm:$0xff]
        %189 = vst [vmem:[%s117 + $0x118] sm:$0xff] %v188
        %v190 = vld [vmem:[%s116 + $0x120] sm:$0xff]
        %191 = vst [vmem:[%s117 + $0x120] sm:$0xff] %v190
        %v192 = vld [vmem:[%s116 + $0x128] sm:$0xff]
        %193 = vst [vmem:[%s117 + $0x128] sm:$0xff] %v192
        %v194 = vld [vmem:[%s116 + $0x130] sm:$0xff]
        %195 = vst [vmem:[%s117 + $0x130] sm:$0xff] %v194
        %v196 = vld [vmem:[%s116 + $0x138] sm:$0xff]
        %197 = vst [vmem:[%s117 + $0x138] sm:$0xff] %v196
        %v198 = vld [vmem:[%s116 + $0x140] sm:$0xff]
        %199 = vst [vmem:[%s117 + $0x140] sm:$0xff] %v198
        %v200 = vld [vmem:[%s116 + $0x148] sm:$0xff]
        %201 = vst [vmem:[%s117 + $0x148] sm:$0xff] %v200
        %v202 = vld [vmem:[%s116 + $0x150] sm:$0xff]
        %203 = vst [vmem:[%s117 + $0x150] sm:$0xff] %v202
        %v204 = vld [vmem:[%s116 + $0x158] sm:$0xff]
        %205 = vst [vmem:[%s117 + $0x158] sm:$0xff] %v204
        %v206 = vld [vmem:[%s116 + $0x160] sm:$0xff]
        %207 = vst [vmem:[%s117 + $0x160] sm:$0xff] %v206
        %v208 = vld [vmem:[%s116 + $0x168] sm:$0xff]
        %209 = vst [vmem:[%s117 + $0x168] sm:$0xff] %v208
        %v210 = vld [vmem:[%s116 + $0x170] sm:$0xff]
        %211 = vst [vmem:[%s117 + $0x170] sm:$0xff] %v210
        %v212 = vld [vmem:[%s116 + $0x178] sm:$0xff]
        %213 = vst [vmem:[%s117 + $0x178] sm:$0xff] %v212
        %v214 = vld [vmem:[%s116 + $0x180] sm:$0xff]
        %215 = vst [vmem:[%s117 + $0x180] sm:$0xff] %v214
        %v216 = vld [vmem:[%s116 + $0x188] sm:$0xff]
        %217 = vst [vmem:[%s117 + $0x188] sm:$0xff] %v216
        %v218 = vld [vmem:[%s116 + $0x190] sm:$0xff]
        %219 = vst [vmem:[%s117 + $0x190] sm:$0xff] %v218
        %v220 = vld [vmem:[%s116 + $0x198] sm:$0xff]
        %221 = vst [vmem:[%s117 + $0x198] sm:$0xff] %v220
        %v222 = vld [vmem:[%s116 + $0x1a0] sm:$0xff]
        %223 = vst [vmem:[%s117 + $0x1a0] sm:$0xff] %v222
        %v224 = vld [vmem:[%s116 + $0x1a8] sm:$0xff]
        %225 = vst [vmem:[%s117 + $0x1a8] sm:$0xff] %v224
        %v226 = vld [vmem:[%s116 + $0x1b0] sm:$0xff]
        %227 = vst [vmem:[%s117 + $0x1b0] sm:$0xff] %v226
        %v228 = vld [vmem:[%s116 + $0x1b8] sm:$0xff]
        %229 = vst [vmem:[%s117 + $0x1b8] sm:$0xff] %v228
        %v230 = vld [vmem:[%s116 + $0x1c0] sm:$0xff]
        %231 = vst [vmem:[%s117 + $0x1c0] sm:$0xff] %v230
        %v232 = vld [vmem:[%s116 + $0x1c8] sm:$0xff]
        %233 = vst [vmem:[%s117 + $0x1c8] sm:$0xff] %v232
        %v234 = vld [vmem:[%s116 + $0x1d0] sm:$0xff]
        %235 = vst [vmem:[%s117 + $0x1d0] sm:$0xff] %v234
        %v236 = vld [vmem:[%s116 + $0x1d8] sm:$0xff]
        %237 = vst [vmem:[%s117 + $0x1d8] sm:$0xff] %v236
        %v238 = vld [vmem:[%s116 + $0x1e0] sm:$0xff]
        %239 = vst [vmem:[%s117 + $0x1e0] sm:$0xff] %v238
        %v240 = vld [vmem:[%s116 + $0x1e8] sm:$0xff]
        %241 = vst [vmem:[%s117 + $0x1e8] sm:$0xff] %v240
        %v242 = vld [vmem:[%s116 + $0x1f0] sm:$0xff]
        %243 = vst [vmem:[%s117 + $0x1f0] sm:$0xff] %v242
        %v244 = vld [vmem:[%s116 + $0x1f8] sm:$0xff]
        %245 = vst [vmem:[%s117 + $0x1f8] sm:$0xff] %v244
        %v246 = vld [vmem:[%s116 + $0x200] sm:$0xff]
        %247 = vst [vmem:[%s117 + $0x200] sm:$0xff] %v246
        %v248 = vld [vmem:[%s116 + $0x208] sm:$0xff]
        %249 = vst [vmem:[%s117 + $0x208] sm:$0xff] %v248
        %v250 = vld [vmem:[%s116 + $0x210] sm:$0xff]
        %251 = vst [vmem:[%s117 + $0x210] sm:$0xff] %v250
        %v252 = vld [vmem:[%s116 + $0x218] sm:$0xff]
        %253 = vst [vmem:[%s117 + $0x218] sm:$0xff] %v252
        %v254 = vld [vmem:[%s116 + $0x220] sm:$0xff]
        %255 = vst [vmem:[%s117 + $0x220] sm:$0xff] %v254
        %v256 = vld [vmem:[%s116 + $0x228] sm:$0xff]
        %257 = vst [vmem:[%s117 + $0x228] sm:$0xff] %v256
        %v258 = vld [vmem:[%s116 + $0x230] sm:$0xff]
        %259 = vst [vmem:[%s117 + $0x230] sm:$0xff] %v258
        %v260 = vld [vmem:[%s116 + $0x238] sm:$0xff]
        %261 = vst [vmem:[%s117 + $0x238] sm:$0xff] %v260
        %v262 = vld [vmem:[%s116 + $0x240] sm:$0xff]
        %263 = vst [vmem:[%s117 + $0x240] sm:$0xff] %v262
        %v264 = vld [vmem:[%s116 + $0x248] sm:$0xff]
        %265 = vst [vmem:[%s117 + $0x248] sm:$0xff] %v264
        %v266 = vld [vmem:[%s116 + $0x250] sm:$0xff]
        %267 = vst [vmem:[%s117 + $0x250] sm:$0xff] %v266
        %v268 = vld [vmem:[%s116 + $0x258] sm:$0xff]
        %269 = vst [vmem:[%s117 + $0x258] sm:$0xff] %v268
        %v270 = vld [vmem:[%s116 + $0x260] sm:$0xff]
        %271 = vst [vmem:[%s117 + $0x260] sm:$0xff] %v270
        %v272 = vld [vmem:[%s116 + $0x268] sm:$0xff]
        %273 = vst [vmem:[%s117 + $0x268] sm:$0xff] %v272
        %v274 = vld [vmem:[%s116 + $0x270] sm:$0xff]
        %275 = vst [vmem:[%s117 + $0x270] sm:$0xff] %v274
        %v276 = vld [vmem:[%s116 + $0x278] sm:$0xff]
        %277 = vst [vmem:[%s117 + $0x278] sm:$0xff] %v276
        %v278 = vld [vmem:[%s116 + $0x280] sm:$0xff]
        %279 = vst [vmem:[%s117 + $0x280] sm:$0xff] %v278
        %v280 = vld [vmem:[%s116 + $0x288] sm:$0xff]
        %281 = vst [vmem:[%s117 + $0x288] sm:$0xff] %v280
        %v282 = vld [vmem:[%s116 + $0x290] sm:$0xff]
        %283 = vst [vmem:[%s117 + $0x290] sm:$0xff] %v282
        %v284 = vld [vmem:[%s116 + $0x298] sm:$0xff]
        %285 = vst [vmem:[%s117 + $0x298] sm:$0xff] %v284
        %v286 = vld [vmem:[%s116 + $0x2a0] sm:$0xff]
        %287 = vst [vmem:[%s117 + $0x2a0] sm:$0xff] %v286
        %v288 = vld [vmem:[%s116 + $0x2a8] sm:$0xff]
        %289 = vst [vmem:[%s117 + $0x2a8] sm:$0xff] %v288
        %v290 = vld [vmem:[%s116 + $0x2b0] sm:$0xff]
        %291 = vst [vmem:[%s117 + $0x2b0] sm:$0xff] %v290
        %v292 = vld [vmem:[%s116 + $0x2b8] sm:$0xff]
        %293 = vst [vmem:[%s117 + $0x2b8] sm:$0xff] %v292
        %v294 = vld [vmem:[%s116 + $0x2c0] sm:$0xff]
        %295 = vst [vmem:[%s117 + $0x2c0] sm:$0xff] %v294
        %v296 = vld [vmem:[%s116 + $0x2c8] sm:$0xff]
        %297 = vst [vmem:[%s117 + $0x2c8] sm:$0xff] %v296
        %v298 = vld [vmem:[%s116 + $0x2d0] sm:$0xff]
        %299 = vst [vmem:[%s117 + $0x2d0] sm:$0xff] %v298
        %v300 = vld [vmem:[%s116 + $0x2d8] sm:$0xff]
        %301 = vst [vmem:[%s117 + $0x2d8] sm:$0xff] %v300
        %v302 = vld [vmem:[%s116 + $0x2e0] sm:$0xff]
        %303 = vst [vmem:[%s117 + $0x2e0] sm:$0xff] %v302
        %v304 = vld [vmem:[%s116 + $0x2e8] sm:$0xff]
        %305 = vst [vmem:[%s117 + $0x2e8] sm:$0xff] %v304
        %v306 = vld [vmem:[%s116 + $0x2f0] sm:$0xff]
        %307 = vst [vmem:[%s117 + $0x2f0] sm:$0xff] %v306
        %v308 = vld [vmem:[%s116 + $0x2f8] sm:$0xff]
        %309 = vst [vmem:[%s117 + $0x2f8] sm:$0xff] %v308
        %v310 = vld [vmem:[%s116 + $0x300] sm:$0xff]
        %311 = vst [vmem:[%s117 + $0x300] sm:$0xff] %v310
        %v312 = vld [vmem:[%s116 + $0x308] sm:$0xff]
        %313 = vst [vmem:[%s117 + $0x308] sm:$0xff] %v312
        %v314 = vld [vmem:[%s116 + $0x310] sm:$0xff]
        %315 = vst [vmem:[%s117 + $0x310] sm:$0xff] %v314
        %v316 = vld [vmem:[%s116 + $0x318] sm:$0xff]
        %317 = vst [vmem:[%s117 + $0x318] sm:$0xff] %v316
        %v318 = vld [vmem:[%s116 + $0x320] sm:$0xff]
        %319 = vst [vmem:[%s117 + $0x320] sm:$0xff] %v318
        %v320 = vld [vmem:[%s116 + $0x328] sm:$0xff]
        %321 = vst [vmem:[%s117 + $0x328] sm:$0xff] %v320
        %v322 = vld [vmem:[%s116 + $0x330] sm:$0xff]
        %323 = vst [vmem:[%s117 + $0x330] sm:$0xff] %v322
        %v324 = vld [vmem:[%s116 + $0x338] sm:$0xff]
        %325 = vst [vmem:[%s117 + $0x338] sm:$0xff] %v324
        %v326 = vld [vmem:[%s116 + $0x340] sm:$0xff]
        %327 = vst [vmem:[%s117 + $0x340] sm:$0xff] %v326
        %v328 = vld [vmem:[%s116 + $0x348] sm:$0xff]
        %329 = vst [vmem:[%s117 + $0x348] sm:$0xff] %v328
        %v330 = vld [vmem:[%s116 + $0x350] sm:$0xff]
        %331 = vst [vmem:[%s117 + $0x350] sm:$0xff] %v330
        %v332 = vld [vmem:[%s116 + $0x358] sm:$0xff]
        %333 = vst [vmem:[%s117 + $0x358] sm:$0xff] %v332
        %v334 = vld [vmem:[%s116 + $0x360] sm:$0xff]
        %335 = vst [vmem:[%s117 + $0x360] sm:$0xff] %v334
        %v336 = vld [vmem:[%s116 + $0x368] sm:$0xff]
        %337 = vst [vmem:[%s117 + $0x368] sm:$0xff] %v336
        %v338 = vld [vmem:[%s116 + $0x370] sm:$0xff]
        %339 = vst [vmem:[%s117 + $0x370] sm:$0xff] %v338
        %v340 = vld [vmem:[%s116 + $0x378] sm:$0xff]
        %341 = vst [vmem:[%s117 + $0x378] sm:$0xff] %v340
        %v342 = vld [vmem:[%s116 + $0x380] sm:$0xff]
        %343 = vst [vmem:[%s117 + $0x380] sm:$0xff] %v342
        %v344 = vld [vmem:[%s116 + $0x388] sm:$0xff]
        %345 = vst [vmem:[%s117 + $0x388] sm:$0xff] %v344
        %v346 = vld [vmem:[%s116 + $0x390] sm:$0xff]
        %347 = vst [vmem:[%s117 + $0x390] sm:$0xff] %v346
        %v348 = vld [vmem:[%s116 + $0x398] sm:$0xff]
        %349 = vst [vmem:[%s117 + $0x398] sm:$0xff] %v348
        %v350 = vld [vmem:[%s116 + $0x3a0] sm:$0xff]
        %351 = vst [vmem:[%s117 + $0x3a0] sm:$0xff] %v350
        %v352 = vld [vmem:[%s116 + $0x3a8] sm:$0xff]
        %353 = vst [vmem:[%s117 + $0x3a8] sm:$0xff] %v352
        %v354 = vld [vmem:[%s116 + $0x3b0] sm:$0xff]
        %355 = vst [vmem:[%s117 + $0x3b0] sm:$0xff] %v354
        %v356 = vld [vmem:[%s116 + $0x3b8] sm:$0xff]
        %357 = vst [vmem:[%s117 + $0x3b8] sm:$0xff] %v356
        %v358 = vld [vmem:[%s116 + $0x3c0] sm:$0xff]
        %359 = vst [vmem:[%s117 + $0x3c0] sm:$0xff] %v358
        %v360 = vld [vmem:[%s116 + $0x3c8] sm:$0xff]
        %361 = vst [vmem:[%s117 + $0x3c8] sm:$0xff] %v360
        %v362 = vld [vmem:[%s116 + $0x3d0] sm:$0xff]
        %363 = vst [vmem:[%s117 + $0x3d0] sm:$0xff] %v362
        %v364 = vld [vmem:[%s116 + $0x3d8] sm:$0xff]
        %365 = vst [vmem:[%s117 + $0x3d8] sm:$0xff] %v364
        %v366 = vld [vmem:[%s116 + $0x3e0] sm:$0xff]
        %367 = vst [vmem:[%s117 + $0x3e0] sm:$0xff] %v366
        %v368 = vld [vmem:[%s116 + $0x3e8] sm:$0xff]
        %369 = vst [vmem:[%s117 + $0x3e8] sm:$0xff] %v368
        %v370 = vld [vmem:[%s116 + $0x3f0] sm:$0xff]
        %371 = vst [vmem:[%s117 + $0x3f0] sm:$0xff] %v370
        %v372 = vld [vmem:[%s116 + $0x3f8] sm:$0xff]
        %373 = vst [vmem:[%s117 + $0x3f8] sm:$0xff] %v372
        %v374 = vld [vmem:[%s116 + $0x400] sm:$0xff]
        %375 = vst [vmem:[%s117 + $0x400] sm:$0xff] %v374
        %v376 = vld [vmem:[%s116 + $0x408] sm:$0xff]
        %377 = vst [vmem:[%s117 + $0x408] sm:$0xff] %v376
        %v378 = vld [vmem:[%s116 + $0x410] sm:$0xff]
        %379 = vst [vmem:[%s117 + $0x410] sm:$0xff] %v378
        %v380 = vld [vmem:[%s116 + $0x418] sm:$0xff]
        %381 = vst [vmem:[%s117 + $0x418] sm:$0xff] %v380
        %v382 = vld [vmem:[%s116 + $0x420] sm:$0xff]
        %383 = vst [vmem:[%s117 + $0x420] sm:$0xff] %v382
        %v384 = vld [vmem:[%s116 + $0x428] sm:$0xff]
        %385 = vst [vmem:[%s117 + $0x428] sm:$0xff] %v384
        %v386 = vld [vmem:[%s116 + $0x430] sm:$0xff]
        %387 = vst [vmem:[%s117 + $0x430] sm:$0xff] %v386
        %v388 = vld [vmem:[%s116 + $0x438] sm:$0xff]
        %389 = vst [vmem:[%s117 + $0x438] sm:$0xff] %v388
        %v390 = vld [vmem:[%s116 + $0x440] sm:$0xff]
        %391 = vst [vmem:[%s117 + $0x440] sm:$0xff] %v390
        %v392 = vld [vmem:[%s116 + $0x448] sm:$0xff]
        %393 = vst [vmem:[%s117 + $0x448] sm:$0xff] %v392
        %v394 = vld [vmem:[%s116 + $0x450] sm:$0xff]
        %395 = vst [vmem:[%s117 + $0x450] sm:$0xff] %v394
        %v396 = vld [vmem:[%s116 + $0x458] sm:$0xff]
        %397 = vst [vmem:[%s117 + $0x458] sm:$0xff] %v396
        %v398 = vld [vmem:[%s116 + $0x460] sm:$0xff]
        %399 = vst [vmem:[%s117 + $0x460] sm:$0xff] %v398
        %v400 = vld [vmem:[%s116 + $0x468] sm:$0xff]
        %401 = vst [vmem:[%s117 + $0x468] sm:$0xff] %v400
        %v402 = vld [vmem:[%s116 + $0x470] sm:$0xff]
        %403 = vst [vmem:[%s117 + $0x470] sm:$0xff] %v402
        %v404 = vld [vmem:[%s116 + $0x478] sm:$0xff]
        %405 = vst [vmem:[%s117 + $0x478] sm:$0xff] %v404
        %v406 = vld [vmem:[%s116 + $0x480] sm:$0xff]
        %407 = vst [vmem:[%s117 + $0x480] sm:$0xff] %v406
        %v408 = vld [vmem:[%s116 + $0x488] sm:$0xff]
        %409 = vst [vmem:[%s117 + $0x488] sm:$0xff] %v408
        %v410 = vld [vmem:[%s116 + $0x490] sm:$0xff]
        %411 = vst [vmem:[%s117 + $0x490] sm:$0xff] %v410
        %v412 = vld [vmem:[%s116 + $0x498] sm:$0xff]
        %413 = vst [vmem:[%s117 + $0x498] sm:$0xff] %v412
        %v414 = vld [vmem:[%s116 + $0x4a0] sm:$0xff]
        %415 = vst [vmem:[%s117 + $0x4a0] sm:$0xff] %v414
        %v416 = vld [vmem:[%s116 + $0x4a8] sm:$0xff]
        %417 = vst [vmem:[%s117 + $0x4a8] sm:$0xff] %v416
        %v418 = vld [vmem:[%s116 + $0x4b0] sm:$0xff]
        %419 = vst [vmem:[%s117 + $0x4b0] sm:$0xff] %v418
        %v420 = vld [vmem:[%s116 + $0x4b8] sm:$0xff]
        %421 = vst [vmem:[%s117 + $0x4b8] sm:$0xff] %v420
        %v422 = vld [vmem:[%s116 + $0x4c0] sm:$0xff]
        %423 = vst [vmem:[%s117 + $0x4c0] sm:$0xff] %v422
        %v424 = vld [vmem:[%s116 + $0x4c8] sm:$0xff]
        %425 = vst [vmem:[%s117 + $0x4c8] sm:$0xff] %v424
        %v426 = vld [vmem:[%s116 + $0x4d0] sm:$0xff]
        %427 = vst [vmem:[%s117 + $0x4d0] sm:$0xff] %v426
        %v428 = vld [vmem:[%s116 + $0x4d8] sm:$0xff]
        %429 = vst [vmem:[%s117 + $0x4d8] sm:$0xff] %v428
        %v430 = vld [vmem:[%s116 + $0x4e0] sm:$0xff]
        %431 = vst [vmem:[%s117 + $0x4e0] sm:$0xff] %v430
        %v432 = vld [vmem:[%s116 + $0x4e8] sm:$0xff]
        %433 = vst [vmem:[%s117 + $0x4e8] sm:$0xff] %v432
        %v434 = vld [vmem:[%s116 + $0x4f0] sm:$0xff]
        %435 = vst [vmem:[%s117 + $0x4f0] sm:$0xff] %v434
        %v436 = vld [vmem:[%s116 + $0x4f8] sm:$0xff]
        %437 = vst [vmem:[%s117 + $0x4f8] sm:$0xff] %v436
        %v438 = vld [vmem:[%s116 + $0x500] sm:$0xff]
        %439 = vst [vmem:[%s117 + $0x500] sm:$0xff] %v438
        %v440 = vld [vmem:[%s116 + $0x508] sm:$0xff]
        %441 = vst [vmem:[%s117 + $0x508] sm:$0xff] %v440
        %v442 = vld [vmem:[%s116 + $0x510] sm:$0xff]
        %443 = vst [vmem:[%s117 + $0x510] sm:$0xff] %v442
        %v444 = vld [vmem:[%s116 + $0x518] sm:$0xff]
        %445 = vst [vmem:[%s117 + $0x518] sm:$0xff] %v444
        %v446 = vld [vmem:[%s116 + $0x520] sm:$0xff]
        %447 = vst [vmem:[%s117 + $0x520] sm:$0xff] %v446
        %v448 = vld [vmem:[%s116 + $0x528] sm:$0xff]
        %449 = vst [vmem:[%s117 + $0x528] sm:$0xff] %v448
        %v450 = vld [vmem:[%s116 + $0x530] sm:$0xff]
        %451 = vst [vmem:[%s117 + $0x530] sm:$0xff] %v450
        %v452 = vld [vmem:[%s116 + $0x538] sm:$0xff]
        %453 = vst [vmem:[%s117 + $0x538] sm:$0xff] %v452
        %v454 = vld [vmem:[%s116 + $0x540] sm:$0xff]
        %455 = vst [vmem:[%s117 + $0x540] sm:$0xff] %v454
        %v456 = vld [vmem:[%s116 + $0x548] sm:$0xff]
        %457 = vst [vmem:[%s117 + $0x548] sm:$0xff] %v456
        %v458 = vld [vmem:[%s116 + $0x550] sm:$0xff]
        %459 = vst [vmem:[%s117 + $0x550] sm:$0xff] %v458
        %v460 = vld [vmem:[%s116 + $0x558] sm:$0xff]
        %461 = vst [vmem:[%s117 + $0x558] sm:$0xff] %v460
        %v462 = vld [vmem:[%s116 + $0x560] sm:$0xff]
        %463 = vst [vmem:[%s117 + $0x560] sm:$0xff] %v462
        %v464 = vld [vmem:[%s116 + $0x568] sm:$0xff]
        %465 = vst [vmem:[%s117 + $0x568] sm:$0xff] %v464
        %v466 = vld [vmem:[%s116 + $0x570] sm:$0xff]
        %467 = vst [vmem:[%s117 + $0x570] sm:$0xff] %v466
        %v468 = vld [vmem:[%s116 + $0x578] sm:$0xff]
        %469 = vst [vmem:[%s117 + $0x578] sm:$0xff] %v468
        %v470 = vld [vmem:[%s116 + $0x580] sm:$0xff]
        %471 = vst [vmem:[%s117 + $0x580] sm:$0xff] %v470
        %v472 = vld [vmem:[%s116 + $0x588] sm:$0xff]
        %473 = vst [vmem:[%s117 + $0x588] sm:$0xff] %v472
        %v474 = vld [vmem:[%s116 + $0x590] sm:$0xff]
        %475 = vst [vmem:[%s117 + $0x590] sm:$0xff] %v474
        %v476 = vld [vmem:[%s116 + $0x598] sm:$0xff]
        %477 = vst [vmem:[%s117 + $0x598] sm:$0xff] %v476
        %v478 = vld [vmem:[%s116 + $0x5a0] sm:$0xff]
        %479 = vst [vmem:[%s117 + $0x5a0] sm:$0xff] %v478
        %v480 = vld [vmem:[%s116 + $0x5a8] sm:$0xff]
        %481 = vst [vmem:[%s117 + $0x5a8] sm:$0xff] %v480
        %v482 = vld [vmem:[%s116 + $0x5b0] sm:$0xff]
        %483 = vst [vmem:[%s117 + $0x5b0] sm:$0xff] %v482
        %v484 = vld [vmem:[%s116 + $0x5b8] sm:$0xff]
        %485 = vst [vmem:[%s117 + $0x5b8] sm:$0xff] %v484
        %v486 = vld [vmem:[%s116 + $0x5c0] sm:$0xff]
        %487 = vst [vmem:[%s117 + $0x5c0] sm:$0xff] %v486
        %v488 = vld [vmem:[%s116 + $0x5c8] sm:$0xff]
        %489 = vst [vmem:[%s117 + $0x5c8] sm:$0xff] %v488
        %v490 = vld [vmem:[%s116 + $0x5d0] sm:$0xff]
        %491 = vst [vmem:[%s117 + $0x5d0] sm:$0xff] %v490
        %v492 = vld [vmem:[%s116 + $0x5d8] sm:$0xff]
        %493 = vst [vmem:[%s117 + $0x5d8] sm:$0xff] %v492
        %v494 = vld [vmem:[%s116 + $0x5e0] sm:$0xff]
        %495 = vst [vmem:[%s117 + $0x5e0] sm:$0xff] %v494
        %v496 = vld [vmem:[%s116 + $0x5e8] sm:$0xff]
        %497 = vst [vmem:[%s117 + $0x5e8] sm:$0xff] %v496
        %v498 = vld [vmem:[%s116 + $0x5f0] sm:$0xff]
        %499 = vst [vmem:[%s117 + $0x5f0] sm:$0xff] %v498
        %v500 = vld [vmem:[%s116 + $0x5f8] sm:$0xff]
        %501 = vst [vmem:[%s117 + $0x5f8] sm:$0xff] %v500
        %v502 = vld [vmem:[%s116 + $0x600] sm:$0xff]
        %503 = vst [vmem:[%s117 + $0x600] sm:$0xff] %v502
        %v504 = vld [vmem:[%s116 + $0x608] sm:$0xff]
        %505 = vst [vmem:[%s117 + $0x608] sm:$0xff] %v504
        %v506 = vld [vmem:[%s116 + $0x610] sm:$0xff]
        %507 = vst [vmem:[%s117 + $0x610] sm:$0xff] %v506
        %v508 = vld [vmem:[%s116 + $0x618] sm:$0xff]
        %509 = vst [vmem:[%s117 + $0x618] sm:$0xff] %v508
        %v510 = vld [vmem:[%s116 + $0x620] sm:$0xff]
        %511 = vst [vmem:[%s117 + $0x620] sm:$0xff] %v510
        %v512 = vld [vmem:[%s116 + $0x628] sm:$0xff]
        %513 = vst [vmem:[%s117 + $0x628] sm:$0xff] %v512
        %v514 = vld [vmem:[%s116 + $0x630] sm:$0xff]
        %515 = vst [vmem:[%s117 + $0x630] sm:$0xff] %v514
        %v516 = vld [vmem:[%s116 + $0x638] sm:$0xff]
        %517 = vst [vmem:[%s117 + $0x638] sm:$0xff] %v516
        %v518 = vld [vmem:[%s116 + $0x640] sm:$0xff]
        %519 = vst [vmem:[%s117 + $0x640] sm:$0xff] %v518
        %v520 = vld [vmem:[%s116 + $0x648] sm:$0xff]
        %521 = vst [vmem:[%s117 + $0x648] sm:$0xff] %v520
        %v522 = vld [vmem:[%s116 + $0x650] sm:$0xff]
        %523 = vst [vmem:[%s117 + $0x650] sm:$0xff] %v522
        %v524 = vld [vmem:[%s116 + $0x658] sm:$0xff]
        %525 = vst [vmem:[%s117 + $0x658] sm:$0xff] %v524
        %v526 = vld [vmem:[%s116 + $0x660] sm:$0xff]
        %527 = vst [vmem:[%s117 + $0x660] sm:$0xff] %v526
        %v528 = vld [vmem:[%s116 + $0x668] sm:$0xff]
        %529 = vst [vmem:[%s117 + $0x668] sm:$0xff] %v528
        %v530 = vld [vmem:[%s116 + $0x670] sm:$0xff]
        %531 = vst [vmem:[%s117 + $0x670] sm:$0xff] %v530
        %v532 = vld [vmem:[%s116 + $0x678] sm:$0xff]
        %533 = vst [vmem:[%s117 + $0x678] sm:$0xff] %v532
        %v534 = vld [vmem:[%s116 + $0x680] sm:$0xff]
        %535 = vst [vmem:[%s117 + $0x680] sm:$0xff] %v534
        %v536 = vld [vmem:[%s116 + $0x688] sm:$0xff]
        %537 = vst [vmem:[%s117 + $0x688] sm:$0xff] %v536
        %v538 = vld [vmem:[%s116 + $0x690] sm:$0xff]
        %539 = vst [vmem:[%s117 + $0x690] sm:$0xff] %v538
        %v540 = vld [vmem:[%s116 + $0x698] sm:$0xff]
        %541 = vst [vmem:[%s117 + $0x698] sm:$0xff] %v540
        %v542 = vld [vmem:[%s116 + $0x6a0] sm:$0xff]
        %543 = vst [vmem:[%s117 + $0x6a0] sm:$0xff] %v542
        %v544 = vld [vmem:[%s116 + $0x6a8] sm:$0xff]
        %545 = vst [vmem:[%s117 + $0x6a8] sm:$0xff] %v544
        %v546 = vld [vmem:[%s116 + $0x6b0] sm:$0xff]
        %547 = vst [vmem:[%s117 + $0x6b0] sm:$0xff] %v546
        %v548 = vld [vmem:[%s116 + $0x6b8] sm:$0xff]
        %549 = vst [vmem:[%s117 + $0x6b8] sm:$0xff] %v548
        %v550 = vld [vmem:[%s116 + $0x6c0] sm:$0xff]
        %551 = vst [vmem:[%s117 + $0x6c0] sm:$0xff] %v550
        %v552 = vld [vmem:[%s116 + $0x6c8] sm:$0xff]
        %553 = vst [vmem:[%s117 + $0x6c8] sm:$0xff] %v552
        %v554 = vld [vmem:[%s116 + $0x6d0] sm:$0xff]
        %555 = vst [vmem:[%s117 + $0x6d0] sm:$0xff] %v554
        %v556 = vld [vmem:[%s116 + $0x6d8] sm:$0xff]
        %557 = vst [vmem:[%s117 + $0x6d8] sm:$0xff] %v556
        %v558 = vld [vmem:[%s116 + $0x6e0] sm:$0xff]
        %559 = vst [vmem:[%s117 + $0x6e0] sm:$0xff] %v558
        %v560 = vld [vmem:[%s116 + $0x6e8] sm:$0xff]
        %561 = vst [vmem:[%s117 + $0x6e8] sm:$0xff] %v560
        %v562 = vld [vmem:[%s116 + $0x6f0] sm:$0xff]
        %563 = vst [vmem:[%s117 + $0x6f0] sm:$0xff] %v562
        %v564 = vld [vmem:[%s116 + $0x6f8] sm:$0xff]
        %565 = vst [vmem:[%s117 + $0x6f8] sm:$0xff] %v564
        %v566 = vld [vmem:[%s116 + $0x700] sm:$0xff]
        %567 = vst [vmem:[%s117 + $0x700] sm:$0xff] %v566
        %v568 = vld [vmem:[%s116 + $0x708] sm:$0xff]
        %569 = vst [vmem:[%s117 + $0x708] sm:$0xff] %v568
        %v570 = vld [vmem:[%s116 + $0x710] sm:$0xff]
        %571 = vst [vmem:[%s117 + $0x710] sm:$0xff] %v570
        %v572 = vld [vmem:[%s116 + $0x718] sm:$0xff]
        %573 = vst [vmem:[%s117 + $0x718] sm:$0xff] %v572
        %v574 = vld [vmem:[%s116 + $0x720] sm:$0xff]
        %575 = vst [vmem:[%s117 + $0x720] sm:$0xff] %v574
        %v576 = vld [vmem:[%s116 + $0x728] sm:$0xff]
        %577 = vst [vmem:[%s117 + $0x728] sm:$0xff] %v576
        %v578 = vld [vmem:[%s116 + $0x730] sm:$0xff]
        %579 = vst [vmem:[%s117 + $0x730] sm:$0xff] %v578
        %v580 = vld [vmem:[%s116 + $0x738] sm:$0xff]
        %581 = vst [vmem:[%s117 + $0x738] sm:$0xff] %v580
        %v582 = vld [vmem:[%s116 + $0x740] sm:$0xff]
        %583 = vst [vmem:[%s117 + $0x740] sm:$0xff] %v582
        %v584 = vld [vmem:[%s116 + $0x748] sm:$0xff]
        %585 = vst [vmem:[%s117 + $0x748] sm:$0xff] %v584
        %v586 = vld [vmem:[%s116 + $0x750] sm:$0xff]
        %587 = vst [vmem:[%s117 + $0x750] sm:$0xff] %v586
        %v588 = vld [vmem:[%s116 + $0x758] sm:$0xff]
        %589 = vst [vmem:[%s117 + $0x758] sm:$0xff] %v588
        %v590 = vld [vmem:[%s116 + $0x760] sm:$0xff]
        %591 = vst [vmem:[%s117 + $0x760] sm:$0xff] %v590
        %v592 = vld [vmem:[%s116 + $0x768] sm:$0xff]
        %593 = vst [vmem:[%s117 + $0x768] sm:$0xff] %v592
        %v594 = vld [vmem:[%s116 + $0x770] sm:$0xff]
        %595 = vst [vmem:[%s117 + $0x770] sm:$0xff] %v594
        %v596 = vld [vmem:[%s116 + $0x778] sm:$0xff]
        %597 = vst [vmem:[%s117 + $0x778] sm:$0xff] %v596
        %v598 = vld [vmem:[%s116 + $0x780] sm:$0xff]
        %599 = vst [vmem:[%s117 + $0x780] sm:$0xff] %v598
        %v600 = vld [vmem:[%s116 + $0x788] sm:$0xff]
        %601 = vst [vmem:[%s117 + $0x788] sm:$0xff] %v600
        %v602 = vld [vmem:[%s116 + $0x790] sm:$0xff]
        %603 = vst [vmem:[%s117 + $0x790] sm:$0xff] %v602
        %v604 = vld [vmem:[%s116 + $0x798] sm:$0xff]
        %605 = vst [vmem:[%s117 + $0x798] sm:$0xff] %v604
        %v606 = vld [vmem:[%s116 + $0x7a0] sm:$0xff]
        %607 = vst [vmem:[%s117 + $0x7a0] sm:$0xff] %v606
        %v608 = vld [vmem:[%s116 + $0x7a8] sm:$0xff]
        %609 = vst [vmem:[%s117 + $0x7a8] sm:$0xff] %v608
        %v610 = vld [vmem:[%s116 + $0x7b0] sm:$0xff]
        %611 = vst [vmem:[%s117 + $0x7b0] sm:$0xff] %v610
        %v612 = vld [vmem:[%s116 + $0x7b8] sm:$0xff]
        %613 = vst [vmem:[%s117 + $0x7b8] sm:$0xff] %v612
        %v614 = vld [vmem:[%s116 + $0x7c0] sm:$0xff]
        %615 = vst [vmem:[%s117 + $0x7c0] sm:$0xff] %v614
        %v616 = vld [vmem:[%s116 + $0x7c8] sm:$0xff]
        %617 = vst [vmem:[%s117 + $0x7c8] sm:$0xff] %v616
        %v618 = vld [vmem:[%s116 + $0x7d0] sm:$0xff]
        %619 = vst [vmem:[%s117 + $0x7d0] sm:$0xff] %v618
        %v620 = vld [vmem:[%s116 + $0x7d8] sm:$0xff]
        %621 = vst [vmem:[%s117 + $0x7d8] sm:$0xff] %v620
        %v622 = vld [vmem:[%s116 + $0x7e0] sm:$0xff]
        %623 = vst [vmem:[%s117 + $0x7e0] sm:$0xff] %v622
        %v624 = vld [vmem:[%s116 + $0x7e8] sm:$0xff]
        %625 = vst [vmem:[%s117 + $0x7e8] sm:$0xff] %v624
        %v626 = vld [vmem:[%s116 + $0x7f0] sm:$0xff]
        %627 = vst [vmem:[%s117 + $0x7f0] sm:$0xff] %v626
        %v628 = vld [vmem:[%s116 + $0x7f8] sm:$0xff]
        %629 = vst [vmem:[%s117 + $0x7f8] sm:$0xff] %v628
        %v630 = vld [vmem:[%s116 + $0x800] sm:$0xff]
        %631 = vst [vmem:[%s117 + $0x800] sm:$0xff] %v630
        %v632 = vld [vmem:[%s116 + $0x808] sm:$0xff]
        %633 = vst [vmem:[%s117 + $0x808] sm:$0xff] %v632
        %v634 = vld [vmem:[%s116 + $0x810] sm:$0xff]
        %635 = vst [vmem:[%s117 + $0x810] sm:$0xff] %v634
        %v636 = vld [vmem:[%s116 + $0x818] sm:$0xff]
        %637 = vst [vmem:[%s117 + $0x818] sm:$0xff] %v636
        %v638 = vld [vmem:[%s116 + $0x820] sm:$0xff]
        %639 = vst [vmem:[%s117 + $0x820] sm:$0xff] %v638
        %v640 = vld [vmem:[%s116 + $0x828] sm:$0xff]
        %641 = vst [vmem:[%s117 + $0x828] sm:$0xff] %v640
        %v642 = vld [vmem:[%s116 + $0x830] sm:$0xff]
        %643 = vst [vmem:[%s117 + $0x830] sm:$0xff] %v642
        %v644 = vld [vmem:[%s116 + $0x838] sm:$0xff]
        %645 = vst [vmem:[%s117 + $0x838] sm:$0xff] %v644
        %v646 = vld [vmem:[%s116 + $0x840] sm:$0xff]
        %647 = vst [vmem:[%s117 + $0x840] sm:$0xff] %v646
        %v648 = vld [vmem:[%s116 + $0x848] sm:$0xff]
        %649 = vst [vmem:[%s117 + $0x848] sm:$0xff] %v648
        %v650 = vld [vmem:[%s116 + $0x850] sm:$0xff]
        %651 = vst [vmem:[%s117 + $0x850] sm:$0xff] %v650
        %v652 = vld [vmem:[%s116 + $0x858] sm:$0xff]
        %653 = vst [vmem:[%s117 + $0x858] sm:$0xff] %v652
        %v654 = vld [vmem:[%s116 + $0x860] sm:$0xff]
        %655 = vst [vmem:[%s117 + $0x860] sm:$0xff] %v654
        %v656 = vld [vmem:[%s116 + $0x868] sm:$0xff]
        %657 = vst [vmem:[%s117 + $0x868] sm:$0xff] %v656
        %v658 = vld [vmem:[%s116 + $0x870] sm:$0xff]
        %659 = vst [vmem:[%s117 + $0x870] sm:$0xff] %v658
        %v660 = vld [vmem:[%s116 + $0x878] sm:$0xff]
        %661 = vst [vmem:[%s117 + $0x878] sm:$0xff] %v660
        %v662 = vld [vmem:[%s116 + $0x880] sm:$0xff]
        %663 = vst [vmem:[%s117 + $0x880] sm:$0xff] %v662
        %v664 = vld [vmem:[%s116 + $0x888] sm:$0xff]
        %665 = vst [vmem:[%s117 + $0x888] sm:$0xff] %v664
        %v666 = vld [vmem:[%s116 + $0x890] sm:$0xff]
        %667 = vst [vmem:[%s117 + $0x890] sm:$0xff] %v666
        %v668 = vld [vmem:[%s116 + $0x898] sm:$0xff]
        %669 = vst [vmem:[%s117 + $0x898] sm:$0xff] %v668
        %v670 = vld [vmem:[%s116 + $0x8a0] sm:$0xff]
        %671 = vst [vmem:[%s117 + $0x8a0] sm:$0xff] %v670
        %v672 = vld [vmem:[%s116 + $0x8a8] sm:$0xff]
        %673 = vst [vmem:[%s117 + $0x8a8] sm:$0xff] %v672
        %v674 = vld [vmem:[%s116 + $0x8b0] sm:$0xff]
        %675 = vst [vmem:[%s117 + $0x8b0] sm:$0xff] %v674
        %v676 = vld [vmem:[%s116 + $0x8b8] sm:$0xff]
        %677 = vst [vmem:[%s117 + $0x8b8] sm:$0xff] %v676
        %v678 = vld [vmem:[%s116 + $0x8c0] sm:$0xff]
        %679 = vst [vmem:[%s117 + $0x8c0] sm:$0xff] %v678
        %v680 = vld [vmem:[%s116 + $0x8c8] sm:$0xff]
        %681 = vst [vmem:[%s117 + $0x8c8] sm:$0xff] %v680
        %v682 = vld [vmem:[%s116 + $0x8d0] sm:$0xff]
        %683 = vst [vmem:[%s117 + $0x8d0] sm:$0xff] %v682
        %v684 = vld [vmem:[%s116 + $0x8d8] sm:$0xff]
        %685 = vst [vmem:[%s117 + $0x8d8] sm:$0xff] %v684
        %v686 = vld [vmem:[%s116 + $0x8e0] sm:$0xff]
        %687 = vst [vmem:[%s117 + $0x8e0] sm:$0xff] %v686
        %v688 = vld [vmem:[%s116 + $0x8e8] sm:$0xff]
        %689 = vst [vmem:[%s117 + $0x8e8] sm:$0xff] %v688
        %v690 = vld [vmem:[%s116 + $0x8f0] sm:$0xff]
        %691 = vst [vmem:[%s117 + $0x8f0] sm:$0xff] %v690
        %v692 = vld [vmem:[%s116 + $0x8f8] sm:$0xff]
        %693 = vst [vmem:[%s117 + $0x8f8] sm:$0xff] %v692
      $region70: #{_lambda_.1} parent=64 // loop_footer
        %s115 = sadd.s32 1, %s111
      $region71: #{_lambda_.1} parent=64 // loop_footer_branch
        %110 = sbr.rel target = $region67
      $region72: #{_lambda_.1} parent=64 // loop_exit
        _
    $region65: #{_lambda_.1} parent=1 // pred_fallthru
      _
    // Predicated region
    $region73: #{_lambda_.1} parent=1 // pred_check
      _
    $region74: #{_lambda_.1} parent=1 // pred_check_branch
      %695 = sbr.rel target = $region76
    $region75: #{_lambda_.1} parent=1 // pred_region
      _
    $region76: #{_lambda_.1} parent=1 // pred_fallthru
      _
    // Predicated region
    $region77: #{_lambda_.1} parent=1 // pred_check
      _
    $region78: #{_lambda_.1} parent=1 // pred_check_branch
      %698 = sbr.rel (0) target = $region80
    $region79: #{_lambda_.1} parent=1 // pred_region
      %699 = vsyncadd [#allocation3], 36864
    $region80: #{_lambda_.1} parent=1 // pred_fallthru
      _
    %v700 = vld [vmem:[%s1] sm:$0xff]
    %v701 = vld [vmem:[%s1 + $0x8] sm:$0xff]
    %v702 = vld [vmem:[#allocation8] sm:$0xff]
    %v703 = vld [vmem:[#allocation8 + $0x8] sm:$0xff]
    %v704 = vld [vmem:[#allocation8 + $0x10] sm:$0xff]
    %v705 = vld [vmem:[#allocation8 + $0x18] sm:$0xff]
    %v706 = vld [vmem:[#allocation8 + $0x20] sm:$0xff]
    %v707 = vld [vmem:[#allocation8 + $0x28] sm:$0xff]
    %v708 = vld [vmem:[#allocation8 + $0x30] sm:$0xff]
    %v709 = vld [vmem:[#allocation8 + $0x38] sm:$0xff]
    %v710 = vld [vmem:[#allocation8 + $0x40] sm:$0xff]
    %v711 = vld [vmem:[#allocation8 + $0x48] sm:$0xff]
    %v712 = vld [vmem:[#allocation8 + $0x50] sm:$0xff]
    %v713 = vld [vmem:[#allocation8 + $0x58] sm:$0xff]
    %v714 = vld [vmem:[#allocation8 + $0x60] sm:$0xff]
    %v715 = vld [vmem:[#allocation8 + $0x68] sm:$0xff]
    %v716 = vld [vmem:[#allocation8 + $0x70] sm:$0xff]
    %v717 = vld [vmem:[#allocation8 + $0x78] sm:$0xff]
    %v718 = vld [vmem:[#allocation8 + $0x80] sm:$0xff]
    %v719 = vld [vmem:[#allocation8 + $0x88] sm:$0xff]
    %v720 = vld [vmem:[#allocation8 + $0x90] sm:$0xff]
    %v721 = vld [vmem:[#allocation8 + $0x98] sm:$0xff]
    %v722 = vld [vmem:[#allocation8 + $0xa0] sm:$0xff]
    %v723 = vld [vmem:[#allocation8 + $0xa8] sm:$0xff]
    %v724 = vld [vmem:[#allocation8 + $0xb0] sm:$0xff]
    %v725 = vld [vmem:[#allocation8 + $0xb8] sm:$0xff]
    %v726 = vld [vmem:[#allocation8 + $0xc0] sm:$0xff]
    %v727 = vld [vmem:[#allocation8 + $0xc8] sm:$0xff]
    %v728 = vld [vmem:[#allocation8 + $0xd0] sm:$0xff]
    %v729 = vld [vmem:[#allocation8 + $0xd8] sm:$0xff]
    %v730 = vld [vmem:[#allocation8 + $0xe0] sm:$0xff]
    %v731 = vld [vmem:[#allocation8 + $0xe8] sm:$0xff]
    %v732 = vld [vmem:[#allocation8 + $0xf0] sm:$0xff]
    %v733 = vld [vmem:[#allocation8 + $0xf8] sm:$0xff]
    %v734 = vld [vmem:[#allocation8 + $0x100] sm:$0xff]
    %v735 = vld [vmem:[#allocation8 + $0x108] sm:$0xff]
    %v736 = vld [vmem:[#allocation8 + $0x110] sm:$0xff]
    %v737 = vld [vmem:[#allocation8 + $0x118] sm:$0xff]
    %v738 = vld [vmem:[#allocation8 + $0x120] sm:$0xff]
    %v739 = vld [vmem:[#allocation8 + $0x128] sm:$0xff]
    %v740 = vld [vmem:[#allocation8 + $0x130] sm:$0xff]
    %v741 = vld [vmem:[#allocation8 + $0x138] sm:$0xff]
    %v742 = vld [vmem:[#allocation8 + $0x140] sm:$0xff]
    %v743 = vld [vmem:[#allocation8 + $0x148] sm:$0xff]
    %v744 = vld [vmem:[#allocation8 + $0x150] sm:$0xff]
    %v745 = vld [vmem:[#allocation8 + $0x158] sm:$0xff]
    %v746 = vld [vmem:[#allocation8 + $0x160] sm:$0xff]
    %v747 = vld [vmem:[#allocation8 + $0x168] sm:$0xff]
    %v748 = vld [vmem:[#allocation8 + $0x170] sm:$0xff]
    %v749 = vld [vmem:[#allocation8 + $0x178] sm:$0xff]
    %v750 = vld [vmem:[#allocation8 + $0x180] sm:$0xff]
    %v751 = vld [vmem:[#allocation8 + $0x188] sm:$0xff]
    %v752 = vld [vmem:[#allocation8 + $0x190] sm:$0xff]
    %v753 = vld [vmem:[#allocation8 + $0x198] sm:$0xff]
    %v754 = vld [vmem:[#allocation8 + $0x1a0] sm:$0xff]
    %v755 = vld [vmem:[#allocation8 + $0x1a8] sm:$0xff]
    %v756 = vld [vmem:[#allocation8 + $0x1b0] sm:$0xff]
    %v757 = vld [vmem:[#allocation8 + $0x1b8] sm:$0xff]
    %v758 = vld [vmem:[#allocation8 + $0x1c0] sm:$0xff]
    %v759 = vld [vmem:[#allocation8 + $0x1c8] sm:$0xff]
    %v760 = vld [vmem:[#allocation8 + $0x1d0] sm:$0xff]
    %v761 = vld [vmem:[#allocation8 + $0x1d8] sm:$0xff]
    %v762 = vld [vmem:[#allocation8 + $0x1e0] sm:$0xff]
    %v763 = vld [vmem:[#allocation8 + $0x1e8] sm:$0xff]
    %v764 = vld [vmem:[#allocation8 + $0x1f0] sm:$0xff]
    %v765 = vld [vmem:[#allocation8 + $0x1f8] sm:$0xff]
    %v766 = vld [vmem:[#allocation8 + $0x200] sm:$0xff]
    %vm767 = vcmask 850944
    %v769 = vsel %vm767, %v700, 0
    %v772 = vsel %vm767, %v701, 0
    %774 = vmatpush.msra.mxu0 0.0
    %775 = vmatpush.msra.mxu0 0.0
    %776 = vmatpush.msra.mxu0 0.0
    %777 = vmatpush.msra.mxu0 %v762
    %778 = vmatpush.msra.mxu0 %v757
    %779 = vmatpush.msra.mxu0 %v752
    %780 = vmatpush.msra.mxu0 %v747
    %781 = vmatpush.msra.mxu0 %v742
    %782 = vmatpush.msra.mxu0 %v737
    %783 = vmatpush.msra.mxu0 %v732
    %784 = vmatpush.msra.mxu0 %v727
    %785 = vmatpush.msra.mxu0 %v722
    %786 = vmatpush.msra.mxu0 %v717
    %787 = vmatpush.msra.mxu0 %v712
    %788 = vmatpush.msra.mxu0 %v707
    %789 = vmatpush.msra.mxu0 %v702
    %790 = vmatmul.f32.gmra.mxu0 %v769
    %v791 = vpop.f32.mrf.mxu0
    %v792 = vadd.f32 0.0, %v791
    %793 = vmatmul.f32.gmra.mxu0 %v772
    %v794 = vpop.f32.mrf.mxu0
    %v795 = vadd.f32 0.0, %v794
    %796 = vdwg.mxu0
    %797 = vmatpush.msra.mxu0 0.0
    %798 = vmatpush.msra.mxu0 0.0
    %799 = vmatpush.msra.mxu0 0.0
    %800 = vmatpush.msra.mxu0 %v763
    %801 = vmatpush.msra.mxu0 %v758
    %802 = vmatpush.msra.mxu0 %v753
    %803 = vmatpush.msra.mxu0 %v748
    %804 = vmatpush.msra.mxu0 %v743
    %805 = vmatpush.msra.mxu0 %v738
    %806 = vmatpush.msra.mxu0 %v733
    %807 = vmatpush.msra.mxu0 %v728
    %808 = vmatpush.msra.mxu0 %v723
    %809 = vmatpush.msra.mxu0 %v718
    %810 = vmatpush.msra.mxu0 %v713
    %811 = vmatpush.msra.mxu0 %v708
    %812 = vmatpush.msra.mxu0 %v703
    %813 = vmatmul.f32.gmra.mxu0 %v769
    %v814 = vpop.f32.mrf.mxu0
    %v815 = vadd.f32 0.0, %v814
    %816 = vmatmul.f32.gmra.mxu0 %v772
    %v817 = vpop.f32.mrf.mxu0
    %v818 = vadd.f32 0.0, %v817
    %819 = vdwg.mxu0
    %820 = vmatpush.msra.mxu0 0.0
    %821 = vmatpush.msra.mxu0 0.0
    %822 = vmatpush.msra.mxu0 0.0
    %823 = vmatpush.msra.mxu0 %v764
    %824 = vmatpush.msra.mxu0 %v759
    %825 = vmatpush.msra.mxu0 %v754
    %826 = vmatpush.msra.mxu0 %v749
    %827 = vmatpush.msra.mxu0 %v744
    %828 = vmatpush.msra.mxu0 %v739
    %829 = vmatpush.msra.mxu0 %v734
    %830 = vmatpush.msra.mxu0 %v729
    %831 = vmatpush.msra.mxu0 %v724
    %832 = vmatpush.msra.mxu0 %v719
    %833 = vmatpush.msra.mxu0 %v714
    %834 = vmatpush.msra.mxu0 %v709
    %835 = vmatpush.msra.mxu0 %v704
    %836 = vmatmul.f32.gmra.mxu0 %v769
    %v837 = vpop.f32.mrf.mxu0
    %v838 = vadd.f32 0.0, %v837
    %839 = vmatmul.f32.gmra.mxu0 %v772
    %v840 = vpop.f32.mrf.mxu0
    %v841 = vadd.f32 0.0, %v840
    %842 = vdwg.mxu0
    %843 = vmatpush.msra.mxu0 0.0
    %844 = vmatpush.msra.mxu0 0.0
    %845 = vmatpush.msra.mxu0 0.0
    %846 = vmatpush.msra.mxu0 %v765
    %847 = vmatpush.msra.mxu0 %v760
    %848 = vmatpush.msra.mxu0 %v755
    %849 = vmatpush.msra.mxu0 %v750
    %850 = vmatpush.msra.mxu0 %v745
    %851 = vmatpush.msra.mxu0 %v740
    %852 = vmatpush.msra.mxu0 %v735
    %853 = vmatpush.msra.mxu0 %v730
    %854 = vmatpush.msra.mxu0 %v725
    %855 = vmatpush.msra.mxu0 %v720
    %856 = vmatpush.msra.mxu0 %v715
    %857 = vmatpush.msra.mxu0 %v710
    %858 = vmatpush.msra.mxu0 %v705
    %859 = vmatmul.f32.gmra.mxu0 %v769
    %v860 = vpop.f32.mrf.mxu0
    %v861 = vadd.f32 0.0, %v860
    %862 = vmatmul.f32.gmra.mxu0 %v772
    %v863 = vpop.f32.mrf.mxu0
    %v864 = vadd.f32 0.0, %v863
    %865 = vdwg.mxu0
    %866 = vmatpush.msra.mxu0 0.0
    %867 = vmatpush.msra.mxu0 0.0
    %868 = vmatpush.msra.mxu0 0.0
    %869 = vmatpush.msra.mxu0 %v766
    %870 = vmatpush.msra.mxu0 %v761
    %871 = vmatpush.msra.mxu0 %v756
    %872 = vmatpush.msra.mxu0 %v751
    %873 = vmatpush.msra.mxu0 %v746
    %874 = vmatpush.msra.mxu0 %v741
    %875 = vmatpush.msra.mxu0 %v736
    %876 = vmatpush.msra.mxu0 %v731
    %877 = vmatpush.msra.mxu0 %v726
    %878 = vmatpush.msra.mxu0 %v721
    %879 = vmatpush.msra.mxu0 %v716
    %880 = vmatpush.msra.mxu0 %v711
    %881 = vmatpush.msra.mxu0 %v706
    %882 = vmatmul.f32.gmra.mxu0 %v769
    %v883 = vpop.f32.mrf.mxu0
    %v884 = vadd.f32 0.0, %v883
    %885 = vmatmul.f32.gmra.mxu0 %v772
    %v886 = vpop.f32.mrf.mxu0
    %v887 = vadd.f32 0.0, %v886
    %888 = vdwg.mxu0
    %v889 = vld [vmem:[%s2] sm:$0xff]
    %v890 = vld [vmem:[%s2 + $0x8] sm:$0xff]
    %v891 = vld [vmem:[%s2 + $0x10] sm:$0xff]
    %v892 = vld [vmem:[%s2 + $0x18] sm:$0xff]
    %v893 = vld [vmem:[#allocation9] sm:$0xff]
    %v894 = vld [vmem:[#allocation9 + $0x8] sm:$0xff]
    %v895 = vld [vmem:[#allocation9 + $0x10] sm:$0xff]
    %v896 = vld [vmem:[#allocation9 + $0x18] sm:$0xff]
    %v897 = vld [vmem:[#allocation9 + $0x20] sm:$0xff]
    %v898 = vld [vmem:[#allocation9 + $0x28] sm:$0xff]
    %v899 = vld [vmem:[#allocation9 + $0x30] sm:$0xff]
    %v900 = vld [vmem:[#allocation9 + $0x38] sm:$0xff]
    %v901 = vld [vmem:[#allocation9 + $0x40] sm:$0xff]
    %v902 = vld [vmem:[#allocation9 + $0x48] sm:$0xff]
    %v903 = vld [vmem:[#allocation9 + $0x50] sm:$0xff]
    %v904 = vld [vmem:[#allocation9 + $0x58] sm:$0xff]
    %v905 = vld [vmem:[#allocation9 + $0x60] sm:$0xff]
    %v906 = vld [vmem:[#allocation9 + $0x68] sm:$0xff]
    %v907 = vld [vmem:[#allocation9 + $0x70] sm:$0xff]
    %v908 = vld [vmem:[#allocation9 + $0x78] sm:$0xff]
    %v909 = vld [vmem:[#allocation9 + $0x80] sm:$0xff]
    %v910 = vld [vmem:[#allocation9 + $0x88] sm:$0xff]
    %v911 = vld [vmem:[#allocation9 + $0x90] sm:$0xff]
    %v912 = vld [vmem:[#allocation9 + $0x98] sm:$0xff]
    %v913 = vld [vmem:[#allocation9 + $0xa0] sm:$0xff]
    %v914 = vld [vmem:[#allocation9 + $0xa8] sm:$0xff]
    %v915 = vld [vmem:[#allocation9 + $0xb0] sm:$0xff]
    %v916 = vld [vmem:[#allocation9 + $0xb8] sm:$0xff]
    %v917 = vld [vmem:[#allocation9 + $0xc0] sm:$0xff]
    %v918 = vld [vmem:[#allocation9 + $0xc8] sm:$0xff]
    %v919 = vld [vmem:[#allocation9 + $0xd0] sm:$0xff]
    %v920 = vld [vmem:[#allocation9 + $0xd8] sm:$0xff]
    %v921 = vld [vmem:[#allocation9 + $0xe0] sm:$0xff]
    %v922 = vld [vmem:[#allocation9 + $0xe8] sm:$0xff]
    %v923 = vld [vmem:[#allocation9 + $0xf0] sm:$0xff]
    %v924 = vld [vmem:[#allocation9 + $0xf8] sm:$0xff]
    %v925 = vld [vmem:[#allocation9 + $0x100] sm:$0xff]
    %v926 = vld [vmem:[#allocation9 + $0x108] sm:$0xff]
    %v927 = vld [vmem:[#allocation9 + $0x110] sm:$0xff]
    %v928 = vld [vmem:[#allocation9 + $0x118] sm:$0xff]
    %v929 = vld [vmem:[#allocation9 + $0x120] sm:$0xff]
    %v930 = vld [vmem:[#allocation9 + $0x128] sm:$0xff]
    %v931 = vld [vmem:[#allocation9 + $0x130] sm:$0xff]
    %v932 = vld [vmem:[#allocation9 + $0x138] sm:$0xff]
    %v933 = vld [vmem:[#allocation9 + $0x140] sm:$0xff]
    %v934 = vld [vmem:[#allocation9 + $0x148] sm:$0xff]
    %v935 = vld [vmem:[#allocation9 + $0x150] sm:$0xff]
    %v936 = vld [vmem:[#allocation9 + $0x158] sm:$0xff]
    %v937 = vld [vmem:[#allocation9 + $0x160] sm:$0xff]
    %v938 = vld [vmem:[#allocation9 + $0x168] sm:$0xff]
    %v939 = vld [vmem:[#allocation9 + $0x170] sm:$0xff]
    %v940 = vld [vmem:[#allocation9 + $0x178] sm:$0xff]
    %v941 = vld [vmem:[#allocation9 + $0x180] sm:$0xff]
    %v942 = vld [vmem:[#allocation9 + $0x188] sm:$0xff]
    %v943 = vld [vmem:[#allocation9 + $0x190] sm:$0xff]
    %v944 = vld [vmem:[#allocation9 + $0x198] sm:$0xff]
    %v945 = vld [vmem:[#allocation9 + $0x1a0] sm:$0xff]
    %v946 = vld [vmem:[#allocation9 + $0x1a8] sm:$0xff]
    %v947 = vld [vmem:[#allocation9 + $0x1b0] sm:$0xff]
    %v948 = vld [vmem:[#allocation9 + $0x1b8] sm:$0xff]
    %v949 = vld [vmem:[#allocation9 + $0x1c0] sm:$0xff]
    %v950 = vld [vmem:[#allocation9 + $0x1c8] sm:$0xff]
    %v951 = vld [vmem:[#allocation9 + $0x1d0] sm:$0xff]
    %v952 = vld [vmem:[#allocation9 + $0x1d8] sm:$0xff]
    %v953 = vld [vmem:[#allocation9 + $0x1e0] sm:$0xff]
    %v954 = vld [vmem:[#allocation9 + $0x1e8] sm:$0xff]
    %v955 = vld [vmem:[#allocation9 + $0x1f0] sm:$0xff]
    %v956 = vld [vmem:[#allocation9 + $0x1f8] sm:$0xff]
    %v957 = vld [vmem:[#allocation9 + $0x200] sm:$0xff]
    %v958 = vld [vmem:[#allocation9 + $0x208] sm:$0xff]
    %v959 = vld [vmem:[#allocation9 + $0x210] sm:$0xff]
    %v960 = vld [vmem:[#allocation9 + $0x218] sm:$0xff]
    %v961 = vld [vmem:[#allocation9 + $0x220] sm:$0xff]
    %v962 = vld [vmem:[#allocation9 + $0x228] sm:$0xff]
    %v963 = vld [vmem:[#allocation9 + $0x230] sm:$0xff]
    %v964 = vld [vmem:[#allocation9 + $0x238] sm:$0xff]
    %v965 = vld [vmem:[#allocation9 + $0x240] sm:$0xff]
    %v966 = vld [vmem:[#allocation9 + $0x248] sm:$0xff]
    %v967 = vld [vmem:[#allocation9 + $0x250] sm:$0xff]
    %v968 = vld [vmem:[#allocation9 + $0x258] sm:$0xff]
    %v969 = vld [vmem:[#allocation9 + $0x260] sm:$0xff]
    %v970 = vld [vmem:[#allocation9 + $0x268] sm:$0xff]
    %v971 = vld [vmem:[#allocation9 + $0x270] sm:$0xff]
    %v972 = vld [vmem:[#allocation9 + $0x278] sm:$0xff]
    %v973 = vld [vmem:[#allocation9 + $0x280] sm:$0xff]
    %v974 = vld [vmem:[#allocation9 + $0x288] sm:$0xff]
    %v975 = vld [vmem:[#allocation9 + $0x290] sm:$0xff]
    %v976 = vld [vmem:[#allocation9 + $0x298] sm:$0xff]
    %v977 = vld [vmem:[#allocation9 + $0x2a0] sm:$0xff]
    %v978 = vld [vmem:[#allocation9 + $0x2a8] sm:$0xff]
    %v979 = vld [vmem:[#allocation9 + $0x2b0] sm:$0xff]
    %v980 = vld [vmem:[#allocation9 + $0x2b8] sm:$0xff]
    %v981 = vld [vmem:[#allocation9 + $0x2c0] sm:$0xff]
    %v982 = vld [vmem:[#allocation9 + $0x2c8] sm:$0xff]
    %v983 = vld [vmem:[#allocation9 + $0x2d0] sm:$0xff]
    %v984 = vld [vmem:[#allocation9 + $0x2d8] sm:$0xff]
    %v985 = vld [vmem:[#allocation9 + $0x2e0] sm:$0xff]
    %v986 = vld [vmem:[#allocation9 + $0x2e8] sm:$0xff]
    %v987 = vld [vmem:[#allocation9 + $0x2f0] sm:$0xff]
    %v988 = vld [vmem:[#allocation9 + $0x2f8] sm:$0xff]
    %v989 = vld [vmem:[#allocation9 + $0x300] sm:$0xff]
    %v990 = vld [vmem:[#allocation9 + $0x308] sm:$0xff]
    %v991 = vld [vmem:[#allocation9 + $0x310] sm:$0xff]
    %v992 = vld [vmem:[#allocation9 + $0x318] sm:$0xff]
    %v993 = vld [vmem:[#allocation9 + $0x320] sm:$0xff]
    %v994 = vld [vmem:[#allocation9 + $0x328] sm:$0xff]
    %v995 = vld [vmem:[#allocation9 + $0x330] sm:$0xff]
    %v996 = vld [vmem:[#allocation9 + $0x338] sm:$0xff]
    %v997 = vld [vmem:[#allocation9 + $0x340] sm:$0xff]
    %vm998 = vcmask 326656
    %v1000 = vsel %vm998, %v890, 0
    %v1003 = vsel %vm998, %v892, 0
    %1005 = vmatpush.msra.mxu0 %v968
    %1006 = vmatpush.msra.mxu0 %v963
    %1007 = vmatpush.msra.mxu0 %v958
    %1008 = vmatpush.msra.mxu0 %v953
    %1009 = vmatpush.msra.mxu0 %v948
    %1010 = vmatpush.msra.mxu0 %v943
    %1011 = vmatpush.msra.mxu0 %v938
    %1012 = vmatpush.msra.mxu0 %v933
    %1013 = vmatpush.msra.mxu0 %v928
    %1014 = vmatpush.msra.mxu0 %v923
    %1015 = vmatpush.msra.mxu0 %v918
    %1016 = vmatpush.msra.mxu0 %v913
    %1017 = vmatpush.msra.mxu0 %v908
    %1018 = vmatpush.msra.mxu0 %v903
    %1019 = vmatpush.msra.mxu0 %v898
    %1020 = vmatpush.msra.mxu0 %v893
    %1021 = vmatmul.f32.gmra.mxu0 %v889
    %v1022 = vpop.f32.mrf.mxu0
    %v1023 = vadd.f32 0.0, %v1022
    %1024 = vmatmul.f32.gmra.mxu0 %v891
    %v1025 = vpop.f32.mrf.mxu0
    %v1026 = vadd.f32 0.0, %v1025
    %1027 = vdwg.mxu0
    %1028 = vmatpush.msra.mxu0 0.0
    %1029 = vmatpush.msra.mxu0 0.0
    %1030 = vmatpush.msra.mxu0 0.0
    %1031 = vmatpush.msra.mxu0 0.0
    %1032 = vmatpush.msra.mxu0 0.0
    %1033 = vmatpush.msra.mxu0 0.0
    %1034 = vmatpush.msra.mxu0 0.0
    %1035 = vmatpush.msra.mxu0 0.0
    %1036 = vmatpush.msra.mxu0 0.0
    %1037 = vmatpush.msra.mxu0 0.0
    %1038 = vmatpush.msra.mxu0 0.0
    %1039 = vmatpush.msra.mxu0 %v993
    %1040 = vmatpush.msra.mxu0 %v988
    %1041 = vmatpush.msra.mxu0 %v983
    %1042 = vmatpush.msra.mxu0 %v978
    %1043 = vmatpush.msra.mxu0 %v973
    %1044 = vmatmul.f32.gmra.mxu0 %v1000
    %v1045 = vpop.f32.mrf.mxu0
    %v1046 = vadd.f32 %v1023, %v1045
    %1047 = vmatmul.f32.gmra.mxu0 %v1003
    %v1048 = vpop.f32.mrf.mxu0
    %v1049 = vadd.f32 %v1026, %v1048
    %1050 = vdwg.mxu0
    %1051 = vmatpush.msra.mxu0 %v969
    %1052 = vmatpush.msra.mxu0 %v964
    %1053 = vmatpush.msra.mxu0 %v959
    %1054 = vmatpush.msra.mxu0 %v954
    %1055 = vmatpush.msra.mxu0 %v949
    %1056 = vmatpush.msra.mxu0 %v944
    %1057 = vmatpush.msra.mxu0 %v939
    %1058 = vmatpush.msra.mxu0 %v934
    %1059 = vmatpush.msra.mxu0 %v929
    %1060 = vmatpush.msra.mxu0 %v924
    %1061 = vmatpush.msra.mxu0 %v919
    %1062 = vmatpush.msra.mxu0 %v914
    %1063 = vmatpush.msra.mxu0 %v909
    %1064 = vmatpush.msra.mxu0 %v904
    %1065 = vmatpush.msra.mxu0 %v899
    %1066 = vmatpush.msra.mxu0 %v894
    %1067 = vmatmul.f32.gmra.mxu0 %v889
    %v1068 = vpop.f32.mrf.mxu0
    %v1069 = vadd.f32 0.0, %v1068
    %1070 = vmatmul.f32.gmra.mxu0 %v891
    %v1071 = vpop.f32.mrf.mxu0
    %v1072 = vadd.f32 0.0, %v1071
    %1073 = vdwg.mxu0
    %1074 = vmatpush.msra.mxu0 0.0
    %1075 = vmatpush.msra.mxu0 0.0
    %1076 = vmatpush.msra.mxu0 0.0
    %1077 = vmatpush.msra.mxu0 0.0
    %1078 = vmatpush.msra.mxu0 0.0
    %1079 = vmatpush.msra.mxu0 0.0
    %1080 = vmatpush.msra.mxu0 0.0
    %1081 = vmatpush.msra.mxu0 0.0
    %1082 = vmatpush.msra.mxu0 0.0
    %1083 = vmatpush.msra.mxu0 0.0
    %1084 = vmatpush.msra.mxu0 0.0
    %1085 = vmatpush.msra.mxu0 %v994
    %1086 = vmatpush.msra.mxu0 %v989
    %1087 = vmatpush.msra.mxu0 %v984
    %1088 = vmatpush.msra.mxu0 %v979
    %1089 = vmatpush.msra.mxu0 %v974
    %1090 = vmatmul.f32.gmra.mxu0 %v1000
    %v1091 = vpop.f32.mrf.mxu0
    %v1092 = vadd.f32 %v1069, %v1091
    %1093 = vmatmul.f32.gmra.mxu0 %v1003
    %v1094 = vpop.f32.mrf.mxu0
    %v1095 = vadd.f32 %v1072, %v1094
    %1096 = vdwg.mxu0
    %1097 = vmatpush.msra.mxu0 %v970
    %1098 = vmatpush.msra.mxu0 %v965
    %1099 = vmatpush.msra.mxu0 %v960
    %1100 = vmatpush.msra.mxu0 %v955
    %1101 = vmatpush.msra.mxu0 %v950
    %1102 = vmatpush.msra.mxu0 %v945
    %1103 = vmatpush.msra.mxu0 %v940
    %1104 = vmatpush.msra.mxu0 %v935
    %1105 = vmatpush.msra.mxu0 %v930
    %1106 = vmatpush.msra.mxu0 %v925
    %1107 = vmatpush.msra.mxu0 %v920
    %1108 = vmatpush.msra.mxu0 %v915
    %1109 = vmatpush.msra.mxu0 %v910
    %1110 = vmatpush.msra.mxu0 %v905
    %1111 = vmatpush.msra.mxu0 %v900
    %1112 = vmatpush.msra.mxu0 %v895
    %1113 = vmatmul.f32.gmra.mxu0 %v889
    %v1114 = vpop.f32.mrf.mxu0
    %v1115 = vadd.f32 0.0, %v1114
    %1116 = vmatmul.f32.gmra.mxu0 %v891
    %v1117 = vpop.f32.mrf.mxu0
    %v1118 = vadd.f32 0.0, %v1117
    %1119 = vdwg.mxu0
    %1120 = vmatpush.msra.mxu0 0.0
    %1121 = vmatpush.msra.mxu0 0.0
    %1122 = vmatpush.msra.mxu0 0.0
    %1123 = vmatpush.msra.mxu0 0.0
    %1124 = vmatpush.msra.mxu0 0.0
    %1125 = vmatpush.msra.mxu0 0.0
    %1126 = vmatpush.msra.mxu0 0.0
    %1127 = vmatpush.msra.mxu0 0.0
    %1128 = vmatpush.msra.mxu0 0.0
    %1129 = vmatpush.msra.mxu0 0.0
    %1130 = vmatpush.msra.mxu0 0.0
    %1131 = vmatpush.msra.mxu0 %v995
    %1132 = vmatpush.msra.mxu0 %v990
    %1133 = vmatpush.msra.mxu0 %v985
    %1134 = vmatpush.msra.mxu0 %v980
    %1135 = vmatpush.msra.mxu0 %v975
    %1136 = vmatmul.f32.gmra.mxu0 %v1000
    %v1137 = vpop.f32.mrf.mxu0
    %v1138 = vadd.f32 %v1115, %v1137
    %1139 = vmatmul.f32.gmra.mxu0 %v1003
    %v1140 = vpop.f32.mrf.mxu0
    %v1141 = vadd.f32 %v1118, %v1140
    %1142 = vdwg.mxu0
    %1143 = vmatpush.msra.mxu0 %v971
    %1144 = vmatpush.msra.mxu0 %v966
    %1145 = vmatpush.msra.mxu0 %v961
    %1146 = vmatpush.msra.mxu0 %v956
    %1147 = vmatpush.msra.mxu0 %v951
    %1148 = vmatpush.msra.mxu0 %v946
    %1149 = vmatpush.msra.mxu0 %v941
    %1150 = vmatpush.msra.mxu0 %v936
    %1151 = vmatpush.msra.mxu0 %v931
    %1152 = vmatpush.msra.mxu0 %v926
    %1153 = vmatpush.msra.mxu0 %v921
    %1154 = vmatpush.msra.mxu0 %v916
    %1155 = vmatpush.msra.mxu0 %v911
    %1156 = vmatpush.msra.mxu0 %v906
    %1157 = vmatpush.msra.mxu0 %v901
    %1158 = vmatpush.msra.mxu0 %v896
    %1159 = vmatmul.f32.gmra.mxu0 %v889
    %v1160 = vpop.f32.mrf.mxu0
    %v1161 = vadd.f32 0.0, %v1160
    %1162 = vmatmul.f32.gmra.mxu0 %v891
    %v1163 = vpop.f32.mrf.mxu0
    %v1164 = vadd.f32 0.0, %v1163
    %1165 = vdwg.mxu0
    %1166 = vmatpush.msra.mxu0 0.0
    %1167 = vmatpush.msra.mxu0 0.0
    %1168 = vmatpush.msra.mxu0 0.0
    %1169 = vmatpush.msra.mxu0 0.0
    %1170 = vmatpush.msra.mxu0 0.0
    %1171 = vmatpush.msra.mxu0 0.0
    %1172 = vmatpush.msra.mxu0 0.0
    %1173 = vmatpush.msra.mxu0 0.0
    %1174 = vmatpush.msra.mxu0 0.0
    %1175 = vmatpush.msra.mxu0 0.0
    %1176 = vmatpush.msra.mxu0 0.0
    %1177 = vmatpush.msra.mxu0 %v996
    %1178 = vmatpush.msra.mxu0 %v991
    %1179 = vmatpush.msra.mxu0 %v986
    %1180 = vmatpush.msra.mxu0 %v981
    %1181 = vmatpush.msra.mxu0 %v976
    %1182 = vmatmul.f32.gmra.mxu0 %v1000
    %v1183 = vpop.f32.mrf.mxu0
    %v1184 = vadd.f32 %v1161, %v1183
    %1185 = vmatmul.f32.gmra.mxu0 %v1003
    %v1186 = vpop.f32.mrf.mxu0
    %v1187 = vadd.f32 %v1164, %v1186
    %1188 = vdwg.mxu0
    %1189 = vmatpush.msra.mxu0 %v972
    %1190 = vmatpush.msra.mxu0 %v967
    %1191 = vmatpush.msra.mxu0 %v962
    %1192 = vmatpush.msra.mxu0 %v957
    %1193 = vmatpush.msra.mxu0 %v952
    %1194 = vmatpush.msra.mxu0 %v947
    %1195 = vmatpush.msra.mxu0 %v942
    %1196 = vmatpush.msra.mxu0 %v937
    %1197 = vmatpush.msra.mxu0 %v932
    %1198 = vmatpush.msra.mxu0 %v927
    %1199 = vmatpush.msra.mxu0 %v922
    %1200 = vmatpush.msra.mxu0 %v917
    %1201 = vmatpush.msra.mxu0 %v912
    %1202 = vmatpush.msra.mxu0 %v907
    %1203 = vmatpush.msra.mxu0 %v902
    %1204 = vmatpush.msra.mxu0 %v897
    %1205 = vmatmul.f32.gmra.mxu0 %v889
    %v1206 = vpop.f32.mrf.mxu0
    %v1207 = vadd.f32 0.0, %v1206
    %1208 = vmatmul.f32.gmra.mxu0 %v891
    %v1209 = vpop.f32.mrf.mxu0
    %v1210 = vadd.f32 0.0, %v1209
    %1211 = vdwg.mxu0
    %1212 = vmatpush.msra.mxu0 0.0
    %1213 = vmatpush.msra.mxu0 0.0
    %1214 = vmatpush.msra.mxu0 0.0
    %1215 = vmatpush.msra.mxu0 0.0
    %1216 = vmatpush.msra.mxu0 0.0
    %1217 = vmatpush.msra.mxu0 0.0
    %1218 = vmatpush.msra.mxu0 0.0
    %1219 = vmatpush.msra.mxu0 0.0
    %1220 = vmatpush.msra.mxu0 0.0
    %1221 = vmatpush.msra.mxu0 0.0
    %1222 = vmatpush.msra.mxu0 0.0
    %1223 = vmatpush.msra.mxu0 %v997
    %1224 = vmatpush.msra.mxu0 %v992
    %1225 = vmatpush.msra.mxu0 %v987
    %1226 = vmatpush.msra.mxu0 %v982
    %1227 = vmatpush.msra.mxu0 %v977
    %1228 = vmatmul.f32.gmra.mxu0 %v1000
    %v1229 = vpop.f32.mrf.mxu0
    %v1230 = vadd.f32 %v1207, %v1229
    %1231 = vmatmul.f32.gmra.mxu0 %v1003
    %v1232 = vpop.f32.mrf.mxu0
    %v1233 = vadd.f32 %v1210, %v1232
    %1234 = vdwg.mxu0
    %v1235 = vmul.f32 %v792, %v1046
    %v1236 = vmul.f32 %v815, %v1092
    %v1237 = vmul.f32 %v838, %v1138
    %v1238 = vmul.f32 %v861, %v1184
    %v1239 = vmul.f32 %v884, %v1230
    %v1240 = vmul.f32 %v795, %v1049
    %v1241 = vmul.f32 %v818, %v1095
    %v1242 = vmul.f32 %v841, %v1141
    %v1243 = vmul.f32 %v864, %v1187
    %v1244 = vmul.f32 %v887, %v1233
    %v1245 = vld [vmem:[%s5] sm:$0xff]
    %v1246 = vld [vmem:[%s5 + $0x8] sm:$0xff]
    %v1247 = vld [vmem:[%s5 + $0x10] sm:$0xff]
    %v1248 = vld [vmem:[%s5 + $0x18] sm:$0xff]
    %v1249 = vld [vmem:[%s5 + $0x20] sm:$0xff]
    %v1250 = vld [vmem:[%s5 + $0x28] sm:$0xff]
    %v1251 = vld [vmem:[%s5 + $0x30] sm:$0xff]
    %v1252 = vld [vmem:[%s5 + $0x38] sm:$0xff]
    %v1253 = vld [vmem:[%s5 + $0x40] sm:$0xff]
    %v1254 = vld [vmem:[%s5 + $0x48] sm:$0xff]
    %v1255 = vld [vmem:[%s5 + $0x50] sm:$0xff]
    %v1256 = vld [vmem:[%s5 + $0x58] sm:$0xff]
    %v1257 = vld [vmem:[%s5 + $0x60] sm:$0xff]
    %v1258 = vld [vmem:[%s5 + $0x68] sm:$0xff]
    %v1259 = vld [vmem:[%s5 + $0x70] sm:$0xff]
    %v1260 = vld [vmem:[%s5 + $0x78] sm:$0xff]
    %v1261 = vld [vmem:[%s5 + $0x80] sm:$0xff]
    %v1262 = vld [vmem:[%s5 + $0x88] sm:$0xff]
    %v1263 = vld [vmem:[%s5 + $0x90] sm:$0xff]
    %v1264 = vld [vmem:[%s5 + $0x98] sm:$0xff]
    %v1265 = vld [vmem:[%s5 + $0xa0] sm:$0xff]
    %v1266 = vld [vmem:[%s5 + $0xa8] sm:$0xff]
    %v1267 = vld [vmem:[%s5 + $0xb0] sm:$0xff]
    %v1268 = vld [vmem:[%s5 + $0xb8] sm:$0xff]
    %v1269 = vld [vmem:[%s5 + $0xc0] sm:$0xff]
    %v1270 = vld [vmem:[%s5 + $0xc8] sm:$0xff]
    %v1271 = vld [vmem:[%s5 + $0xd0] sm:$0xff]
    %v1272 = vld [vmem:[%s5 + $0xd8] sm:$0xff]
    %v1273 = vld [vmem:[%s5 + $0xe0] sm:$0xff]
    %v1274 = vld [vmem:[%s5 + $0xe8] sm:$0xff]
    %v1275 = vld [vmem:[%s5 + $0xf0] sm:$0xff]
    %v1276 = vld [vmem:[%s5 + $0xf8] sm:$0xff]
    %v1277 = vld [vmem:[%s5 + $0x100] sm:$0xff]
    %v1278 = vld [vmem:[%s5 + $0x108] sm:$0xff]
    %v1279 = vld [vmem:[%s5 + $0x110] sm:$0xff]
    %v1280 = vld [vmem:[%s5 + $0x118] sm:$0xff]
    %v1281 = vld [vmem:[%s5 + $0x120] sm:$0xff]
    %v1282 = vld [vmem:[%s5 + $0x128] sm:$0xff]
    %v1283 = vld [vmem:[%s5 + $0x130] sm:$0xff]
    %v1284 = vld [vmem:[%s5 + $0x138] sm:$0xff]
    %v1285 = vld [vmem:[%s5 + $0x140] sm:$0xff]
    %v1286 = vld [vmem:[%s5 + $0x148] sm:$0xff]
    %v1287 = vld [vmem:[%s5 + $0x150] sm:$0xff]
    %v1288 = vld [vmem:[%s5 + $0x158] sm:$0xff]
    %v1289 = vld [vmem:[%s5 + $0x160] sm:$0xff]
    %v1290 = vld [vmem:[%s5 + $0x168] sm:$0xff]
    %v1291 = vld [vmem:[%s5 + $0x170] sm:$0xff]
    %v1292 = vld [vmem:[%s5 + $0x178] sm:$0xff]
    %v1293 = vld [vmem:[%s5 + $0x180] sm:$0xff]
    %v1294 = vld [vmem:[%s5 + $0x188] sm:$0xff]
    %v1295 = vld [vmem:[%s5 + $0x190] sm:$0xff]
    %v1296 = vld [vmem:[%s5 + $0x198] sm:$0xff]
    %v1297 = vld [vmem:[%s5 + $0x1a0] sm:$0xff]
    %v1298 = vld [vmem:[%s5 + $0x1a8] sm:$0xff]
    %v1299 = vld [vmem:[%s5 + $0x1b0] sm:$0xff]
    %v1300 = vld [vmem:[%s5 + $0x1b8] sm:$0xff]
    %v1301 = vld [vmem:[%s5 + $0x1c0] sm:$0xff]
    %v1302 = vld [vmem:[%s5 + $0x1c8] sm:$0xff]
    %v1303 = vld [vmem:[%s5 + $0x1d0] sm:$0xff]
    %v1304 = vld [vmem:[%s5 + $0x1d8] sm:$0xff]
    %v1305 = vld [vmem:[%s5 + $0x1e0] sm:$0xff]
    %v1306 = vld [vmem:[%s5 + $0x1e8] sm:$0xff]
    %v1307 = vld [vmem:[%s5 + $0x1f0] sm:$0xff]
    %v1308 = vld [vmem:[%s5 + $0x1f8] sm:$0xff]
    %v1309 = vld [vmem:[%s5 + $0x200] sm:$0xff]
    %v1310 = vld [vmem:[%s5 + $0x208] sm:$0xff]
    %v1311 = vld [vmem:[%s5 + $0x210] sm:$0xff]
    %v1312 = vld [vmem:[%s5 + $0x218] sm:$0xff]
    %v1313 = vld [vmem:[%s5 + $0x220] sm:$0xff]
    %v1314 = vld [vmem:[%s5 + $0x228] sm:$0xff]
    %v1315 = vld [vmem:[%s5 + $0x230] sm:$0xff]
    %v1316 = vld [vmem:[%s5 + $0x238] sm:$0xff]
    %v1317 = vld [vmem:[%s5 + $0x240] sm:$0xff]
    %v1318 = vld [vmem:[%s5 + $0x248] sm:$0xff]
    %v1319 = vld [vmem:[%s5 + $0x250] sm:$0xff]
    %v1320 = vld [vmem:[%s5 + $0x258] sm:$0xff]
    %v1321 = vld [vmem:[%s5 + $0x260] sm:$0xff]
    %v1322 = vld [vmem:[%s5 + $0x268] sm:$0xff]
    %v1323 = vld [vmem:[%s5 + $0x270] sm:$0xff]
    %v1324 = vld [vmem:[%s5 + $0x278] sm:$0xff]
    %v1325 = vld [vmem:[%s6] sm:$0xff]
    %v1326 = vld [vmem:[%s6 + $0x8] sm:$0xff]
    %1327 = vmatpush.msra.mxu0 %v1260
    %1328 = vmatpush.msra.mxu0 %v1259
    %1329 = vmatpush.msra.mxu0 %v1258
    %1330 = vmatpush.msra.mxu0 %v1257
    %1331 = vmatpush.msra.mxu0 %v1256
    %1332 = vmatpush.msra.mxu0 %v1255
    %1333 = vmatpush.msra.mxu0 %v1254
    %1334 = vmatpush.msra.mxu0 %v1253
    %1335 = vmatpush.msra.mxu0 %v1252
    %1336 = vmatpush.msra.mxu0 %v1251
    %1337 = vmatpush.msra.mxu0 %v1250
    %1338 = vmatpush.msra.mxu0 %v1249
    %1339 = vmatpush.msra.mxu0 %v1248
    %1340 = vmatpush.msra.mxu0 %v1247
    %1341 = vmatpush.msra.mxu0 %v1246
    %1342 = vmatpush.msra.mxu0 %v1245
    %1343 = vmatmul.f32.gmra.mxu0 %v1235
    %v1344 = vpop.f32.mrf.mxu0
    %v1345 = vadd.f32 %v1325, %v1344
    %1346 = vmatmul.f32.gmra.mxu0 %v1240
    %v1347 = vpop.f32.mrf.mxu0
    %v1348 = vadd.f32 %v1326, %v1347
    %1349 = vdwg.mxu0
    %1350 = vmatpush.msra.mxu0 %v1276
    %1351 = vmatpush.msra.mxu0 %v1275
    %1352 = vmatpush.msra.mxu0 %v1274
    %1353 = vmatpush.msra.mxu0 %v1273
    %1354 = vmatpush.msra.mxu0 %v1272
    %1355 = vmatpush.msra.mxu0 %v1271
    %1356 = vmatpush.msra.mxu0 %v1270
    %1357 = vmatpush.msra.mxu0 %v1269
    %1358 = vmatpush.msra.mxu0 %v1268
    %1359 = vmatpush.msra.mxu0 %v1267
    %1360 = vmatpush.msra.mxu0 %v1266
    %1361 = vmatpush.msra.mxu0 %v1265
    %1362 = vmatpush.msra.mxu0 %v1264
    %1363 = vmatpush.msra.mxu0 %v1263
    %1364 = vmatpush.msra.mxu0 %v1262
    %1365 = vmatpush.msra.mxu0 %v1261
    %1366 = vmatmul.f32.gmra.mxu0 %v1236
    %v1367 = vpop.f32.mrf.mxu0
    %v1368 = vadd.f32 %v1345, %v1367
    %1369 = vmatmul.f32.gmra.mxu0 %v1241
    %v1370 = vpop.f32.mrf.mxu0
    %v1371 = vadd.f32 %v1348, %v1370
    %1372 = vdwg.mxu0
    %1373 = vmatpush.msra.mxu0 %v1292
    %1374 = vmatpush.msra.mxu0 %v1291
    %1375 = vmatpush.msra.mxu0 %v1290
    %1376 = vmatpush.msra.mxu0 %v1289
    %1377 = vmatpush.msra.mxu0 %v1288
    %1378 = vmatpush.msra.mxu0 %v1287
    %1379 = vmatpush.msra.mxu0 %v1286
    %1380 = vmatpush.msra.mxu0 %v1285
    %1381 = vmatpush.msra.mxu0 %v1284
    %1382 = vmatpush.msra.mxu0 %v1283
    %1383 = vmatpush.msra.mxu0 %v1282
    %1384 = vmatpush.msra.mxu0 %v1281
    %1385 = vmatpush.msra.mxu0 %v1280
    %1386 = vmatpush.msra.mxu0 %v1279
    %1387 = vmatpush.msra.mxu0 %v1278
    %1388 = vmatpush.msra.mxu0 %v1277
    %1389 = vmatmul.f32.gmra.mxu0 %v1237
    %v1390 = vpop.f32.mrf.mxu0
    %v1391 = vadd.f32 %v1368, %v1390
    %1392 = vmatmul.f32.gmra.mxu0 %v1242
    %v1393 = vpop.f32.mrf.mxu0
    %v1394 = vadd.f32 %v1371, %v1393
    %1395 = vdwg.mxu0
    %1396 = vmatpush.msra.mxu0 %v1308
    %1397 = vmatpush.msra.mxu0 %v1307
    %1398 = vmatpush.msra.mxu0 %v1306
    %1399 = vmatpush.msra.mxu0 %v1305
    %1400 = vmatpush.msra.mxu0 %v1304
    %1401 = vmatpush.msra.mxu0 %v1303
    %1402 = vmatpush.msra.mxu0 %v1302
    %1403 = vmatpush.msra.mxu0 %v1301
    %1404 = vmatpush.msra.mxu0 %v1300
    %1405 = vmatpush.msra.mxu0 %v1299
    %1406 = vmatpush.msra.mxu0 %v1298
    %1407 = vmatpush.msra.mxu0 %v1297
    %1408 = vmatpush.msra.mxu0 %v1296
    %1409 = vmatpush.msra.mxu0 %v1295
    %1410 = vmatpush.msra.mxu0 %v1294
    %1411 = vmatpush.msra.mxu0 %v1293
    %1412 = vmatmul.f32.gmra.mxu0 %v1238
    %v1413 = vpop.f32.mrf.mxu0
    %v1414 = vadd.f32 %v1391, %v1413
    %1415 = vmatmul.f32.gmra.mxu0 %v1243
    %v1416 = vpop.f32.mrf.mxu0
    %v1417 = vadd.f32 %v1394, %v1416
    %1418 = vdwg.mxu0
    %1419 = vmatpush.msra.mxu0 %v1324
    %1420 = vmatpush.msra.mxu0 %v1323
    %1421 = vmatpush.msra.mxu0 %v1322
    %1422 = vmatpush.msra.mxu0 %v1321
    %1423 = vmatpush.msra.mxu0 %v1320
    %1424 = vmatpush.msra.mxu0 %v1319
    %1425 = vmatpush.msra.mxu0 %v1318
    %1426 = vmatpush.msra.mxu0 %v1317
    %1427 = vmatpush.msra.mxu0 %v1316
    %1428 = vmatpush.msra.mxu0 %v1315
    %1429 = vmatpush.msra.mxu0 %v1314
    %1430 = vmatpush.msra.mxu0 %v1313
    %1431 = vmatpush.msra.mxu0 %v1312
    %1432 = vmatpush.msra.mxu0 %v1311
    %1433 = vmatpush.msra.mxu0 %v1310
    %1434 = vmatpush.msra.mxu0 %v1309
    %1435 = vmatmul.f32.gmra.mxu0 %v1239
    %v1436 = vpop.f32.mrf.mxu0
    %v1437 = vadd.f32 %v1414, %v1436
    %1438 = vmatmul.f32.gmra.mxu0 %v1244
    %v1439 = vpop.f32.mrf.mxu0
    %v1440 = vadd.f32 %v1417, %v1439
    %1441 = vdwg.mxu0
    %v1442 = vld [vmem:[%s7] sm:$0xff]
    %v1443 = vld [vmem:[%s7 + $0x8] sm:$0xff]
    %v1444 = vld [vmem:[%s7 + $0x10] sm:$0xff]
    %v1445 = vld [vmem:[%s7 + $0x18] sm:$0xff]
    %v1446 = vld [vmem:[%s7 + $0x20] sm:$0xff]
    %v1447 = vld [vmem:[%s7 + $0x28] sm:$0xff]
    %v1448 = vld [vmem:[%s7 + $0x30] sm:$0xff]
    %v1449 = vld [vmem:[%s7 + $0x38] sm:$0xff]
    %v1450 = vld [vmem:[%s7 + $0x40] sm:$0xff]
    %v1451 = vld [vmem:[%s7 + $0x48] sm:$0xff]
    %v1452 = vld [vmem:[%s7 + $0x50] sm:$0xff]
    %v1453 = vld [vmem:[%s7 + $0x58] sm:$0xff]
    %v1454 = vld [vmem:[#allocation11] sm:$0xff]
    %v1455 = vld [vmem:[#allocation11 + $0x8] sm:$0xff]
    %v1456 = vld [vmem:[#allocation11 + $0x10] sm:$0xff]
    %v1457 = vld [vmem:[#allocation11 + $0x18] sm:$0xff]
    %v1458 = vld [vmem:[#allocation11 + $0x20] sm:$0xff]
    %v1459 = vld [vmem:[#allocation11 + $0x28] sm:$0xff]
    %v1460 = vld [vmem:[#allocation11 + $0x30] sm:$0xff]
    %v1461 = vld [vmem:[#allocation11 + $0x38] sm:$0xff]
    %v1462 = vld [vmem:[#allocation11 + $0x40] sm:$0xff]
    %v1463 = vld [vmem:[#allocation11 + $0x48] sm:$0xff]
    %v1464 = vld [vmem:[#allocation11 + $0x50] sm:$0xff]
    %v1465 = vld [vmem:[#allocation11 + $0x58] sm:$0xff]
    %v1466 = vld [vmem:[#allocation11 + $0x60] sm:$0xff]
    %v1467 = vld [vmem:[#allocation11 + $0x68] sm:$0xff]
    %v1468 = vld [vmem:[#allocation11 + $0x70] sm:$0xff]
    %v1469 = vld [vmem:[#allocation11 + $0x78] sm:$0xff]
    %v1470 = vld [vmem:[#allocation11 + $0x80] sm:$0xff]
    %v1471 = vld [vmem:[#allocation11 + $0x88] sm:$0xff]
    %v1472 = vld [vmem:[#allocation11 + $0x90] sm:$0xff]
    %v1473 = vld [vmem:[#allocation11 + $0x98] sm:$0xff]
    %v1474 = vld [vmem:[#allocation11 + $0xa0] sm:$0xff]
    %v1475 = vld [vmem:[#allocation11 + $0xa8] sm:$0xff]
    %v1476 = vld [vmem:[#allocation11 + $0xb0] sm:$0xff]
    %v1477 = vld [vmem:[#allocation11 + $0xb8] sm:$0xff]
    %v1478 = vld [vmem:[#allocation11 + $0xc0] sm:$0xff]
    %v1479 = vld [vmem:[#allocation11 + $0xc8] sm:$0xff]
    %v1480 = vld [vmem:[#allocation11 + $0xd0] sm:$0xff]
    %v1481 = vld [vmem:[#allocation11 + $0xd8] sm:$0xff]
    %v1482 = vld [vmem:[#allocation11 + $0xe0] sm:$0xff]
    %v1483 = vld [vmem:[#allocation11 + $0xe8] sm:$0xff]
    %v1484 = vld [vmem:[#allocation11 + $0xf0] sm:$0xff]
    %v1485 = vld [vmem:[#allocation11 + $0xf8] sm:$0xff]
    %v1486 = vld [vmem:[#allocation11 + $0x100] sm:$0xff]
    %v1487 = vld [vmem:[#allocation11 + $0x108] sm:$0xff]
    %v1488 = vld [vmem:[#allocation11 + $0x110] sm:$0xff]
    %v1489 = vld [vmem:[#allocation11 + $0x118] sm:$0xff]
    %v1490 = vld [vmem:[#allocation11 + $0x120] sm:$0xff]
    %v1491 = vld [vmem:[#allocation11 + $0x128] sm:$0xff]
    %v1492 = vld [vmem:[#allocation11 + $0x130] sm:$0xff]
    %v1493 = vld [vmem:[#allocation11 + $0x138] sm:$0xff]
    %v1494 = vld [vmem:[#allocation11 + $0x140] sm:$0xff]
    %v1495 = vld [vmem:[#allocation11 + $0x148] sm:$0xff]
    %v1496 = vld [vmem:[#allocation11 + $0x150] sm:$0xff]
    %v1497 = vld [vmem:[#allocation11 + $0x158] sm:$0xff]
    %v1498 = vld [vmem:[#allocation11 + $0x160] sm:$0xff]
    %v1499 = vld [vmem:[#allocation11 + $0x168] sm:$0xff]
    %v1500 = vld [vmem:[#allocation11 + $0x170] sm:$0xff]
    %v1501 = vld [vmem:[#allocation11 + $0x178] sm:$0xff]
    %v1502 = vld [vmem:[#allocation11 + $0x180] sm:$0xff]
    %v1503 = vld [vmem:[#allocation11 + $0x188] sm:$0xff]
    %v1504 = vld [vmem:[#allocation11 + $0x190] sm:$0xff]
    %v1505 = vld [vmem:[#allocation11 + $0x198] sm:$0xff]
    %v1506 = vld [vmem:[#allocation11 + $0x1a0] sm:$0xff]
    %v1507 = vld [vmem:[#allocation11 + $0x1a8] sm:$0xff]
    %v1508 = vld [vmem:[#allocation11 + $0x1b0] sm:$0xff]
    %v1509 = vld [vmem:[#allocation11 + $0x1b8] sm:$0xff]
    %v1510 = vld [vmem:[#allocation11 + $0x1c0] sm:$0xff]
    %v1511 = vld [vmem:[#allocation11 + $0x1c8] sm:$0xff]
    %v1512 = vld [vmem:[#allocation11 + $0x1d0] sm:$0xff]
    %v1513 = vld [vmem:[#allocation11 + $0x1d8] sm:$0xff]
    %v1514 = vld [vmem:[#allocation11 + $0x1e0] sm:$0xff]
    %v1515 = vld [vmem:[#allocation11 + $0x1e8] sm:$0xff]
    %v1516 = vld [vmem:[#allocation11 + $0x1f0] sm:$0xff]
    %v1517 = vld [vmem:[#allocation11 + $0x1f8] sm:$0xff]
    %v1518 = vld [vmem:[#allocation11 + $0x200] sm:$0xff]
    %v1519 = vld [vmem:[#allocation11 + $0x208] sm:$0xff]
    %v1520 = vld [vmem:[#allocation11 + $0x210] sm:$0xff]
    %v1521 = vld [vmem:[#allocation11 + $0x218] sm:$0xff]
    %v1522 = vld [vmem:[#allocation11 + $0x220] sm:$0xff]
    %v1523 = vld [vmem:[#allocation11 + $0x228] sm:$0xff]
    %v1524 = vld [vmem:[#allocation11 + $0x230] sm:$0xff]
    %v1525 = vld [vmem:[#allocation11 + $0x238] sm:$0xff]
    %v1526 = vld [vmem:[#allocation11 + $0x240] sm:$0xff]
    %v1527 = vld [vmem:[#allocation11 + $0x248] sm:$0xff]
    %v1528 = vld [vmem:[#allocation11 + $0x250] sm:$0xff]
    %v1529 = vld [vmem:[#allocation11 + $0x258] sm:$0xff]
    %v1530 = vld [vmem:[#allocation11 + $0x260] sm:$0xff]
    %v1531 = vld [vmem:[#allocation11 + $0x268] sm:$0xff]
    %v1532 = vld [vmem:[#allocation11 + $0x270] sm:$0xff]
    %v1533 = vld [vmem:[#allocation11 + $0x278] sm:$0xff]
    %v1534 = vld [vmem:[#allocation11 + $0x280] sm:$0xff]
    %v1535 = vld [vmem:[#allocation11 + $0x288] sm:$0xff]
    %v1536 = vld [vmem:[#allocation11 + $0x290] sm:$0xff]
    %v1537 = vld [vmem:[#allocation11 + $0x298] sm:$0xff]
    %v1538 = vld [vmem:[#allocation11 + $0x2a0] sm:$0xff]
    %v1539 = vld [vmem:[#allocation11 + $0x2a8] sm:$0xff]
    %v1540 = vld [vmem:[#allocation11 + $0x2b0] sm:$0xff]
    %v1541 = vld [vmem:[#allocation11 + $0x2b8] sm:$0xff]
    %v1542 = vld [vmem:[#allocation11 + $0x2c0] sm:$0xff]
    %v1543 = vld [vmem:[#allocation11 + $0x2c8] sm:$0xff]
    %v1544 = vld [vmem:[#allocation11 + $0x2d0] sm:$0xff]
    %v1545 = vld [vmem:[#allocation11 + $0x2d8] sm:$0xff]
    %v1546 = vld [vmem:[#allocation11 + $0x2e0] sm:$0xff]
    %v1547 = vld [vmem:[#allocation11 + $0x2e8] sm:$0xff]
    %v1548 = vld [vmem:[#allocation11 + $0x2f0] sm:$0xff]
    %v1549 = vld [vmem:[#allocation11 + $0x2f8] sm:$0xff]
    %1550 = vmatpush.msra.mxu0 %v1469
    %1551 = vmatpush.msra.mxu0 %v1468
    %1552 = vmatpush.msra.mxu0 %v1467
    %1553 = vmatpush.msra.mxu0 %v1466
    %1554 = vmatpush.msra.mxu0 %v1465
    %1555 = vmatpush.msra.mxu0 %v1464
    %1556 = vmatpush.msra.mxu0 %v1463
    %1557 = vmatpush.msra.mxu0 %v1462
    %1558 = vmatpush.msra.mxu0 %v1461
    %1559 = vmatpush.msra.mxu0 %v1460
    %1560 = vmatpush.msra.mxu0 %v1459
    %1561 = vmatpush.msra.mxu0 %v1458
    %1562 = vmatpush.msra.mxu0 %v1457
    %1563 = vmatpush.msra.mxu0 %v1456
    %1564 = vmatpush.msra.mxu0 %v1455
    %1565 = vmatpush.msra.mxu0 %v1454
    %1566 = vmatmul.f32.gmra.mxu0 %v1442
    %v1567 = vpop.f32.mrf.mxu0
    %v1568 = vadd.f32 0.0, %v1567
    %1569 = vmatmul.f32.gmra.mxu0 %v1448
    %v1570 = vpop.f32.mrf.mxu0
    %v1571 = vadd.f32 0.0, %v1570
    %1572 = vdwg.mxu0
    %1573 = vmatpush.msra.mxu0 %v1485
    %1574 = vmatpush.msra.mxu0 %v1484
    %1575 = vmatpush.msra.mxu0 %v1483
    %1576 = vmatpush.msra.mxu0 %v1482
    %1577 = vmatpush.msra.mxu0 %v1481
    %1578 = vmatpush.msra.mxu0 %v1480
    %1579 = vmatpush.msra.mxu0 %v1479
    %1580 = vmatpush.msra.mxu0 %v1478
    %1581 = vmatpush.msra.mxu0 %v1477
    %1582 = vmatpush.msra.mxu0 %v1476
    %1583 = vmatpush.msra.mxu0 %v1475
    %1584 = vmatpush.msra.mxu0 %v1474
    %1585 = vmatpush.msra.mxu0 %v1473
    %1586 = vmatpush.msra.mxu0 %v1472
    %1587 = vmatpush.msra.mxu0 %v1471
    %1588 = vmatpush.msra.mxu0 %v1470
    %1589 = vmatmul.f32.gmra.mxu0 %v1443
    %v1590 = vpop.f32.mrf.mxu0
    %v1591 = vadd.f32 %v1568, %v1590
    %1592 = vmatmul.f32.gmra.mxu0 %v1449
    %v1593 = vpop.f32.mrf.mxu0
    %v1594 = vadd.f32 %v1571, %v1593
    %1595 = vdwg.mxu0
    %1596 = vmatpush.msra.mxu0 %v1501
    %1597 = vmatpush.msra.mxu0 %v1500
    %1598 = vmatpush.msra.mxu0 %v1499
    %1599 = vmatpush.msra.mxu0 %v1498
    %1600 = vmatpush.msra.mxu0 %v1497
    %1601 = vmatpush.msra.mxu0 %v1496
    %1602 = vmatpush.msra.mxu0 %v1495
    %1603 = vmatpush.msra.mxu0 %v1494
    %1604 = vmatpush.msra.mxu0 %v1493
    %1605 = vmatpush.msra.mxu0 %v1492
    %1606 = vmatpush.msra.mxu0 %v1491
    %1607 = vmatpush.msra.mxu0 %v1490
    %1608 = vmatpush.msra.mxu0 %v1489
    %1609 = vmatpush.msra.mxu0 %v1488
    %1610 = vmatpush.msra.mxu0 %v1487
    %1611 = vmatpush.msra.mxu0 %v1486
    %1612 = vmatmul.f32.gmra.mxu0 %v1444
    %v1613 = vpop.f32.mrf.mxu0
    %v1614 = vadd.f32 %v1591, %v1613
    %1615 = vmatmul.f32.gmra.mxu0 %v1450
    %v1616 = vpop.f32.mrf.mxu0
    %v1617 = vadd.f32 %v1594, %v1616
    %1618 = vdwg.mxu0
    %1619 = vmatpush.msra.mxu0 %v1517
    %1620 = vmatpush.msra.mxu0 %v1516
    %1621 = vmatpush.msra.mxu0 %v1515
    %1622 = vmatpush.msra.mxu0 %v1514
    %1623 = vmatpush.msra.mxu0 %v1513
    %1624 = vmatpush.msra.mxu0 %v1512
    %1625 = vmatpush.msra.mxu0 %v1511
    %1626 = vmatpush.msra.mxu0 %v1510
    %1627 = vmatpush.msra.mxu0 %v1509
    %1628 = vmatpush.msra.mxu0 %v1508
    %1629 = vmatpush.msra.mxu0 %v1507
    %1630 = vmatpush.msra.mxu0 %v1506
    %1631 = vmatpush.msra.mxu0 %v1505
    %1632 = vmatpush.msra.mxu0 %v1504
    %1633 = vmatpush.msra.mxu0 %v1503
    %1634 = vmatpush.msra.mxu0 %v1502
    %1635 = vmatmul.f32.gmra.mxu0 %v1445
    %v1636 = vpop.f32.mrf.mxu0
    %v1637 = vadd.f32 %v1614, %v1636
    %1638 = vmatmul.f32.gmra.mxu0 %v1451
    %v1639 = vpop.f32.mrf.mxu0
    %v1640 = vadd.f32 %v1617, %v1639
    %1641 = vdwg.mxu0
    %1642 = vmatpush.msra.mxu0 %v1533
    %1643 = vmatpush.msra.mxu0 %v1532
    %1644 = vmatpush.msra.mxu0 %v1531
    %1645 = vmatpush.msra.mxu0 %v1530
    %1646 = vmatpush.msra.mxu0 %v1529
    %1647 = vmatpush.msra.mxu0 %v1528
    %1648 = vmatpush.msra.mxu0 %v1527
    %1649 = vmatpush.msra.mxu0 %v1526
    %1650 = vmatpush.msra.mxu0 %v1525
    %1651 = vmatpush.msra.mxu0 %v1524
    %1652 = vmatpush.msra.mxu0 %v1523
    %1653 = vmatpush.msra.mxu0 %v1522
    %1654 = vmatpush.msra.mxu0 %v1521
    %1655 = vmatpush.msra.mxu0 %v1520
    %1656 = vmatpush.msra.mxu0 %v1519
    %1657 = vmatpush.msra.mxu0 %v1518
    %1658 = vmatmul.f32.gmra.mxu0 %v1446
    %v1659 = vpop.f32.mrf.mxu0
    %v1660 = vadd.f32 %v1637, %v1659
    %1661 = vmatmul.f32.gmra.mxu0 %v1452
    %v1662 = vpop.f32.mrf.mxu0
    %v1663 = vadd.f32 %v1640, %v1662
    %1664 = vdwg.mxu0
    %1665 = vmatpush.msra.mxu0 %v1549
    %1666 = vmatpush.msra.mxu0 %v1548
    %1667 = vmatpush.msra.mxu0 %v1547
    %1668 = vmatpush.msra.mxu0 %v1546
    %1669 = vmatpush.msra.mxu0 %v1545
    %1670 = vmatpush.msra.mxu0 %v1544
    %1671 = vmatpush.msra.mxu0 %v1543
    %1672 = vmatpush.msra.mxu0 %v1542
    %1673 = vmatpush.msra.mxu0 %v1541
    %1674 = vmatpush.msra.mxu0 %v1540
    %1675 = vmatpush.msra.mxu0 %v1539
    %1676 = vmatpush.msra.mxu0 %v1538
    %1677 = vmatpush.msra.mxu0 %v1537
    %1678 = vmatpush.msra.mxu0 %v1536
    %1679 = vmatpush.msra.mxu0 %v1535
    %1680 = vmatpush.msra.mxu0 %v1534
    %1681 = vmatmul.f32.gmra.mxu0 %v1447
    %v1682 = vpop.f32.mrf.mxu0
    %v1683 = vadd.f32 %v1660, %v1682
    %1684 = vmatmul.f32.gmra.mxu0 %v1453
    %v1685 = vpop.f32.mrf.mxu0
    %v1686 = vadd.f32 %v1663, %v1685
    %1687 = vdwg.mxu0
    %v1688 = vmul.f32 %v1683, %v1683
    %v1689 = vmul.f32 %v1686, %v1686
    %vm1690 = vcmask 244736
    %v1691 = vsel %vm1690, %v1688, 0.0
    %1692 = vadd.xlane.f32.xlu0 %v1691
    %v1693 = vpop.xlane.xlu0 %1692
    %v1694 = vsel %vm1690, %v1689, 0.0
    %1695 = vadd.xlane.f32.xlu0 %v1694
    %v1696 = vpop.xlane.xlu0 %1695
    %v1697 = vadd.f32 %v1693, %v1696
    %v1698 = vrot.slane %v1697, 4
    %v1699 = vadd.f32 %v1697, %v1698
    %v1700 = vrot.slane %v1699, 2
    %v1701 = vadd.f32 %v1699, %v1700
    %v1702 = vrot.slane %v1701, 1
    %v1703 = vadd.f32 %v1701, %v1702
    %v1704 = vrsqrt.pop %v1703
    %v1705 = vmul.f32 %v1704, %v1703
    %v1706 = vmul.f32 %v1705, %v1704
    %v1707 = vmul.f32 0.5, %v1706
    %v1708 = vsub.f32 1.5, %v1707
    %v1709 = vmul.f32 %v1704, %v1708
    %v1710 = vmul.f32 %v1703, %v1709
    %vm1711 = vcmp.eq.f32.partialorder %v1703, inf
    %v1712 = vsel %vm1711, %v1703, %v1710
    %vm1713 = vcmp.eq.f32.partialorder %v1703, 0.0
    %v1714 = vand.u32 %v1703, 2147483648
    %v1715 = vsel %vm1713, %v1714, %v1712
    %v1716 = vadd.f32 %v1715, 1e-12
    %v1717 = vrsqrt.pop %v1716
    %v1718 = vmul.f32 %v1717, %v1716
    %v1719 = vmul.f32 %v1718, %v1717
    %v1720 = vmul.f32 0.5, %v1719
    %v1721 = vsub.f32 1.5, %v1720
    %v1722 = vmul.f32 %v1717, %v1721
    %vm1723 = vweird.f32 %v1716
    %vm1724 = vweird.f32 %v1717
    %vm1725 = vmor %vm1723, %vm1724
    %v1726 = vsel %vm1725, %v1717, %v1722
    %v1727 = vmul.f32 %v1683, %v1726
    %v1729 = vsel %vm1690, %v1727, 0
    %1731 = vmatpush.xpose.msra.mxu0 0.0
    %1732 = vmatpush.xpose.msra.mxu0 0.0
    %1733 = vmatpush.xpose.msra.mxu0 0.0
    %1734 = vmatpush.xpose.msra.mxu0 0.0
    %1735 = vmatpush.xpose.msra.mxu0 0.0
    %1736 = vmatpush.xpose.msra.mxu0 0.0
    %1737 = vmatpush.xpose.msra.mxu0 0.0
    %1738 = vmatpush.xpose.msra.mxu0 0.0
    %1739 = vmatpush.xpose.msra.mxu0 0.0
    %1740 = vmatpush.xpose.msra.mxu0 0.0
    %1741 = vmatpush.xpose.msra.mxu0 0.0
    %1742 = vmatpush.xpose.msra.mxu0 0.0
    %1743 = vmatpush.xpose.msra.mxu0 0.0
    %1744 = vmatpush.xpose.msra.mxu0 0.0
    %1745 = vmatpush.xpose.msra.mxu0 0.0
    %1746 = vmatpush.xpose.msra.mxu0 %v1729
    %1747 = vmatmul.f32.gmra.mxu0 %v1729
    %v1748 = vpop.f32.mrf.mxu0
    %v1749 = vadd.f32 0.0, %v1748
    %1750 = vdwg.mxu0
    %v1751 = vmax.f32 %v1749, 0.0
    %v1753 = vsel %vm1690, %v1437, 0
    %1755 = vmatpush.xpose.msra.mxu0 0.0
    %1756 = vmatpush.xpose.msra.mxu0 0.0
    %1757 = vmatpush.xpose.msra.mxu0 0.0
    %1758 = vmatpush.xpose.msra.mxu0 0.0
    %1759 = vmatpush.xpose.msra.mxu0 0.0
    %1760 = vmatpush.xpose.msra.mxu0 0.0
    %1761 = vmatpush.xpose.msra.mxu0 0.0
    %1762 = vmatpush.xpose.msra.mxu0 0.0
    %1763 = vmatpush.xpose.msra.mxu0 0.0
    %1764 = vmatpush.xpose.msra.mxu0 0.0
    %1765 = vmatpush.xpose.msra.mxu0 0.0
    %1766 = vmatpush.xpose.msra.mxu0 0.0
    %1767 = vmatpush.xpose.msra.mxu0 0.0
    %1768 = vmatpush.xpose.msra.mxu0 0.0
    %1769 = vmatpush.xpose.msra.mxu0 0.0
    %1770 = vmatpush.xpose.msra.mxu0 %v1753
    %1771 = vmatmul.f32.gmra.mxu0 %v1753
    %v1772 = vpop.f32.mrf.mxu0
    %v1773 = vadd.f32 0.0, %v1772
    %1774 = vdwg.mxu0
    %v1775 = vmax.f32 %v1773, 0.0
    %v1776 = vstv %s104
    %v1777 = vmul.f32 %v1776, %v1751
    %v1778 = vstv %s105
    %v1779 = vmul.f32 %v1778, %v1775
    %v1780 = vadd.f32 %v1777, %v1779
    %v1781 = vstv %s106
    %v1782 = vadd.f32 %v1780, %v1781
    %v1783 = vmax.f32 %v1782, 0.0
    %vm1784 = vcmask 64512
    %1785 = vst.msk [vmem:[#allocation12] sm:$0xff] %vm1784, %v1751
    %1786 = vst.msk [vmem:[#allocation13] sm:$0xff] %vm1784, %v1783
    %v1787 = vld [vmem:[%s8] sm:$0xff]
    %v1788 = vadd.f32 %v1782, %v1787
    %v1789 = vsel %vm1784, %v1788, -inf
    %1790 = vmax.xlane.f32.xlu0 %v1789
    %v1791 = vpop.xlane.xlu0 %1790
    %v1792 = vsub.f32 %v1788, %v1791
    %v1793 = vmul.f32 %v1792, 1.442695
    %v1794 = vpow.pop %v1793
    %v1795 = vsel %vm1784, %v1794, 0.0
    %1796 = vadd.xlane.f32.xlu0 %v1795
    %v1797 = vpop.xlane.xlu0 %1796
    %v1798 = vrcp.pop %v1797
    %v1799 = vmul.f32 %v1797, %v1798
    %v1800 = vsub.f32 1.0, %v1799
    %v1801 = vmul.f32 %v1798, %v1800
    %v1802 = vadd.f32 %v1798, %v1801
    %vm1803 = vweird.f32 %v1797
    %vm1804 = vweird.f32 %v1798
    %vm1805 = vmor %vm1803, %vm1804
    %v1806 = vsel %vm1805, %v1798, %v1802
    %v1807 = vand.u32 2147483647, %v1797
    %vm1808 = vcmp.eq.f32.partialorder %v1807, 8.507059e+37
    %v1809 = vand.u32 %v1797, 2147483648
    %v1810 = vor.u32 1.1754944e-38, %v1809
    %v1811 = vsel %vm1808, %v1810, %v1806
    %v1812 = vmul.f32 %v1794, %v1811
    %v1813 = vld [vmem:[%s7] sm:$0xff]
    %v1814 = vld [vmem:[%s7 + $0x8] sm:$0xff]
    %v1815 = vld [vmem:[%s7 + $0x10] sm:$0xff]
    %v1816 = vld [vmem:[%s7 + $0x18] sm:$0xff]
    %v1817 = vld [vmem:[%s7 + $0x20] sm:$0xff]
    %v1818 = vld [vmem:[%s7 + $0x28] sm:$0xff]
    %v1820 = vsel %vm1784, %v1812, 0
    %1822 = vmatpush.msra.mxu0 0.0
    %1823 = vmatpush.msra.mxu0 0.0
    %1824 = vmatpush.msra.mxu0 0.0
    %1825 = vmatpush.msra.mxu0 0.0
    %1826 = vmatpush.msra.mxu0 0.0
    %1827 = vmatpush.msra.mxu0 0.0
    %1828 = vmatpush.msra.mxu0 0.0
    %1829 = vmatpush.msra.mxu0 0.0
    %1830 = vmatpush.msra.mxu0 0.0
    %1831 = vmatpush.msra.mxu0 0.0
    %1832 = vmatpush.msra.mxu0 0.0
    %1833 = vmatpush.msra.mxu0 0.0
    %1834 = vmatpush.msra.mxu0 0.0
    %1835 = vmatpush.msra.mxu0 0.0
    %1836 = vmatpush.msra.mxu0 0.0
    %1837 = vmatpush.msra.mxu0 %v1813
    %1838 = vmatmul.f32.gmra.mxu0 %v1820
    %v1839 = vpop.f32.mrf.mxu0
    %v1840 = vadd.f32 %v1813, %v1839
    %1841 = vdwg.mxu0
    %1842 = vmatpush.msra.mxu0 0.0
    %1843 = vmatpush.msra.mxu0 0.0
    %1844 = vmatpush.msra.mxu0 0.0
    %1845 = vmatpush.msra.mxu0 0.0
    %1846 = vmatpush.msra.mxu0 0.0
    %1847 = vmatpush.msra.mxu0 0.0
    %1848 = vmatpush.msra.mxu0 0.0
    %1849 = vmatpush.msra.mxu0 0.0
    %1850 = vmatpush.msra.mxu0 0.0
    %1851 = vmatpush.msra.mxu0 0.0
    %1852 = vmatpush.msra.mxu0 0.0
    %1853 = vmatpush.msra.mxu0 0.0
    %1854 = vmatpush.msra.mxu0 0.0
    %1855 = vmatpush.msra.mxu0 0.0
    %1856 = vmatpush.msra.mxu0 0.0
    %1857 = vmatpush.msra.mxu0 %v1814
    %1858 = vmatmul.f32.gmra.mxu0 %v1820
    %v1859 = vpop.f32.mrf.mxu0
    %v1860 = vadd.f32 %v1814, %v1859
    %1861 = vdwg.mxu0
    %1862 = vmatpush.msra.mxu0 0.0
    %1863 = vmatpush.msra.mxu0 0.0
    %1864 = vmatpush.msra.mxu0 0.0
    %1865 = vmatpush.msra.mxu0 0.0
    %1866 = vmatpush.msra.mxu0 0.0
    %1867 = vmatpush.msra.mxu0 0.0
    %1868 = vmatpush.msra.mxu0 0.0
    %1869 = vmatpush.msra.mxu0 0.0
    %1870 = vmatpush.msra.mxu0 0.0
    %1871 = vmatpush.msra.mxu0 0.0
    %1872 = vmatpush.msra.mxu0 0.0
    %1873 = vmatpush.msra.mxu0 0.0
    %1874 = vmatpush.msra.mxu0 0.0
    %1875 = vmatpush.msra.mxu0 0.0
    %1876 = vmatpush.msra.mxu0 0.0
    %1877 = vmatpush.msra.mxu0 %v1815
    %1878 = vmatmul.f32.gmra.mxu0 %v1820
    %v1879 = vpop.f32.mrf.mxu0
    %v1880 = vadd.f32 %v1815, %v1879
    %1881 = vdwg.mxu0
    %1882 = vmatpush.msra.mxu0 0.0
    %1883 = vmatpush.msra.mxu0 0.0
    %1884 = vmatpush.msra.mxu0 0.0
    %1885 = vmatpush.msra.mxu0 0.0
    %1886 = vmatpush.msra.mxu0 0.0
    %1887 = vmatpush.msra.mxu0 0.0
    %1888 = vmatpush.msra.mxu0 0.0
    %1889 = vmatpush.msra.mxu0 0.0
    %1890 = vmatpush.msra.mxu0 0.0
    %1891 = vmatpush.msra.mxu0 0.0
    %1892 = vmatpush.msra.mxu0 0.0
    %1893 = vmatpush.msra.mxu0 0.0
    %1894 = vmatpush.msra.mxu0 0.0
    %1895 = vmatpush.msra.mxu0 0.0
    %1896 = vmatpush.msra.mxu0 0.0
    %1897 = vmatpush.msra.mxu0 %v1816
    %1898 = vmatmul.f32.gmra.mxu0 %v1820
    %v1899 = vpop.f32.mrf.mxu0
    %v1900 = vadd.f32 %v1816, %v1899
    %1901 = vdwg.mxu0
    %1902 = vmatpush.msra.mxu0 0.0
    %1903 = vmatpush.msra.mxu0 0.0
    %1904 = vmatpush.msra.mxu0 0.0
    %1905 = vmatpush.msra.mxu0 0.0
    %1906 = vmatpush.msra.mxu0 0.0
    %1907 = vmatpush.msra.mxu0 0.0
    %1908 = vmatpush.msra.mxu0 0.0
    %1909 = vmatpush.msra.mxu0 0.0
    %1910 = vmatpush.msra.mxu0 0.0
    %1911 = vmatpush.msra.mxu0 0.0
    %1912 = vmatpush.msra.mxu0 0.0
    %1913 = vmatpush.msra.mxu0 0.0
    %1914 = vmatpush.msra.mxu0 0.0
    %1915 = vmatpush.msra.mxu0 0.0
    %1916 = vmatpush.msra.mxu0 0.0
    %1917 = vmatpush.msra.mxu0 %v1817
    %1918 = vmatmul.f32.gmra.mxu0 %v1820
    %v1919 = vpop.f32.mrf.mxu0
    %v1920 = vadd.f32 %v1817, %v1919
    %1921 = vdwg.mxu0
    %1922 = vmatpush.msra.mxu0 0.0
    %1923 = vmatpush.msra.mxu0 0.0
    %1924 = vmatpush.msra.mxu0 0.0
    %1925 = vmatpush.msra.mxu0 0.0
    %1926 = vmatpush.msra.mxu0 0.0
    %1927 = vmatpush.msra.mxu0 0.0
    %1928 = vmatpush.msra.mxu0 0.0
    %1929 = vmatpush.msra.mxu0 0.0
    %1930 = vmatpush.msra.mxu0 0.0
    %1931 = vmatpush.msra.mxu0 0.0
    %1932 = vmatpush.msra.mxu0 0.0
    %1933 = vmatpush.msra.mxu0 0.0
    %1934 = vmatpush.msra.mxu0 0.0
    %1935 = vmatpush.msra.mxu0 0.0
    %1936 = vmatpush.msra.mxu0 0.0
    %1937 = vmatpush.msra.mxu0 %v1818
    %1938 = vmatmul.f32.gmra.mxu0 %v1820
    %v1939 = vpop.f32.mrf.mxu0
    %v1940 = vadd.f32 %v1818, %v1939
    %1941 = vdwg.mxu0
    %v1942 = vmul.f32 %v1686, %v1726
    %v1944 = vsel %vm1690, %v1942, 0
    %1946 = vmatpush.xpose.msra.mxu0 0.0
    %1947 = vmatpush.xpose.msra.mxu0 0.0
    %1948 = vmatpush.xpose.msra.mxu0 0.0
    %1949 = vmatpush.xpose.msra.mxu0 0.0
    %1950 = vmatpush.xpose.msra.mxu0 0.0
    %1951 = vmatpush.xpose.msra.mxu0 0.0
    %1952 = vmatpush.xpose.msra.mxu0 0.0
    %1953 = vmatpush.xpose.msra.mxu0 0.0
    %1954 = vmatpush.xpose.msra.mxu0 0.0
    %1955 = vmatpush.xpose.msra.mxu0 0.0
    %1956 = vmatpush.xpose.msra.mxu0 0.0
    %1957 = vmatpush.xpose.msra.mxu0 0.0
    %1958 = vmatpush.xpose.msra.mxu0 0.0
    %1959 = vmatpush.xpose.msra.mxu0 0.0
    %1960 = vmatpush.xpose.msra.mxu0 0.0
    %1961 = vmatpush.xpose.msra.mxu0 %v1944
    %1962 = vmatmul.f32.gmra.mxu0 %v1944
    %v1963 = vpop.f32.mrf.mxu0
    %v1964 = vadd.f32 0.0, %v1963
    %1965 = vdwg.mxu0
    %v1966 = vmax.f32 %v1964, 0.0
    %v1968 = vsel %vm1690, %v1440, 0
    %1970 = vmatpush.xpose.msra.mxu0 0.0
    %1971 = vmatpush.xpose.msra.mxu0 0.0
    %1972 = vmatpush.xpose.msra.mxu0 0.0
    %1973 = vmatpush.xpose.msra.mxu0 0.0
    %1974 = vmatpush.xpose.msra.mxu0 0.0
    %1975 = vmatpush.xpose.msra.mxu0 0.0
    %1976 = vmatpush.xpose.msra.mxu0 0.0
    %1977 = vmatpush.xpose.msra.mxu0 0.0
    %1978 = vmatpush.xpose.msra.mxu0 0.0
    %1979 = vmatpush.xpose.msra.mxu0 0.0
    %1980 = vmatpush.xpose.msra.mxu0 0.0
    %1981 = vmatpush.xpose.msra.mxu0 0.0
    %1982 = vmatpush.xpose.msra.mxu0 0.0
    %1983 = vmatpush.xpose.msra.mxu0 0.0
    %1984 = vmatpush.xpose.msra.mxu0 0.0
    %1985 = vmatpush.xpose.msra.mxu0 %v1968
    %1986 = vmatmul.f32.gmra.mxu0 %v1968
    %v1987 = vpop.f32.mrf.mxu0
    %v1988 = vadd.f32 0.0, %v1987
    %1989 = vdwg.mxu0
    %v1990 = vmax.f32 %v1988, 0.0
    %v1991 = vmul.f32 %v1776, %v1966
    %v1992 = vmul.f32 %v1778, %v1990
    %v1993 = vadd.f32 %v1991, %v1992
    %v1994 = vadd.f32 %v1993, %v1781
    %v1995 = vmax.f32 %v1994, 0.0
    %s1996 = scalar_lea.vmem [#allocation12], 8
    %1997 = vst.msk [vmem:[%s1996] sm:$0xff] %vm1784, %v1966
    %s1998 = scalar_lea.vmem [#allocation13], 8
    %1999 = vst.msk [vmem:[%s1998] sm:$0xff] %vm1784, %v1995
    %s2000 = scalar_lea.vmem %s8, 8
    %v2001 = vld [vmem:[%s2000] sm:$0xff]
    %v2002 = vadd.f32 %v1994, %v2001
    %v2003 = vsel %vm1784, %v2002, -inf
    %2004 = vmax.xlane.f32.xlu0 %v2003
    %v2005 = vpop.xlane.xlu0 %2004
    %v2006 = vsub.f32 %v2002, %v2005
    %v2007 = vmul.f32 %v2006, 1.442695
    %v2008 = vpow.pop %v2007
    %v2009 = vsel %vm1784, %v2008, 0.0
    %2010 = vadd.xlane.f32.xlu0 %v2009
    %v2011 = vpop.xlane.xlu0 %2010
    %v2012 = vrcp.pop %v2011
    %v2013 = vmul.f32 %v2011, %v2012
    %v2014 = vsub.f32 1.0, %v2013
    %v2015 = vmul.f32 %v2012, %v2014
    %v2016 = vadd.f32 %v2012, %v2015
    %vm2017 = vweird.f32 %v2011
    %vm2018 = vweird.f32 %v2012
    %vm2019 = vmor %vm2017, %vm2018
    %v2020 = vsel %vm2019, %v2012, %v2016
    %v2021 = vand.u32 2147483647, %v2011
    %vm2022 = vcmp.eq.f32.partialorder %v2021, 8.507059e+37
    %v2023 = vand.u32 %v2011, 2147483648
    %v2024 = vor.u32 1.1754944e-38, %v2023
    %v2025 = vsel %vm2022, %v2024, %v2020
    %v2026 = vmul.f32 %v2008, %v2025
    %v2027 = vld [vmem:[%s7 + $0x30] sm:$0xff]
    %v2028 = vld [vmem:[%s7 + $0x38] sm:$0xff]
    %v2029 = vld [vmem:[%s7 + $0x40] sm:$0xff]
    %v2030 = vld [vmem:[%s7 + $0x48] sm:$0xff]
    %v2031 = vld [vmem:[%s7 + $0x50] sm:$0xff]
    %v2032 = vld [vmem:[%s7 + $0x58] sm:$0xff]
    %v2034 = vsel %vm1784, %v2026, 0
    %2036 = vmatpush.msra.mxu0 0.0
    %2037 = vmatpush.msra.mxu0 0.0
    %2038 = vmatpush.msra.mxu0 0.0
    %2039 = vmatpush.msra.mxu0 0.0
    %2040 = vmatpush.msra.mxu0 0.0
    %2041 = vmatpush.msra.mxu0 0.0
    %2042 = vmatpush.msra.mxu0 0.0
    %2043 = vmatpush.msra.mxu0 0.0
    %2044 = vmatpush.msra.mxu0 0.0
    %2045 = vmatpush.msra.mxu0 0.0
    %2046 = vmatpush.msra.mxu0 0.0
    %2047 = vmatpush.msra.mxu0 0.0
    %2048 = vmatpush.msra.mxu0 0.0
    %2049 = vmatpush.msra.mxu0 0.0
    %2050 = vmatpush.msra.mxu0 0.0
    %2051 = vmatpush.msra.mxu0 %v2027
    %2052 = vmatmul.f32.gmra.mxu0 %v2034
    %v2053 = vpop.f32.mrf.mxu0
    %v2054 = vadd.f32 %v2027, %v2053
    %2055 = vdwg.mxu0
    %2056 = vmatpush.msra.mxu0 0.0
    %2057 = vmatpush.msra.mxu0 0.0
    %2058 = vmatpush.msra.mxu0 0.0
    %2059 = vmatpush.msra.mxu0 0.0
    %2060 = vmatpush.msra.mxu0 0.0
    %2061 = vmatpush.msra.mxu0 0.0
    %2062 = vmatpush.msra.mxu0 0.0
    %2063 = vmatpush.msra.mxu0 0.0
    %2064 = vmatpush.msra.mxu0 0.0
    %2065 = vmatpush.msra.mxu0 0.0
    %2066 = vmatpush.msra.mxu0 0.0
    %2067 = vmatpush.msra.mxu0 0.0
    %2068 = vmatpush.msra.mxu0 0.0
    %2069 = vmatpush.msra.mxu0 0.0
    %2070 = vmatpush.msra.mxu0 0.0
    %2071 = vmatpush.msra.mxu0 %v2028
    %2072 = vmatmul.f32.gmra.mxu0 %v2034
    %v2073 = vpop.f32.mrf.mxu0
    %v2074 = vadd.f32 %v2028, %v2073
    %2075 = vdwg.mxu0
    %2076 = vmatpush.msra.mxu0 0.0
    %2077 = vmatpush.msra.mxu0 0.0
    %2078 = vmatpush.msra.mxu0 0.0
    %2079 = vmatpush.msra.mxu0 0.0
    %2080 = vmatpush.msra.mxu0 0.0
    %2081 = vmatpush.msra.mxu0 0.0
    %2082 = vmatpush.msra.mxu0 0.0
    %2083 = vmatpush.msra.mxu0 0.0
    %2084 = vmatpush.msra.mxu0 0.0
    %2085 = vmatpush.msra.mxu0 0.0
    %2086 = vmatpush.msra.mxu0 0.0
    %2087 = vmatpush.msra.mxu0 0.0
    %2088 = vmatpush.msra.mxu0 0.0
    %2089 = vmatpush.msra.mxu0 0.0
    %2090 = vmatpush.msra.mxu0 0.0
    %2091 = vmatpush.msra.mxu0 %v2029
    %2092 = vmatmul.f32.gmra.mxu0 %v2034
    %v2093 = vpop.f32.mrf.mxu0
    %v2094 = vadd.f32 %v2029, %v2093
    %2095 = vdwg.mxu0
    %2096 = vmatpush.msra.mxu0 0.0
    %2097 = vmatpush.msra.mxu0 0.0
    %2098 = vmatpush.msra.mxu0 0.0
    %2099 = vmatpush.msra.mxu0 0.0
    %2100 = vmatpush.msra.mxu0 0.0
    %2101 = vmatpush.msra.mxu0 0.0
    %2102 = vmatpush.msra.mxu0 0.0
    %2103 = vmatpush.msra.mxu0 0.0
    %2104 = vmatpush.msra.mxu0 0.0
    %2105 = vmatpush.msra.mxu0 0.0
    %2106 = vmatpush.msra.mxu0 0.0
    %2107 = vmatpush.msra.mxu0 0.0
    %2108 = vmatpush.msra.mxu0 0.0
    %2109 = vmatpush.msra.mxu0 0.0
    %2110 = vmatpush.msra.mxu0 0.0
    %2111 = vmatpush.msra.mxu0 %v2030
    %2112 = vmatmul.f32.gmra.mxu0 %v2034
    %v2113 = vpop.f32.mrf.mxu0
    %v2114 = vadd.f32 %v2030, %v2113
    %2115 = vdwg.mxu0
    %2116 = vmatpush.msra.mxu0 0.0
    %2117 = vmatpush.msra.mxu0 0.0
    %2118 = vmatpush.msra.mxu0 0.0
    %2119 = vmatpush.msra.mxu0 0.0
    %2120 = vmatpush.msra.mxu0 0.0
    %2121 = vmatpush.msra.mxu0 0.0
    %2122 = vmatpush.msra.mxu0 0.0
    %2123 = vmatpush.msra.mxu0 0.0
    %2124 = vmatpush.msra.mxu0 0.0
    %2125 = vmatpush.msra.mxu0 0.0
    %2126 = vmatpush.msra.mxu0 0.0
    %2127 = vmatpush.msra.mxu0 0.0
    %2128 = vmatpush.msra.mxu0 0.0
    %2129 = vmatpush.msra.mxu0 0.0
    %2130 = vmatpush.msra.mxu0 0.0
    %2131 = vmatpush.msra.mxu0 %v2031
    %2132 = vmatmul.f32.gmra.mxu0 %v2034
    %v2133 = vpop.f32.mrf.mxu0
    %v2134 = vadd.f32 %v2031, %v2133
    %2135 = vdwg.mxu0
    %2136 = vmatpush.msra.mxu0 0.0
    %2137 = vmatpush.msra.mxu0 0.0
    %2138 = vmatpush.msra.mxu0 0.0
    %2139 = vmatpush.msra.mxu0 0.0
    %2140 = vmatpush.msra.mxu0 0.0
    %2141 = vmatpush.msra.mxu0 0.0
    %2142 = vmatpush.msra.mxu0 0.0
    %2143 = vmatpush.msra.mxu0 0.0
    %2144 = vmatpush.msra.mxu0 0.0
    %2145 = vmatpush.msra.mxu0 0.0
    %2146 = vmatpush.msra.mxu0 0.0
    %2147 = vmatpush.msra.mxu0 0.0
    %2148 = vmatpush.msra.mxu0 0.0
    %2149 = vmatpush.msra.mxu0 0.0
    %2150 = vmatpush.msra.mxu0 0.0
    %2151 = vmatpush.msra.mxu0 %v2032
    %2152 = vmatmul.f32.gmra.mxu0 %v2034
    %v2153 = vpop.f32.mrf.mxu0
    %v2154 = vadd.f32 %v2032, %v2153
    %2155 = vdwg.mxu0
    %v2156 = vpack.c.bf16 %v2054, %v1840
    %v2157 = vpack.c.bf16 %v2074, %v1860
    %v2158 = vpack.c.bf16 %v2094, %v1880
    %v2159 = vpack.c.bf16 %v2114, %v1900
    %v2160 = vpack.c.bf16 %v2134, %v1920
    %v2161 = vpack.c.bf16 %v2154, %v1940
    %s2162 = smul.u32 4, 96
    %s2163 = smul.u32 %s2162, 6
    %s2164 = sshll.u32 %s2163, 4
    %2165 = dma.done [#allocation3], %s2164
    %v2166 = vld [vmem:[#allocation2] sm:$0xff]
    %v2167 = vld [vmem:[#allocation2 + $0x8] sm:$0xff]
    %v2168 = vld [vmem:[#allocation2 + $0x10] sm:$0xff]
    %v2169 = vld [vmem:[#allocation2 + $0x18] sm:$0xff]
    %v2170 = vld [vmem:[#allocation2 + $0x20] sm:$0xff]
    %v2171 = vld [vmem:[#allocation2 + $0x28] sm:$0xff]
    %v2172 = vld [vmem:[#allocation2 + $0x30] sm:$0xff]
    %v2173 = vld [vmem:[#allocation2 + $0x38] sm:$0xff]
    %v2174 = vld [vmem:[#allocation2 + $0x40] sm:$0xff]
    %v2175 = vld [vmem:[#allocation2 + $0x48] sm:$0xff]
    %v2176 = vld [vmem:[#allocation2 + $0x50] sm:$0xff]
    %v2177 = vld [vmem:[#allocation2 + $0x58] sm:$0xff]
    %v2178 = vld [vmem:[#allocation2 + $0x60] sm:$0xff]
    %v2179 = vld [vmem:[#allocation2 + $0x68] sm:$0xff]
    %v2180 = vld [vmem:[#allocation2 + $0x70] sm:$0xff]
    %v2181 = vld [vmem:[#allocation2 + $0x78] sm:$0xff]
    %v2182 = vld [vmem:[#allocation2 + $0x80] sm:$0xff]
    %v2183 = vld [vmem:[#allocation2 + $0x88] sm:$0xff]
    %v2184 = vld [vmem:[#allocation2 + $0x90] sm:$0xff]
    %v2185 = vld [vmem:[#allocation2 + $0x98] sm:$0xff]
    %v2186 = vld [vmem:[#allocation2 + $0xa0] sm:$0xff]
    %v2187 = vld [vmem:[#allocation2 + $0xa8] sm:$0xff]
    %v2188 = vld [vmem:[#allocation2 + $0xb0] sm:$0xff]
    %v2189 = vld [vmem:[#allocation2 + $0xb8] sm:$0xff]
    %v2190 = vld [vmem:[#allocation2 + $0xc0] sm:$0xff]
    %v2191 = vld [vmem:[#allocation2 + $0xc8] sm:$0xff]
    %v2192 = vld [vmem:[#allocation2 + $0xd0] sm:$0xff]
    %v2193 = vld [vmem:[#allocation2 + $0xd8] sm:$0xff]
    %v2194 = vld [vmem:[#allocation2 + $0xe0] sm:$0xff]
    %v2195 = vld [vmem:[#allocation2 + $0xe8] sm:$0xff]
    %v2196 = vld [vmem:[#allocation2 + $0xf0] sm:$0xff]
    %v2197 = vld [vmem:[#allocation2 + $0xf8] sm:$0xff]
    %v2198 = vld [vmem:[#allocation2 + $0x100] sm:$0xff]
    %v2199 = vld [vmem:[#allocation2 + $0x108] sm:$0xff]
    %v2200 = vld [vmem:[#allocation2 + $0x110] sm:$0xff]
    %v2201 = vld [vmem:[#allocation2 + $0x118] sm:$0xff]
    %v2202 = vld [vmem:[#allocation2 + $0x120] sm:$0xff]
    %v2203 = vld [vmem:[#allocation2 + $0x128] sm:$0xff]
    %v2204 = vld [vmem:[#allocation2 + $0x130] sm:$0xff]
    %v2205 = vld [vmem:[#allocation2 + $0x138] sm:$0xff]
    %v2206 = vld [vmem:[#allocation2 + $0x140] sm:$0xff]
    %v2207 = vld [vmem:[#allocation2 + $0x148] sm:$0xff]
    %v2208 = vld [vmem:[#allocation2 + $0x150] sm:$0xff]
    %v2209 = vld [vmem:[#allocation2 + $0x158] sm:$0xff]
    %v2210 = vld [vmem:[#allocation2 + $0x160] sm:$0xff]
    %v2211 = vld [vmem:[#allocation2 + $0x168] sm:$0xff]
    %v2212 = vld [vmem:[#allocation2 + $0x170] sm:$0xff]
    %v2213 = vld [vmem:[#allocation2 + $0x178] sm:$0xff]
    %v2214 = vld [vmem:[#allocation2 + $0x180] sm:$0xff]
    %v2215 = vld [vmem:[#allocation2 + $0x188] sm:$0xff]
    %v2216 = vld [vmem:[#allocation2 + $0x190] sm:$0xff]
    %v2217 = vld [vmem:[#allocation2 + $0x198] sm:$0xff]
    %v2218 = vld [vmem:[#allocation2 + $0x1a0] sm:$0xff]
    %v2219 = vld [vmem:[#allocation2 + $0x1a8] sm:$0xff]
    %v2220 = vld [vmem:[#allocation2 + $0x1b0] sm:$0xff]
    %v2221 = vld [vmem:[#allocation2 + $0x1b8] sm:$0xff]
    %v2222 = vld [vmem:[#allocation2 + $0x1c0] sm:$0xff]
    %v2223 = vld [vmem:[#allocation2 + $0x1c8] sm:$0xff]
    %v2224 = vld [vmem:[#allocation2 + $0x1d0] sm:$0xff]
    %v2225 = vld [vmem:[#allocation2 + $0x1d8] sm:$0xff]
    %v2226 = vld [vmem:[#allocation2 + $0x1e0] sm:$0xff]
    %v2227 = vld [vmem:[#allocation2 + $0x1e8] sm:$0xff]
    %v2228 = vld [vmem:[#allocation2 + $0x1f0] sm:$0xff]
    %v2229 = vld [vmem:[#allocation2 + $0x1f8] sm:$0xff]
    %v2230 = vld [vmem:[#allocation2 + $0x200] sm:$0xff]
    %v2231 = vld [vmem:[#allocation2 + $0x208] sm:$0xff]
    %v2232 = vld [vmem:[#allocation2 + $0x210] sm:$0xff]
    %v2233 = vld [vmem:[#allocation2 + $0x218] sm:$0xff]
    %v2234 = vld [vmem:[#allocation2 + $0x220] sm:$0xff]
    %v2235 = vld [vmem:[#allocation2 + $0x228] sm:$0xff]
    %v2236 = vld [vmem:[#allocation2 + $0x230] sm:$0xff]
    %v2237 = vld [vmem:[#allocation2 + $0x238] sm:$0xff]
    %v2238 = vld [vmem:[#allocation2 + $0x240] sm:$0xff]
    %v2239 = vld [vmem:[#allocation2 + $0x248] sm:$0xff]
    %v2240 = vld [vmem:[#allocation2 + $0x250] sm:$0xff]
    %v2241 = vld [vmem:[#allocation2 + $0x258] sm:$0xff]
    %v2242 = vld [vmem:[#allocation2 + $0x260] sm:$0xff]
    %v2243 = vld [vmem:[#allocation2 + $0x268] sm:$0xff]
    %v2244 = vld [vmem:[#allocation2 + $0x270] sm:$0xff]
    %v2245 = vld [vmem:[#allocation2 + $0x278] sm:$0xff]
    %v2246 = vld [vmem:[#allocation2 + $0x280] sm:$0xff]
    %v2247 = vld [vmem:[#allocation2 + $0x288] sm:$0xff]
    %v2248 = vld [vmem:[#allocation2 + $0x290] sm:$0xff]
    %v2249 = vld [vmem:[#allocation2 + $0x298] sm:$0xff]
    %v2250 = vld [vmem:[#allocation2 + $0x2a0] sm:$0xff]
    %v2251 = vld [vmem:[#allocation2 + $0x2a8] sm:$0xff]
    %v2252 = vld [vmem:[#allocation2 + $0x2b0] sm:$0xff]
    %v2253 = vld [vmem:[#allocation2 + $0x2b8] sm:$0xff]
    %v2254 = vld [vmem:[#allocation2 + $0x2c0] sm:$0xff]
    %v2255 = vld [vmem:[#allocation2 + $0x2c8] sm:$0xff]
    %v2256 = vld [vmem:[#allocation2 + $0x2d0] sm:$0xff]
    %v2257 = vld [vmem:[#allocation2 + $0x2d8] sm:$0xff]
    %v2258 = vld [vmem:[#allocation2 + $0x2e0] sm:$0xff]
    %v2259 = vld [vmem:[#allocation2 + $0x2e8] sm:$0xff]
    %v2260 = vld [vmem:[#allocation2 + $0x2f0] sm:$0xff]
    %v2261 = vld [vmem:[#allocation2 + $0x2f8] sm:$0xff]
    %v2262 = vld [vmem:[#allocation2 + $0x300] sm:$0xff]
    %v2263 = vld [vmem:[#allocation2 + $0x308] sm:$0xff]
    %v2264 = vld [vmem:[#allocation2 + $0x310] sm:$0xff]
    %v2265 = vld [vmem:[#allocation2 + $0x318] sm:$0xff]
    %v2266 = vld [vmem:[#allocation2 + $0x320] sm:$0xff]
    %v2267 = vld [vmem:[#allocation2 + $0x328] sm:$0xff]
    %v2268 = vld [vmem:[#allocation2 + $0x330] sm:$0xff]
    %v2269 = vld [vmem:[#allocation2 + $0x338] sm:$0xff]
    %v2270 = vld [vmem:[#allocation2 + $0x340] sm:$0xff]
    %v2271 = vld [vmem:[#allocation2 + $0x348] sm:$0xff]
    %v2272 = vld [vmem:[#allocation2 + $0x350] sm:$0xff]
    %v2273 = vld [vmem:[#allocation2 + $0x358] sm:$0xff]
    %v2274 = vld [vmem:[#allocation2 + $0x360] sm:$0xff]
    %v2275 = vld [vmem:[#allocation2 + $0x368] sm:$0xff]
    %v2276 = vld [vmem:[#allocation2 + $0x370] sm:$0xff]
    %v2277 = vld [vmem:[#allocation2 + $0x378] sm:$0xff]
    %v2278 = vld [vmem:[#allocation2 + $0x380] sm:$0xff]
    %v2279 = vld [vmem:[#allocation2 + $0x388] sm:$0xff]
    %v2280 = vld [vmem:[#allocation2 + $0x390] sm:$0xff]
    %v2281 = vld [vmem:[#allocation2 + $0x398] sm:$0xff]
    %v2282 = vld [vmem:[#allocation2 + $0x3a0] sm:$0xff]
    %v2283 = vld [vmem:[#allocation2 + $0x3a8] sm:$0xff]
    %v2284 = vld [vmem:[#allocation2 + $0x3b0] sm:$0xff]
    %v2285 = vld [vmem:[#allocation2 + $0x3b8] sm:$0xff]
    %v2286 = vld [vmem:[#allocation2 + $0x3c0] sm:$0xff]
    %v2287 = vld [vmem:[#allocation2 + $0x3c8] sm:$0xff]
    %v2288 = vld [vmem:[#allocation2 + $0x3d0] sm:$0xff]
    %v2289 = vld [vmem:[#allocation2 + $0x3d8] sm:$0xff]
    %v2290 = vld [vmem:[#allocation2 + $0x3e0] sm:$0xff]
    %v2291 = vld [vmem:[#allocation2 + $0x3e8] sm:$0xff]
    %v2292 = vld [vmem:[#allocation2 + $0x3f0] sm:$0xff]
    %v2293 = vld [vmem:[#allocation2 + $0x3f8] sm:$0xff]
    %v2294 = vld [vmem:[#allocation2 + $0x400] sm:$0xff]
    %v2295 = vld [vmem:[#allocation2 + $0x408] sm:$0xff]
    %v2296 = vld [vmem:[#allocation2 + $0x410] sm:$0xff]
    %v2297 = vld [vmem:[#allocation2 + $0x418] sm:$0xff]
    %v2298 = vld [vmem:[#allocation2 + $0x420] sm:$0xff]
    %v2299 = vld [vmem:[#allocation2 + $0x428] sm:$0xff]
    %v2300 = vld [vmem:[#allocation2 + $0x430] sm:$0xff]
    %v2301 = vld [vmem:[#allocation2 + $0x438] sm:$0xff]
    %v2302 = vld [vmem:[#allocation2 + $0x440] sm:$0xff]
    %v2303 = vld [vmem:[#allocation2 + $0x448] sm:$0xff]
    %v2304 = vld [vmem:[#allocation2 + $0x450] sm:$0xff]
    %v2305 = vld [vmem:[#allocation2 + $0x458] sm:$0xff]
    %v2306 = vld [vmem:[#allocation2 + $0x460] sm:$0xff]
    %v2307 = vld [vmem:[#allocation2 + $0x468] sm:$0xff]
    %v2308 = vld [vmem:[#allocation2 + $0x470] sm:$0xff]
    %v2309 = vld [vmem:[#allocation2 + $0x478] sm:$0xff]
    %v2310 = vld [vmem:[#allocation2 + $0x480] sm:$0xff]
    %v2311 = vld [vmem:[#allocation2 + $0x488] sm:$0xff]
    %v2312 = vld [vmem:[#allocation2 + $0x490] sm:$0xff]
    %v2313 = vld [vmem:[#allocation2 + $0x498] sm:$0xff]
    %v2314 = vld [vmem:[#allocation2 + $0x4a0] sm:$0xff]
    %v2315 = vld [vmem:[#allocation2 + $0x4a8] sm:$0xff]
    %v2316 = vld [vmem:[#allocation2 + $0x4b0] sm:$0xff]
    %v2317 = vld [vmem:[#allocation2 + $0x4b8] sm:$0xff]
    %v2318 = vld [vmem:[#allocation2 + $0x4c0] sm:$0xff]
    %v2319 = vld [vmem:[#allocation2 + $0x4c8] sm:$0xff]
    %v2320 = vld [vmem:[#allocation2 + $0x4d0] sm:$0xff]
    %v2321 = vld [vmem:[#allocation2 + $0x4d8] sm:$0xff]
    %v2322 = vld [vmem:[#allocation2 + $0x4e0] sm:$0xff]
    %v2323 = vld [vmem:[#allocation2 + $0x4e8] sm:$0xff]
    %v2324 = vld [vmem:[#allocation2 + $0x4f0] sm:$0xff]
    %v2325 = vld [vmem:[#allocation2 + $0x4f8] sm:$0xff]
    %v2326 = vld [vmem:[#allocation2 + $0x500] sm:$0xff]
    %v2327 = vld [vmem:[#allocation2 + $0x508] sm:$0xff]
    %v2328 = vld [vmem:[#allocation2 + $0x510] sm:$0xff]
    %v2329 = vld [vmem:[#allocation2 + $0x518] sm:$0xff]
    %v2330 = vld [vmem:[#allocation2 + $0x520] sm:$0xff]
    %v2331 = vld [vmem:[#allocation2 + $0x528] sm:$0xff]
    %v2332 = vld [vmem:[#allocation2 + $0x530] sm:$0xff]
    %v2333 = vld [vmem:[#allocation2 + $0x538] sm:$0xff]
    %v2334 = vld [vmem:[#allocation2 + $0x540] sm:$0xff]
    %v2335 = vld [vmem:[#allocation2 + $0x548] sm:$0xff]
    %v2336 = vld [vmem:[#allocation2 + $0x550] sm:$0xff]
    %v2337 = vld [vmem:[#allocation2 + $0x558] sm:$0xff]
    %v2338 = vld [vmem:[#allocation2 + $0x560] sm:$0xff]
    %v2339 = vld [vmem:[#allocation2 + $0x568] sm:$0xff]
    %v2340 = vld [vmem:[#allocation2 + $0x570] sm:$0xff]
    %v2341 = vld [vmem:[#allocation2 + $0x578] sm:$0xff]
    %v2342 = vld [vmem:[#allocation2 + $0x580] sm:$0xff]
    %v2343 = vld [vmem:[#allocation2 + $0x588] sm:$0xff]
    %v2344 = vld [vmem:[#allocation2 + $0x590] sm:$0xff]
    %v2345 = vld [vmem:[#allocation2 + $0x598] sm:$0xff]
    %v2346 = vld [vmem:[#allocation2 + $0x5a0] sm:$0xff]
    %v2347 = vld [vmem:[#allocation2 + $0x5a8] sm:$0xff]
    %v2348 = vld [vmem:[#allocation2 + $0x5b0] sm:$0xff]
    %v2349 = vld [vmem:[#allocation2 + $0x5b8] sm:$0xff]
    %v2350 = vld [vmem:[#allocation2 + $0x5c0] sm:$0xff]
    %v2351 = vld [vmem:[#allocation2 + $0x5c8] sm:$0xff]
    %v2352 = vld [vmem:[#allocation2 + $0x5d0] sm:$0xff]
    %v2353 = vld [vmem:[#allocation2 + $0x5d8] sm:$0xff]
    %v2354 = vld [vmem:[#allocation2 + $0x5e0] sm:$0xff]
    %v2355 = vld [vmem:[#allocation2 + $0x5e8] sm:$0xff]
    %v2356 = vld [vmem:[#allocation2 + $0x5f0] sm:$0xff]
    %v2357 = vld [vmem:[#allocation2 + $0x5f8] sm:$0xff]
    %v2358 = vld [vmem:[#allocation2 + $0x600] sm:$0xff]
    %v2359 = vld [vmem:[#allocation2 + $0x608] sm:$0xff]
    %v2360 = vld [vmem:[#allocation2 + $0x610] sm:$0xff]
    %v2361 = vld [vmem:[#allocation2 + $0x618] sm:$0xff]
    %v2362 = vld [vmem:[#allocation2 + $0x620] sm:$0xff]
    %v2363 = vld [vmem:[#allocation2 + $0x628] sm:$0xff]
    %v2364 = vld [vmem:[#allocation2 + $0x630] sm:$0xff]
    %v2365 = vld [vmem:[#allocation2 + $0x638] sm:$0xff]
    %v2366 = vld [vmem:[#allocation2 + $0x640] sm:$0xff]
    %v2367 = vld [vmem:[#allocation2 + $0x648] sm:$0xff]
    %v2368 = vld [vmem:[#allocation2 + $0x650] sm:$0xff]
    %v2369 = vld [vmem:[#allocation2 + $0x658] sm:$0xff]
    %v2370 = vld [vmem:[#allocation2 + $0x660] sm:$0xff]
    %v2371 = vld [vmem:[#allocation2 + $0x668] sm:$0xff]
    %v2372 = vld [vmem:[#allocation2 + $0x670] sm:$0xff]
    %v2373 = vld [vmem:[#allocation2 + $0x678] sm:$0xff]
    %v2374 = vld [vmem:[#allocation2 + $0x680] sm:$0xff]
    %v2375 = vld [vmem:[#allocation2 + $0x688] sm:$0xff]
    %v2376 = vld [vmem:[#allocation2 + $0x690] sm:$0xff]
    %v2377 = vld [vmem:[#allocation2 + $0x698] sm:$0xff]
    %v2378 = vld [vmem:[#allocation2 + $0x6a0] sm:$0xff]
    %v2379 = vld [vmem:[#allocation2 + $0x6a8] sm:$0xff]
    %v2380 = vld [vmem:[#allocation2 + $0x6b0] sm:$0xff]
    %v2381 = vld [vmem:[#allocation2 + $0x6b8] sm:$0xff]
    %v2382 = vld [vmem:[#allocation2 + $0x6c0] sm:$0xff]
    %v2383 = vld [vmem:[#allocation2 + $0x6c8] sm:$0xff]
    %v2384 = vld [vmem:[#allocation2 + $0x6d0] sm:$0xff]
    %v2385 = vld [vmem:[#allocation2 + $0x6d8] sm:$0xff]
    %v2386 = vld [vmem:[#allocation2 + $0x6e0] sm:$0xff]
    %v2387 = vld [vmem:[#allocation2 + $0x6e8] sm:$0xff]
    %v2388 = vld [vmem:[#allocation2 + $0x6f0] sm:$0xff]
    %v2389 = vld [vmem:[#allocation2 + $0x6f8] sm:$0xff]
    %v2390 = vld [vmem:[#allocation2 + $0x700] sm:$0xff]
    %v2391 = vld [vmem:[#allocation2 + $0x708] sm:$0xff]
    %v2392 = vld [vmem:[#allocation2 + $0x710] sm:$0xff]
    %v2393 = vld [vmem:[#allocation2 + $0x718] sm:$0xff]
    %v2394 = vld [vmem:[#allocation2 + $0x720] sm:$0xff]
    %v2395 = vld [vmem:[#allocation2 + $0x728] sm:$0xff]
    %v2396 = vld [vmem:[#allocation2 + $0x730] sm:$0xff]
    %v2397 = vld [vmem:[#allocation2 + $0x738] sm:$0xff]
    %v2398 = vld [vmem:[#allocation2 + $0x740] sm:$0xff]
    %v2399 = vld [vmem:[#allocation2 + $0x748] sm:$0xff]
    %v2400 = vld [vmem:[#allocation2 + $0x750] sm:$0xff]
    %v2401 = vld [vmem:[#allocation2 + $0x758] sm:$0xff]
    %v2402 = vld [vmem:[#allocation2 + $0x760] sm:$0xff]
    %v2403 = vld [vmem:[#allocation2 + $0x768] sm:$0xff]
    %v2404 = vld [vmem:[#allocation2 + $0x770] sm:$0xff]
    %v2405 = vld [vmem:[#allocation2 + $0x778] sm:$0xff]
    %v2406 = vld [vmem:[#allocation2 + $0x780] sm:$0xff]
    %v2407 = vld [vmem:[#allocation2 + $0x788] sm:$0xff]
    %v2408 = vld [vmem:[#allocation2 + $0x790] sm:$0xff]
    %v2409 = vld [vmem:[#allocation2 + $0x798] sm:$0xff]
    %v2410 = vld [vmem:[#allocation2 + $0x7a0] sm:$0xff]
    %v2411 = vld [vmem:[#allocation2 + $0x7a8] sm:$0xff]
    %v2412 = vld [vmem:[#allocation2 + $0x7b0] sm:$0xff]
    %v2413 = vld [vmem:[#allocation2 + $0x7b8] sm:$0xff]
    %v2414 = vld [vmem:[#allocation2 + $0x7c0] sm:$0xff]
    %v2415 = vld [vmem:[#allocation2 + $0x7c8] sm:$0xff]
    %v2416 = vld [vmem:[#allocation2 + $0x7d0] sm:$0xff]
    %v2417 = vld [vmem:[#allocation2 + $0x7d8] sm:$0xff]
    %v2418 = vld [vmem:[#allocation2 + $0x7e0] sm:$0xff]
    %v2419 = vld [vmem:[#allocation2 + $0x7e8] sm:$0xff]
    %v2420 = vld [vmem:[#allocation2 + $0x7f0] sm:$0xff]
    %v2421 = vld [vmem:[#allocation2 + $0x7f8] sm:$0xff]
    %v2422 = vld [vmem:[#allocation2 + $0x800] sm:$0xff]
    %v2423 = vld [vmem:[#allocation2 + $0x808] sm:$0xff]
    %v2424 = vld [vmem:[#allocation2 + $0x810] sm:$0xff]
    %v2425 = vld [vmem:[#allocation2 + $0x818] sm:$0xff]
    %v2426 = vld [vmem:[#allocation2 + $0x820] sm:$0xff]
    %v2427 = vld [vmem:[#allocation2 + $0x828] sm:$0xff]
    %v2428 = vld [vmem:[#allocation2 + $0x830] sm:$0xff]
    %v2429 = vld [vmem:[#allocation2 + $0x838] sm:$0xff]
    %v2430 = vld [vmem:[#allocation2 + $0x840] sm:$0xff]
    %v2431 = vld [vmem:[#allocation2 + $0x848] sm:$0xff]
    %v2432 = vld [vmem:[#allocation2 + $0x850] sm:$0xff]
    %v2433 = vld [vmem:[#allocation2 + $0x858] sm:$0xff]
    %v2434 = vld [vmem:[#allocation2 + $0x860] sm:$0xff]
    %v2435 = vld [vmem:[#allocation2 + $0x868] sm:$0xff]
    %v2436 = vld [vmem:[#allocation2 + $0x870] sm:$0xff]
    %v2437 = vld [vmem:[#allocation2 + $0x878] sm:$0xff]
    %v2438 = vld [vmem:[#allocation2 + $0x880] sm:$0xff]
    %v2439 = vld [vmem:[#allocation2 + $0x888] sm:$0xff]
    %v2440 = vld [vmem:[#allocation2 + $0x890] sm:$0xff]
    %v2441 = vld [vmem:[#allocation2 + $0x898] sm:$0xff]
    %v2442 = vld [vmem:[#allocation2 + $0x8a0] sm:$0xff]
    %v2443 = vld [vmem:[#allocation2 + $0x8a8] sm:$0xff]
    %v2444 = vld [vmem:[#allocation2 + $0x8b0] sm:$0xff]
    %v2445 = vld [vmem:[#allocation2 + $0x8b8] sm:$0xff]
    %v2446 = vld [vmem:[#allocation2 + $0x8c0] sm:$0xff]
    %v2447 = vld [vmem:[#allocation2 + $0x8c8] sm:$0xff]
    %v2448 = vld [vmem:[#allocation2 + $0x8d0] sm:$0xff]
    %v2449 = vld [vmem:[#allocation2 + $0x8d8] sm:$0xff]
    %v2450 = vld [vmem:[#allocation2 + $0x8e0] sm:$0xff]
    %v2451 = vld [vmem:[#allocation2 + $0x8e8] sm:$0xff]
    %v2452 = vld [vmem:[#allocation2 + $0x8f0] sm:$0xff]
    %v2453 = vld [vmem:[#allocation2 + $0x8f8] sm:$0xff]
    %v2454 = vld [vmem:[%s10] ss:$4 sm:$0x3f]
    %v2456 = vperm.slane %v2454, 0
    %v2457 = vperm.slane %v2454, 1
    %v2458 = vperm.slane %v2454, 2
    %v2459 = vperm.slane %v2454, 3
    %v2460 = vperm.slane %v2454, 4
    %v2461 = vperm.slane %v2454, 5
    %v2756 = vunpack.c.l.b16 %v2166
    %v2757 = vunpack.c.h.b16 %v2166
    %v2758 = vunpack.c.l.b16 %v2167
    %v2759 = vunpack.c.h.b16 %v2167
    %v2760 = vunpack.c.l.b16 %v2168
    %v2761 = vunpack.c.h.b16 %v2168
    %v2762 = vunpack.c.l.b16 %v2169
    %v2763 = vunpack.c.h.b16 %v2169
    %v2764 = vunpack.c.l.b16 %v2170
    %v2765 = vunpack.c.h.b16 %v2170
    %v2766 = vunpack.c.l.b16 %v2171
    %v2767 = vunpack.c.h.b16 %v2171
    %v2768 = vunpack.c.l.b16 %v2172
    %v2769 = vunpack.c.h.b16 %v2172
    %v2770 = vunpack.c.l.b16 %v2173
    %v2771 = vunpack.c.h.b16 %v2173
    %v2772 = vunpack.c.l.b16 %v2174
    %v2773 = vunpack.c.h.b16 %v2174
    %v2774 = vunpack.c.l.b16 %v2175
    %v2775 = vunpack.c.h.b16 %v2175
    %v2776 = vunpack.c.l.b16 %v2176
    %v2777 = vunpack.c.h.b16 %v2176
    %v2778 = vunpack.c.l.b16 %v2177
    %v2779 = vunpack.c.h.b16 %v2177
    %v2780 = vunpack.c.l.b16 %v2178
    %v2781 = vunpack.c.h.b16 %v2178
    %v2782 = vunpack.c.l.b16 %v2179
    %v2783 = vunpack.c.h.b16 %v2179
    %v2784 = vunpack.c.l.b16 %v2180
    %v2785 = vunpack.c.h.b16 %v2180
    %v2786 = vunpack.c.l.b16 %v2181
    %v2787 = vunpack.c.h.b16 %v2181
    %v2788 = vunpack.c.l.b16 %v2182
    %v2789 = vunpack.c.h.b16 %v2182
    %v2790 = vunpack.c.l.b16 %v2183
    %v2791 = vunpack.c.h.b16 %v2183
    %v2792 = vunpack.c.l.b16 %v2184
    %v2793 = vunpack.c.h.b16 %v2184
    %v2794 = vunpack.c.l.b16 %v2185
    %v2795 = vunpack.c.h.b16 %v2185
    %v2796 = vunpack.c.l.b16 %v2186
    %v2797 = vunpack.c.h.b16 %v2186
    %v2798 = vunpack.c.l.b16 %v2187
    %v2799 = vunpack.c.h.b16 %v2187
    %v2800 = vunpack.c.l.b16 %v2188
    %v2801 = vunpack.c.h.b16 %v2188
    %v2802 = vunpack.c.l.b16 %v2189
    %v2803 = vunpack.c.h.b16 %v2189
    %v2804 = vunpack.c.l.b16 %v2190
    %v2805 = vunpack.c.h.b16 %v2190
    %v2806 = vunpack.c.l.b16 %v2191
    %v2807 = vunpack.c.h.b16 %v2191
    %v2808 = vunpack.c.l.b16 %v2192
    %v2809 = vunpack.c.h.b16 %v2192
    %v2810 = vunpack.c.l.b16 %v2193
    %v2811 = vunpack.c.h.b16 %v2193
    %v2812 = vunpack.c.l.b16 %v2194
    %v2813 = vunpack.c.h.b16 %v2194
    %v2814 = vunpack.c.l.b16 %v2195
    %v2815 = vunpack.c.h.b16 %v2195
    %v2816 = vunpack.c.l.b16 %v2196
    %v2817 = vunpack.c.h.b16 %v2196
    %v2818 = vunpack.c.l.b16 %v2197
    %v2819 = vunpack.c.h.b16 %v2197
    %v2820 = vunpack.c.l.b16 %v2198
    %v2821 = vunpack.c.h.b16 %v2198
    %v2822 = vunpack.c.l.b16 %v2199
    %v2823 = vunpack.c.h.b16 %v2199
    %v2824 = vunpack.c.l.b16 %v2200
    %v2825 = vunpack.c.h.b16 %v2200
    %v2826 = vunpack.c.l.b16 %v2201
    %v2827 = vunpack.c.h.b16 %v2201
    %v2828 = vunpack.c.l.b16 %v2202
    %v2829 = vunpack.c.h.b16 %v2202
    %v2830 = vunpack.c.l.b16 %v2203
    %v2831 = vunpack.c.h.b16 %v2203
    %v2832 = vunpack.c.l.b16 %v2204
    %v2833 = vunpack.c.h.b16 %v2204
    %v2834 = vunpack.c.l.b16 %v2205
    %v2835 = vunpack.c.h.b16 %v2205
    %v2836 = vunpack.c.l.b16 %v2206
    %v2837 = vunpack.c.h.b16 %v2206
    %v2838 = vunpack.c.l.b16 %v2207
    %v2839 = vunpack.c.h.b16 %v2207
    %v2840 = vunpack.c.l.b16 %v2208
    %v2841 = vunpack.c.h.b16 %v2208
    %v2842 = vunpack.c.l.b16 %v2209
    %v2843 = vunpack.c.h.b16 %v2209
    %v2844 = vunpack.c.l.b16 %v2210
    %v2845 = vunpack.c.h.b16 %v2210
    %v2846 = vunpack.c.l.b16 %v2211
    %v2847 = vunpack.c.h.b16 %v2211
    %v2848 = vunpack.c.l.b16 %v2212
    %v2849 = vunpack.c.h.b16 %v2212
    %v2850 = vunpack.c.l.b16 %v2213
    %v2851 = vunpack.c.h.b16 %v2213
    %v2852 = vunpack.c.l.b16 %v2214
    %v2853 = vunpack.c.h.b16 %v2214
    %v2854 = vunpack.c.l.b16 %v2215
    %v2855 = vunpack.c.h.b16 %v2215
    %v2856 = vunpack.c.l.b16 %v2216
    %v2857 = vunpack.c.h.b16 %v2216
    %v2858 = vunpack.c.l.b16 %v2217
    %v2859 = vunpack.c.h.b16 %v2217
    %v2860 = vunpack.c.l.b16 %v2218
    %v2861 = vunpack.c.h.b16 %v2218
    %v2862 = vunpack.c.l.b16 %v2219
    %v2863 = vunpack.c.h.b16 %v2219
    %v2864 = vunpack.c.l.b16 %v2220
    %v2865 = vunpack.c.h.b16 %v2220
    %v2866 = vunpack.c.l.b16 %v2221
    %v2867 = vunpack.c.h.b16 %v2221
    %v2868 = vunpack.c.l.b16 %v2222
    %v2869 = vunpack.c.h.b16 %v2222
    %v2870 = vunpack.c.l.b16 %v2223
    %v2871 = vunpack.c.h.b16 %v2223
    %v2872 = vunpack.c.l.b16 %v2224
    %v2873 = vunpack.c.h.b16 %v2224
    %v2874 = vunpack.c.l.b16 %v2225
    %v2875 = vunpack.c.h.b16 %v2225
    %v2876 = vunpack.c.l.b16 %v2226
    %v2877 = vunpack.c.h.b16 %v2226
    %v2878 = vunpack.c.l.b16 %v2227
    %v2879 = vunpack.c.h.b16 %v2227
    %v2880 = vunpack.c.l.b16 %v2228
    %v2881 = vunpack.c.h.b16 %v2228
    %v2882 = vunpack.c.l.b16 %v2229
    %v2883 = vunpack.c.h.b16 %v2229
    %v2884 = vunpack.c.l.b16 %v2230
    %v2885 = vunpack.c.h.b16 %v2230
    %v2886 = vunpack.c.l.b16 %v2231
    %v2887 = vunpack.c.h.b16 %v2231
    %v2888 = vunpack.c.l.b16 %v2232
    %v2889 = vunpack.c.h.b16 %v2232
    %v2890 = vunpack.c.l.b16 %v2233
    %v2891 = vunpack.c.h.b16 %v2233
    %v2892 = vunpack.c.l.b16 %v2234
    %v2893 = vunpack.c.h.b16 %v2234
    %v2894 = vunpack.c.l.b16 %v2235
    %v2895 = vunpack.c.h.b16 %v2235
    %v2896 = vunpack.c.l.b16 %v2236
    %v2897 = vunpack.c.h.b16 %v2236
    %v2898 = vunpack.c.l.b16 %v2237
    %v2899 = vunpack.c.h.b16 %v2237
    %v2900 = vunpack.c.l.b16 %v2238
    %v2901 = vunpack.c.h.b16 %v2238
    %v2902 = vunpack.c.l.b16 %v2239
    %v2903 = vunpack.c.h.b16 %v2239
    %v2904 = vunpack.c.l.b16 %v2240
    %v2905 = vunpack.c.h.b16 %v2240
    %v2906 = vunpack.c.l.b16 %v2241
    %v2907 = vunpack.c.h.b16 %v2241
    %v2908 = vunpack.c.l.b16 %v2242
    %v2909 = vunpack.c.h.b16 %v2242
    %v2910 = vunpack.c.l.b16 %v2243
    %v2911 = vunpack.c.h.b16 %v2243
    %v2912 = vunpack.c.l.b16 %v2244
    %v2913 = vunpack.c.h.b16 %v2244
    %v2914 = vunpack.c.l.b16 %v2245
    %v2915 = vunpack.c.h.b16 %v2245
    %v2916 = vunpack.c.l.b16 %v2246
    %v2917 = vunpack.c.h.b16 %v2246
    %v2918 = vunpack.c.l.b16 %v2247
    %v2919 = vunpack.c.h.b16 %v2247
    %v2920 = vunpack.c.l.b16 %v2248
    %v2921 = vunpack.c.h.b16 %v2248
    %v2922 = vunpack.c.l.b16 %v2249
    %v2923 = vunpack.c.h.b16 %v2249
    %v2924 = vunpack.c.l.b16 %v2250
    %v2925 = vunpack.c.h.b16 %v2250
    %v2926 = vunpack.c.l.b16 %v2251
    %v2927 = vunpack.c.h.b16 %v2251
    %v2928 = vunpack.c.l.b16 %v2252
    %v2929 = vunpack.c.h.b16 %v2252
    %v2930 = vunpack.c.l.b16 %v2253
    %v2931 = vunpack.c.h.b16 %v2253
    %v2932 = vunpack.c.l.b16 %v2254
    %v2933 = vunpack.c.h.b16 %v2254
    %v2934 = vunpack.c.l.b16 %v2255
    %v2935 = vunpack.c.h.b16 %v2255
    %v2936 = vunpack.c.l.b16 %v2256
    %v2937 = vunpack.c.h.b16 %v2256
    %v2938 = vunpack.c.l.b16 %v2257
    %v2939 = vunpack.c.h.b16 %v2257
    %v2940 = vunpack.c.l.b16 %v2258
    %v2941 = vunpack.c.h.b16 %v2258
    %v2942 = vunpack.c.l.b16 %v2259
    %v2943 = vunpack.c.h.b16 %v2259
    %v2944 = vunpack.c.l.b16 %v2260
    %v2945 = vunpack.c.h.b16 %v2260
    %v2946 = vunpack.c.l.b16 %v2261
    %v2947 = vunpack.c.h.b16 %v2261
    %v2948 = vunpack.c.l.b16 %v2262
    %v2949 = vunpack.c.h.b16 %v2262
    %v2950 = vunpack.c.l.b16 %v2263
    %v2951 = vunpack.c.h.b16 %v2263
    %v2952 = vunpack.c.l.b16 %v2264
    %v2953 = vunpack.c.h.b16 %v2264
    %v2954 = vunpack.c.l.b16 %v2265
    %v2955 = vunpack.c.h.b16 %v2265
    %v2956 = vunpack.c.l.b16 %v2266
    %v2957 = vunpack.c.h.b16 %v2266
    %v2958 = vunpack.c.l.b16 %v2267
    %v2959 = vunpack.c.h.b16 %v2267
    %v2960 = vunpack.c.l.b16 %v2268
    %v2961 = vunpack.c.h.b16 %v2268
    %v2962 = vunpack.c.l.b16 %v2269
    %v2963 = vunpack.c.h.b16 %v2269
    %v2964 = vunpack.c.l.b16 %v2270
    %v2965 = vunpack.c.h.b16 %v2270
    %v2966 = vunpack.c.l.b16 %v2271
    %v2967 = vunpack.c.h.b16 %v2271
    %v2968 = vunpack.c.l.b16 %v2272
    %v2969 = vunpack.c.h.b16 %v2272
    %v2970 = vunpack.c.l.b16 %v2273
    %v2971 = vunpack.c.h.b16 %v2273
    %v2972 = vunpack.c.l.b16 %v2274
    %v2973 = vunpack.c.h.b16 %v2274
    %v2974 = vunpack.c.l.b16 %v2275
    %v2975 = vunpack.c.h.b16 %v2275
    %v2976 = vunpack.c.l.b16 %v2276
    %v2977 = vunpack.c.h.b16 %v2276
    %v2978 = vunpack.c.l.b16 %v2277
    %v2979 = vunpack.c.h.b16 %v2277
    %v2980 = vunpack.c.l.b16 %v2278
    %v2981 = vunpack.c.h.b16 %v2278
    %v2982 = vunpack.c.l.b16 %v2279
    %v2983 = vunpack.c.h.b16 %v2279
    %v2984 = vunpack.c.l.b16 %v2280
    %v2985 = vunpack.c.h.b16 %v2280
    %v2986 = vunpack.c.l.b16 %v2281
    %v2987 = vunpack.c.h.b16 %v2281
    %v2988 = vunpack.c.l.b16 %v2282
    %v2989 = vunpack.c.h.b16 %v2282
    %v2990 = vunpack.c.l.b16 %v2283
    %v2991 = vunpack.c.h.b16 %v2283
    %v2992 = vunpack.c.l.b16 %v2284
    %v2993 = vunpack.c.h.b16 %v2284
    %v2994 = vunpack.c.l.b16 %v2285
    %v2995 = vunpack.c.h.b16 %v2285
    %v2996 = vunpack.c.l.b16 %v2286
    %v2997 = vunpack.c.h.b16 %v2286
    %v2998 = vunpack.c.l.b16 %v2287
    %v2999 = vunpack.c.h.b16 %v2287
    %v3000 = vunpack.c.l.b16 %v2288
    %v3001 = vunpack.c.h.b16 %v2288
    %v3002 = vunpack.c.l.b16 %v2289
    %v3003 = vunpack.c.h.b16 %v2289
    %v3004 = vunpack.c.l.b16 %v2290
    %v3005 = vunpack.c.h.b16 %v2290
    %v3006 = vunpack.c.l.b16 %v2291
    %v3007 = vunpack.c.h.b16 %v2291
    %v3008 = vunpack.c.l.b16 %v2292
    %v3009 = vunpack.c.h.b16 %v2292
    %v3010 = vunpack.c.l.b16 %v2293
    %v3011 = vunpack.c.h.b16 %v2293
    %v3012 = vunpack.c.l.b16 %v2294
    %v3013 = vunpack.c.h.b16 %v2294
    %v3014 = vunpack.c.l.b16 %v2295
    %v3015 = vunpack.c.h.b16 %v2295
    %v3016 = vunpack.c.l.b16 %v2296
    %v3017 = vunpack.c.h.b16 %v2296
    %v3018 = vunpack.c.l.b16 %v2297
    %v3019 = vunpack.c.h.b16 %v2297
    %v3020 = vunpack.c.l.b16 %v2298
    %v3021 = vunpack.c.h.b16 %v2298
    %v3022 = vunpack.c.l.b16 %v2299
    %v3023 = vunpack.c.h.b16 %v2299
    %v3024 = vunpack.c.l.b16 %v2300
    %v3025 = vunpack.c.h.b16 %v2300
    %v3026 = vunpack.c.l.b16 %v2301
    %v3027 = vunpack.c.h.b16 %v2301
    %v3028 = vunpack.c.l.b16 %v2302
    %v3029 = vunpack.c.h.b16 %v2302
    %v3030 = vunpack.c.l.b16 %v2303
    %v3031 = vunpack.c.h.b16 %v2303
    %v3032 = vunpack.c.l.b16 %v2304
    %v3033 = vunpack.c.h.b16 %v2304
    %v3034 = vunpack.c.l.b16 %v2305
    %v3035 = vunpack.c.h.b16 %v2305
    %v3036 = vunpack.c.l.b16 %v2306
    %v3037 = vunpack.c.h.b16 %v2306
    %v3038 = vunpack.c.l.b16 %v2307
    %v3039 = vunpack.c.h.b16 %v2307
    %v3040 = vunpack.c.l.b16 %v2308
    %v3041 = vunpack.c.h.b16 %v2308
    %v3042 = vunpack.c.l.b16 %v2309
    %v3043 = vunpack.c.h.b16 %v2309
    %v3044 = vunpack.c.l.b16 %v2310
    %v3045 = vunpack.c.h.b16 %v2310
    %v3046 = vunpack.c.l.b16 %v2311
    %v3047 = vunpack.c.h.b16 %v2311
    %v3048 = vunpack.c.l.b16 %v2312
    %v3049 = vunpack.c.h.b16 %v2312
    %v3050 = vunpack.c.l.b16 %v2313
    %v3051 = vunpack.c.h.b16 %v2313
    %v3052 = vunpack.c.l.b16 %v2314
    %v3053 = vunpack.c.h.b16 %v2314
    %v3054 = vunpack.c.l.b16 %v2315
    %v3055 = vunpack.c.h.b16 %v2315
    %v3056 = vunpack.c.l.b16 %v2316
    %v3057 = vunpack.c.h.b16 %v2316
    %v3058 = vunpack.c.l.b16 %v2317
    %v3059 = vunpack.c.h.b16 %v2317
    %v3060 = vunpack.c.l.b16 %v2318
    %v3061 = vunpack.c.h.b16 %v2318
    %v3062 = vunpack.c.l.b16 %v2319
    %v3063 = vunpack.c.h.b16 %v2319
    %v3064 = vunpack.c.l.b16 %v2320
    %v3065 = vunpack.c.h.b16 %v2320
    %v3066 = vunpack.c.l.b16 %v2321
    %v3067 = vunpack.c.h.b16 %v2321
    %v3068 = vunpack.c.l.b16 %v2322
    %v3069 = vunpack.c.h.b16 %v2322
    %v3070 = vunpack.c.l.b16 %v2323
    %v3071 = vunpack.c.h.b16 %v2323
    %v3072 = vunpack.c.l.b16 %v2324
    %v3073 = vunpack.c.h.b16 %v2324
    %v3074 = vunpack.c.l.b16 %v2325
    %v3075 = vunpack.c.h.b16 %v2325
    %v3076 = vunpack.c.l.b16 %v2326
    %v3077 = vunpack.c.h.b16 %v2326
    %v3078 = vunpack.c.l.b16 %v2327
    %v3079 = vunpack.c.h.b16 %v2327
    %v3080 = vunpack.c.l.b16 %v2328
    %v3081 = vunpack.c.h.b16 %v2328
    %v3082 = vunpack.c.l.b16 %v2329
    %v3083 = vunpack.c.h.b16 %v2329
    %v3084 = vunpack.c.l.b16 %v2330
    %v3085 = vunpack.c.h.b16 %v2330
    %v3086 = vunpack.c.l.b16 %v2331
    %v3087 = vunpack.c.h.b16 %v2331
    %v3088 = vunpack.c.l.b16 %v2332
    %v3089 = vunpack.c.h.b16 %v2332
    %v3090 = vunpack.c.l.b16 %v2333
    %v3091 = vunpack.c.h.b16 %v2333
    %v3092 = vunpack.c.l.b16 %v2334
    %v3093 = vunpack.c.h.b16 %v2334
    %v3094 = vunpack.c.l.b16 %v2335
    %v3095 = vunpack.c.h.b16 %v2335
    %v3096 = vunpack.c.l.b16 %v2336
    %v3097 = vunpack.c.h.b16 %v2336
    %v3098 = vunpack.c.l.b16 %v2337
    %v3099 = vunpack.c.h.b16 %v2337
    %v3100 = vunpack.c.l.b16 %v2338
    %v3101 = vunpack.c.h.b16 %v2338
    %v3102 = vunpack.c.l.b16 %v2339
    %v3103 = vunpack.c.h.b16 %v2339
    %v3104 = vunpack.c.l.b16 %v2340
    %v3105 = vunpack.c.h.b16 %v2340
    %v3106 = vunpack.c.l.b16 %v2341
    %v3107 = vunpack.c.h.b16 %v2341
    %v3108 = vunpack.c.l.b16 %v2342
    %v3109 = vunpack.c.h.b16 %v2342
    %v3110 = vunpack.c.l.b16 %v2343
    %v3111 = vunpack.c.h.b16 %v2343
    %v3112 = vunpack.c.l.b16 %v2344
    %v3113 = vunpack.c.h.b16 %v2344
    %v3114 = vunpack.c.l.b16 %v2345
    %v3115 = vunpack.c.h.b16 %v2345
    %v3116 = vunpack.c.l.b16 %v2346
    %v3117 = vunpack.c.h.b16 %v2346
    %v3118 = vunpack.c.l.b16 %v2347
    %v3119 = vunpack.c.h.b16 %v2347
    %v3120 = vunpack.c.l.b16 %v2348
    %v3121 = vunpack.c.h.b16 %v2348
    %v3122 = vunpack.c.l.b16 %v2349
    %v3123 = vunpack.c.h.b16 %v2349
    %v3124 = vunpack.c.l.b16 %v2350
    %v3125 = vunpack.c.h.b16 %v2350
    %v3126 = vunpack.c.l.b16 %v2351
    %v3127 = vunpack.c.h.b16 %v2351
    %v3128 = vunpack.c.l.b16 %v2352
    %v3129 = vunpack.c.h.b16 %v2352
    %v3130 = vunpack.c.l.b16 %v2353
    %v3131 = vunpack.c.h.b16 %v2353
    %v3132 = vunpack.c.l.b16 %v2354
    %v3133 = vunpack.c.h.b16 %v2354
    %v3134 = vunpack.c.l.b16 %v2355
    %v3135 = vunpack.c.h.b16 %v2355
    %v3136 = vunpack.c.l.b16 %v2356
    %v3137 = vunpack.c.h.b16 %v2356
    %v3138 = vunpack.c.l.b16 %v2357
    %v3139 = vunpack.c.h.b16 %v2357
    %v3140 = vunpack.c.l.b16 %v2358
    %v3141 = vunpack.c.h.b16 %v2358
    %v3142 = vunpack.c.l.b16 %v2359
    %v3143 = vunpack.c.h.b16 %v2359
    %v3144 = vunpack.c.l.b16 %v2360
    %v3145 = vunpack.c.h.b16 %v2360
    %v3146 = vunpack.c.l.b16 %v2361
    %v3147 = vunpack.c.h.b16 %v2361
    %v3148 = vunpack.c.l.b16 %v2362
    %v3149 = vunpack.c.h.b16 %v2362
    %v3150 = vunpack.c.l.b16 %v2363
    %v3151 = vunpack.c.h.b16 %v2363
    %v3152 = vunpack.c.l.b16 %v2364
    %v3153 = vunpack.c.h.b16 %v2364
    %v3154 = vunpack.c.l.b16 %v2365
    %v3155 = vunpack.c.h.b16 %v2365
    %v3156 = vunpack.c.l.b16 %v2366
    %v3157 = vunpack.c.h.b16 %v2366
    %v3158 = vunpack.c.l.b16 %v2367
    %v3159 = vunpack.c.h.b16 %v2367
    %v3160 = vunpack.c.l.b16 %v2368
    %v3161 = vunpack.c.h.b16 %v2368
    %v3162 = vunpack.c.l.b16 %v2369
    %v3163 = vunpack.c.h.b16 %v2369
    %v3164 = vunpack.c.l.b16 %v2370
    %v3165 = vunpack.c.h.b16 %v2370
    %v3166 = vunpack.c.l.b16 %v2371
    %v3167 = vunpack.c.h.b16 %v2371
    %v3168 = vunpack.c.l.b16 %v2372
    %v3169 = vunpack.c.h.b16 %v2372
    %v3170 = vunpack.c.l.b16 %v2373
    %v3171 = vunpack.c.h.b16 %v2373
    %v3172 = vunpack.c.l.b16 %v2374
    %v3173 = vunpack.c.h.b16 %v2374
    %v3174 = vunpack.c.l.b16 %v2375
    %v3175 = vunpack.c.h.b16 %v2375
    %v3176 = vunpack.c.l.b16 %v2376
    %v3177 = vunpack.c.h.b16 %v2376
    %v3178 = vunpack.c.l.b16 %v2377
    %v3179 = vunpack.c.h.b16 %v2377
    %v3180 = vunpack.c.l.b16 %v2378
    %v3181 = vunpack.c.h.b16 %v2378
    %v3182 = vunpack.c.l.b16 %v2379
    %v3183 = vunpack.c.h.b16 %v2379
    %v3184 = vunpack.c.l.b16 %v2380
    %v3185 = vunpack.c.h.b16 %v2380
    %v3186 = vunpack.c.l.b16 %v2381
    %v3187 = vunpack.c.h.b16 %v2381
    %v3188 = vunpack.c.l.b16 %v2382
    %v3189 = vunpack.c.h.b16 %v2382
    %v3190 = vunpack.c.l.b16 %v2383
    %v3191 = vunpack.c.h.b16 %v2383
    %v3192 = vunpack.c.l.b16 %v2384
    %v3193 = vunpack.c.h.b16 %v2384
    %v3194 = vunpack.c.l.b16 %v2385
    %v3195 = vunpack.c.h.b16 %v2385
    %v3196 = vunpack.c.l.b16 %v2386
    %v3197 = vunpack.c.h.b16 %v2386
    %v3198 = vunpack.c.l.b16 %v2387
    %v3199 = vunpack.c.h.b16 %v2387
    %v3200 = vunpack.c.l.b16 %v2388
    %v3201 = vunpack.c.h.b16 %v2388
    %v3202 = vunpack.c.l.b16 %v2389
    %v3203 = vunpack.c.h.b16 %v2389
    %v3204 = vunpack.c.l.b16 %v2390
    %v3205 = vunpack.c.h.b16 %v2390
    %v3206 = vunpack.c.l.b16 %v2391
    %v3207 = vunpack.c.h.b16 %v2391
    %v3208 = vunpack.c.l.b16 %v2392
    %v3209 = vunpack.c.h.b16 %v2392
    %v3210 = vunpack.c.l.b16 %v2393
    %v3211 = vunpack.c.h.b16 %v2393
    %v3212 = vunpack.c.l.b16 %v2394
    %v3213 = vunpack.c.h.b16 %v2394
    %v3214 = vunpack.c.l.b16 %v2395
    %v3215 = vunpack.c.h.b16 %v2395
    %v3216 = vunpack.c.l.b16 %v2396
    %v3217 = vunpack.c.h.b16 %v2396
    %v3218 = vunpack.c.l.b16 %v2397
    %v3219 = vunpack.c.h.b16 %v2397
    %v3220 = vunpack.c.l.b16 %v2398
    %v3221 = vunpack.c.h.b16 %v2398
    %v3222 = vunpack.c.l.b16 %v2399
    %v3223 = vunpack.c.h.b16 %v2399
    %v3224 = vunpack.c.l.b16 %v2400
    %v3225 = vunpack.c.h.b16 %v2400
    %v3226 = vunpack.c.l.b16 %v2401
    %v3227 = vunpack.c.h.b16 %v2401
    %v3228 = vunpack.c.l.b16 %v2402
    %v3229 = vunpack.c.h.b16 %v2402
    %v3230 = vunpack.c.l.b16 %v2403
    %v3231 = vunpack.c.h.b16 %v2403
    %v3232 = vunpack.c.l.b16 %v2404
    %v3233 = vunpack.c.h.b16 %v2404
    %v3234 = vunpack.c.l.b16 %v2405
    %v3235 = vunpack.c.h.b16 %v2405
    %v3236 = vunpack.c.l.b16 %v2406
    %v3237 = vunpack.c.h.b16 %v2406
    %v3238 = vunpack.c.l.b16 %v2407
    %v3239 = vunpack.c.h.b16 %v2407
    %v3240 = vunpack.c.l.b16 %v2408
    %v3241 = vunpack.c.h.b16 %v2408
    %v3242 = vunpack.c.l.b16 %v2409
    %v3243 = vunpack.c.h.b16 %v2409
    %v3244 = vunpack.c.l.b16 %v2410
    %v3245 = vunpack.c.h.b16 %v2410
    %v3246 = vunpack.c.l.b16 %v2411
    %v3247 = vunpack.c.h.b16 %v2411
    %v3248 = vunpack.c.l.b16 %v2412
    %v3249 = vunpack.c.h.b16 %v2412
    %v3250 = vunpack.c.l.b16 %v2413
    %v3251 = vunpack.c.h.b16 %v2413
    %v3252 = vunpack.c.l.b16 %v2414
    %v3253 = vunpack.c.h.b16 %v2414
    %v3254 = vunpack.c.l.b16 %v2415
    %v3255 = vunpack.c.h.b16 %v2415
    %v3256 = vunpack.c.l.b16 %v2416
    %v3257 = vunpack.c.h.b16 %v2416
    %v3258 = vunpack.c.l.b16 %v2417
    %v3259 = vunpack.c.h.b16 %v2417
    %v3260 = vunpack.c.l.b16 %v2418
    %v3261 = vunpack.c.h.b16 %v2418
    %v3262 = vunpack.c.l.b16 %v2419
    %v3263 = vunpack.c.h.b16 %v2419
    %v3264 = vunpack.c.l.b16 %v2420
    %v3265 = vunpack.c.h.b16 %v2420
    %v3266 = vunpack.c.l.b16 %v2421
    %v3267 = vunpack.c.h.b16 %v2421
    %v3268 = vunpack.c.l.b16 %v2422
    %v3269 = vunpack.c.h.b16 %v2422
    %v3270 = vunpack.c.l.b16 %v2423
    %v3271 = vunpack.c.h.b16 %v2423
    %v3272 = vunpack.c.l.b16 %v2424
    %v3273 = vunpack.c.h.b16 %v2424
    %v3274 = vunpack.c.l.b16 %v2425
    %v3275 = vunpack.c.h.b16 %v2425
    %v3276 = vunpack.c.l.b16 %v2426
    %v3277 = vunpack.c.h.b16 %v2426
    %v3278 = vunpack.c.l.b16 %v2427
    %v3279 = vunpack.c.h.b16 %v2427
    %v3280 = vunpack.c.l.b16 %v2428
    %v3281 = vunpack.c.h.b16 %v2428
    %v3282 = vunpack.c.l.b16 %v2429
    %v3283 = vunpack.c.h.b16 %v2429
    %v3284 = vunpack.c.l.b16 %v2430
    %v3285 = vunpack.c.h.b16 %v2430
    %v3286 = vunpack.c.l.b16 %v2431
    %v3287 = vunpack.c.h.b16 %v2431
    %v3288 = vunpack.c.l.b16 %v2432
    %v3289 = vunpack.c.h.b16 %v2432
    %v3290 = vunpack.c.l.b16 %v2433
    %v3291 = vunpack.c.h.b16 %v2433
    %v3292 = vunpack.c.l.b16 %v2434
    %v3293 = vunpack.c.h.b16 %v2434
    %v3294 = vunpack.c.l.b16 %v2435
    %v3295 = vunpack.c.h.b16 %v2435
    %v3296 = vunpack.c.l.b16 %v2436
    %v3297 = vunpack.c.h.b16 %v2436
    %v3298 = vunpack.c.l.b16 %v2437
    %v3299 = vunpack.c.h.b16 %v2437
    %v3300 = vunpack.c.l.b16 %v2438
    %v3301 = vunpack.c.h.b16 %v2438
    %v3302 = vunpack.c.l.b16 %v2439
    %v3303 = vunpack.c.h.b16 %v2439
    %v3304 = vunpack.c.l.b16 %v2440
    %v3305 = vunpack.c.h.b16 %v2440
    %v3306 = vunpack.c.l.b16 %v2441
    %v3307 = vunpack.c.h.b16 %v2441
    %v3308 = vunpack.c.l.b16 %v2442
    %v3309 = vunpack.c.h.b16 %v2442
    %v3310 = vunpack.c.l.b16 %v2443
    %v3311 = vunpack.c.h.b16 %v2443
    %v3312 = vunpack.c.l.b16 %v2444
    %v3313 = vunpack.c.h.b16 %v2444
    %v3314 = vunpack.c.l.b16 %v2445
    %v3315 = vunpack.c.h.b16 %v2445
    %v3316 = vunpack.c.l.b16 %v2446
    %v3317 = vunpack.c.h.b16 %v2446
    %v3318 = vunpack.c.l.b16 %v2447
    %v3319 = vunpack.c.h.b16 %v2447
    %v3320 = vunpack.c.l.b16 %v2448
    %v3321 = vunpack.c.h.b16 %v2448
    %v3322 = vunpack.c.l.b16 %v2449
    %v3323 = vunpack.c.h.b16 %v2449
    %v3324 = vunpack.c.l.b16 %v2450
    %v3325 = vunpack.c.h.b16 %v2450
    %v3326 = vunpack.c.l.b16 %v2451
    %v3327 = vunpack.c.h.b16 %v2451
    %v3328 = vunpack.c.l.b16 %v2452
    %v3329 = vunpack.c.h.b16 %v2452
    %v3330 = vunpack.c.l.b16 %v2453
    %v3331 = vunpack.c.h.b16 %v2453
    %v3332 = vpack.c.b16 %v2762, %v2756
    %v3333 = vpack.c.b16 %v2763, %v2757
    %v3334 = vpack.c.b16 %v2764, %v2758
    %v3335 = vpack.c.b16 %v2765, %v2759
    %v3336 = vpack.c.b16 %v2766, %v2760
    %v3337 = vpack.c.b16 %v2767, %v2761
    %v3338 = vpack.c.b16 %v2774, %v2768
    %v3339 = vpack.c.b16 %v2775, %v2769
    %v3340 = vpack.c.b16 %v2776, %v2770
    %v3341 = vpack.c.b16 %v2777, %v2771
    %v3342 = vpack.c.b16 %v2778, %v2772
    %v3343 = vpack.c.b16 %v2779, %v2773
    %v3344 = vpack.c.b16 %v2786, %v2780
    %v3345 = vpack.c.b16 %v2787, %v2781
    %v3346 = vpack.c.b16 %v2788, %v2782
    %v3347 = vpack.c.b16 %v2789, %v2783
    %v3348 = vpack.c.b16 %v2790, %v2784
    %v3349 = vpack.c.b16 %v2791, %v2785
    %v3350 = vpack.c.b16 %v2798, %v2792
    %v3351 = vpack.c.b16 %v2799, %v2793
    %v3352 = vpack.c.b16 %v2800, %v2794
    %v3353 = vpack.c.b16 %v2801, %v2795
    %v3354 = vpack.c.b16 %v2802, %v2796
    %v3355 = vpack.c.b16 %v2803, %v2797
    %v3356 = vpack.c.b16 %v2810, %v2804
    %v3357 = vpack.c.b16 %v2811, %v2805
    %v3358 = vpack.c.b16 %v2812, %v2806
    %v3359 = vpack.c.b16 %v2813, %v2807
    %v3360 = vpack.c.b16 %v2814, %v2808
    %v3361 = vpack.c.b16 %v2815, %v2809
    %v3362 = vpack.c.b16 %v2822, %v2816
    %v3363 = vpack.c.b16 %v2823, %v2817
    %v3364 = vpack.c.b16 %v2824, %v2818
    %v3365 = vpack.c.b16 %v2825, %v2819
    %v3366 = vpack.c.b16 %v2826, %v2820
    %v3367 = vpack.c.b16 %v2827, %v2821
    %v3368 = vpack.c.b16 %v2834, %v2828
    %v3369 = vpack.c.b16 %v2835, %v2829
    %v3370 = vpack.c.b16 %v2836, %v2830
    %v3371 = vpack.c.b16 %v2837, %v2831
    %v3372 = vpack.c.b16 %v2838, %v2832
    %v3373 = vpack.c.b16 %v2839, %v2833
    %v3374 = vpack.c.b16 %v2846, %v2840
    %v3375 = vpack.c.b16 %v2847, %v2841
    %v3376 = vpack.c.b16 %v2848, %v2842
    %v3377 = vpack.c.b16 %v2849, %v2843
    %v3378 = vpack.c.b16 %v2850, %v2844
    %v3379 = vpack.c.b16 %v2851, %v2845
    %v3380 = vpack.c.b16 %v2858, %v2852
    %v3381 = vpack.c.b16 %v2859, %v2853
    %v3382 = vpack.c.b16 %v2860, %v2854
    %v3383 = vpack.c.b16 %v2861, %v2855
    %v3384 = vpack.c.b16 %v2862, %v2856
    %v3385 = vpack.c.b16 %v2863, %v2857
    %v3386 = vpack.c.b16 %v2870, %v2864
    %v3387 = vpack.c.b16 %v2871, %v2865
    %v3388 = vpack.c.b16 %v2872, %v2866
    %v3389 = vpack.c.b16 %v2873, %v2867
    %v3390 = vpack.c.b16 %v2874, %v2868
    %v3391 = vpack.c.b16 %v2875, %v2869
    %v3392 = vpack.c.b16 %v2882, %v2876
    %v3393 = vpack.c.b16 %v2883, %v2877
    %v3394 = vpack.c.b16 %v2884, %v2878
    %v3395 = vpack.c.b16 %v2885, %v2879
    %v3396 = vpack.c.b16 %v2886, %v2880
    %v3397 = vpack.c.b16 %v2887, %v2881
    %v3398 = vpack.c.b16 %v2894, %v2888
    %v3399 = vpack.c.b16 %v2895, %v2889
    %v3400 = vpack.c.b16 %v2896, %v2890
    %v3401 = vpack.c.b16 %v2897, %v2891
    %v3402 = vpack.c.b16 %v2898, %v2892
    %v3403 = vpack.c.b16 %v2899, %v2893
    %v3404 = vpack.c.b16 %v2906, %v2900
    %v3405 = vpack.c.b16 %v2907, %v2901
    %v3406 = vpack.c.b16 %v2908, %v2902
    %v3407 = vpack.c.b16 %v2909, %v2903
    %v3408 = vpack.c.b16 %v2910, %v2904
    %v3409 = vpack.c.b16 %v2911, %v2905
    %v3410 = vpack.c.b16 %v2918, %v2912
    %v3411 = vpack.c.b16 %v2919, %v2913
    %v3412 = vpack.c.b16 %v2920, %v2914
    %v3413 = vpack.c.b16 %v2921, %v2915
    %v3414 = vpack.c.b16 %v2922, %v2916
    %v3415 = vpack.c.b16 %v2923, %v2917
    %v3416 = vpack.c.b16 %v2930, %v2924
    %v3417 = vpack.c.b16 %v2931, %v2925
    %v3418 = vpack.c.b16 %v2932, %v2926
    %v3419 = vpack.c.b16 %v2933, %v2927
    %v3420 = vpack.c.b16 %v2934, %v2928
    %v3421 = vpack.c.b16 %v2935, %v2929
    %v3422 = vpack.c.b16 %v2942, %v2936
    %v3423 = vpack.c.b16 %v2943, %v2937
    %v3424 = vpack.c.b16 %v2944, %v2938
    %v3425 = vpack.c.b16 %v2945, %v2939
    %v3426 = vpack.c.b16 %v2946, %v2940
    %v3427 = vpack.c.b16 %v2947, %v2941
    %v3428 = vpack.c.b16 %v2954, %v2948
    %v3429 = vpack.c.b16 %v2955, %v2949
    %v3430 = vpack.c.b16 %v2956, %v2950
    %v3431 = vpack.c.b16 %v2957, %v2951
    %v3432 = vpack.c.b16 %v2958, %v2952
    %v3433 = vpack.c.b16 %v2959, %v2953
    %v3434 = vpack.c.b16 %v2966, %v2960
    %v3435 = vpack.c.b16 %v2967, %v2961
    %v3436 = vpack.c.b16 %v2968, %v2962
    %v3437 = vpack.c.b16 %v2969, %v2963
    %v3438 = vpack.c.b16 %v2970, %v2964
    %v3439 = vpack.c.b16 %v2971, %v2965
    %v3440 = vpack.c.b16 %v2978, %v2972
    %v3441 = vpack.c.b16 %v2979, %v2973
    %v3442 = vpack.c.b16 %v2980, %v2974
    %v3443 = vpack.c.b16 %v2981, %v2975
    %v3444 = vpack.c.b16 %v2982, %v2976
    %v3445 = vpack.c.b16 %v2983, %v2977
    %v3446 = vpack.c.b16 %v2990, %v2984
    %v3447 = vpack.c.b16 %v2991, %v2985
    %v3448 = vpack.c.b16 %v2992, %v2986
    %v3449 = vpack.c.b16 %v2993, %v2987
    %v3450 = vpack.c.b16 %v2994, %v2988
    %v3451 = vpack.c.b16 %v2995, %v2989
    %v3452 = vpack.c.b16 %v3002, %v2996
    %v3453 = vpack.c.b16 %v3003, %v2997
    %v3454 = vpack.c.b16 %v3004, %v2998
    %v3455 = vpack.c.b16 %v3005, %v2999
    %v3456 = vpack.c.b16 %v3006, %v3000
    %v3457 = vpack.c.b16 %v3007, %v3001
    %v3458 = vpack.c.b16 %v3014, %v3008
    %v3459 = vpack.c.b16 %v3015, %v3009
    %v3460 = vpack.c.b16 %v3016, %v3010
    %v3461 = vpack.c.b16 %v3017, %v3011
    %v3462 = vpack.c.b16 %v3018, %v3012
    %v3463 = vpack.c.b16 %v3019, %v3013
    %v3464 = vpack.c.b16 %v3026, %v3020
    %v3465 = vpack.c.b16 %v3027, %v3021
    %v3466 = vpack.c.b16 %v3028, %v3022
    %v3467 = vpack.c.b16 %v3029, %v3023
    %v3468 = vpack.c.b16 %v3030, %v3024
    %v3469 = vpack.c.b16 %v3031, %v3025
    %v3470 = vpack.c.b16 %v3038, %v3032
    %v3471 = vpack.c.b16 %v3039, %v3033
    %v3472 = vpack.c.b16 %v3040, %v3034
    %v3473 = vpack.c.b16 %v3041, %v3035
    %v3474 = vpack.c.b16 %v3042, %v3036
    %v3475 = vpack.c.b16 %v3043, %v3037
    %v3476 = vpack.c.b16 %v3050, %v3044
    %v3477 = vpack.c.b16 %v3051, %v3045
    %v3478 = vpack.c.b16 %v3052, %v3046
    %v3479 = vpack.c.b16 %v3053, %v3047
    %v3480 = vpack.c.b16 %v3054, %v3048
    %v3481 = vpack.c.b16 %v3055, %v3049
    %v3482 = vpack.c.b16 %v3062, %v3056
    %v3483 = vpack.c.b16 %v3063, %v3057
    %v3484 = vpack.c.b16 %v3064, %v3058
    %v3485 = vpack.c.b16 %v3065, %v3059
    %v3486 = vpack.c.b16 %v3066, %v3060
    %v3487 = vpack.c.b16 %v3067, %v3061
    %v3488 = vpack.c.b16 %v3074, %v3068
    %v3489 = vpack.c.b16 %v3075, %v3069
    %v3490 = vpack.c.b16 %v3076, %v3070
    %v3491 = vpack.c.b16 %v3077, %v3071
    %v3492 = vpack.c.b16 %v3078, %v3072
    %v3493 = vpack.c.b16 %v3079, %v3073
    %v3494 = vpack.c.b16 %v3086, %v3080
    %v3495 = vpack.c.b16 %v3087, %v3081
    %v3496 = vpack.c.b16 %v3088, %v3082
    %v3497 = vpack.c.b16 %v3089, %v3083
    %v3498 = vpack.c.b16 %v3090, %v3084
    %v3499 = vpack.c.b16 %v3091, %v3085
    %v3500 = vpack.c.b16 %v3098, %v3092
    %v3501 = vpack.c.b16 %v3099, %v3093
    %v3502 = vpack.c.b16 %v3100, %v3094
    %v3503 = vpack.c.b16 %v3101, %v3095
    %v3504 = vpack.c.b16 %v3102, %v3096
    %v3505 = vpack.c.b16 %v3103, %v3097
    %v3506 = vpack.c.b16 %v3110, %v3104
    %v3507 = vpack.c.b16 %v3111, %v3105
    %v3508 = vpack.c.b16 %v3112, %v3106
    %v3509 = vpack.c.b16 %v3113, %v3107
    %v3510 = vpack.c.b16 %v3114, %v3108
    %v3511 = vpack.c.b16 %v3115, %v3109
    %v3512 = vpack.c.b16 %v3122, %v3116
    %v3513 = vpack.c.b16 %v3123, %v3117
    %v3514 = vpack.c.b16 %v3124, %v3118
    %v3515 = vpack.c.b16 %v3125, %v3119
    %v3516 = vpack.c.b16 %v3126, %v3120
    %v3517 = vpack.c.b16 %v3127, %v3121
    %v3518 = vpack.c.b16 %v3134, %v3128
    %v3519 = vpack.c.b16 %v3135, %v3129
    %v3520 = vpack.c.b16 %v3136, %v3130
    %v3521 = vpack.c.b16 %v3137, %v3131
    %v3522 = vpack.c.b16 %v3138, %v3132
    %v3523 = vpack.c.b16 %v3139, %v3133
    %v3524 = vpack.c.b16 %v3146, %v3140
    %v3525 = vpack.c.b16 %v3147, %v3141
    %v3526 = vpack.c.b16 %v3148, %v3142
    %v3527 = vpack.c.b16 %v3149, %v3143
    %v3528 = vpack.c.b16 %v3150, %v3144
    %v3529 = vpack.c.b16 %v3151, %v3145
    %v3530 = vpack.c.b16 %v3158, %v3152
    %v3531 = vpack.c.b16 %v3159, %v3153
    %v3532 = vpack.c.b16 %v3160, %v3154
    %v3533 = vpack.c.b16 %v3161, %v3155
    %v3534 = vpack.c.b16 %v3162, %v3156
    %v3535 = vpack.c.b16 %v3163, %v3157
    %v3536 = vpack.c.b16 %v3170, %v3164
    %v3537 = vpack.c.b16 %v3171, %v3165
    %v3538 = vpack.c.b16 %v3172, %v3166
    %v3539 = vpack.c.b16 %v3173, %v3167
    %v3540 = vpack.c.b16 %v3174, %v3168
    %v3541 = vpack.c.b16 %v3175, %v3169
    %v3542 = vpack.c.b16 %v3182, %v3176
    %v3543 = vpack.c.b16 %v3183, %v3177
    %v3544 = vpack.c.b16 %v3184, %v3178
    %v3545 = vpack.c.b16 %v3185, %v3179
    %v3546 = vpack.c.b16 %v3186, %v3180
    %v3547 = vpack.c.b16 %v3187, %v3181
    %v3548 = vpack.c.b16 %v3194, %v3188
    %v3549 = vpack.c.b16 %v3195, %v3189
    %v3550 = vpack.c.b16 %v3196, %v3190
    %v3551 = vpack.c.b16 %v3197, %v3191
    %v3552 = vpack.c.b16 %v3198, %v3192
    %v3553 = vpack.c.b16 %v3199, %v3193
    %v3554 = vpack.c.b16 %v3206, %v3200
    %v3555 = vpack.c.b16 %v3207, %v3201
    %v3556 = vpack.c.b16 %v3208, %v3202
    %v3557 = vpack.c.b16 %v3209, %v3203
    %v3558 = vpack.c.b16 %v3210, %v3204
    %v3559 = vpack.c.b16 %v3211, %v3205
    %v3560 = vpack.c.b16 %v3218, %v3212
    %v3561 = vpack.c.b16 %v3219, %v3213
    %v3562 = vpack.c.b16 %v3220, %v3214
    %v3563 = vpack.c.b16 %v3221, %v3215
    %v3564 = vpack.c.b16 %v3222, %v3216
    %v3565 = vpack.c.b16 %v3223, %v3217
    %v3566 = vpack.c.b16 %v3230, %v3224
    %v3567 = vpack.c.b16 %v3231, %v3225
    %v3568 = vpack.c.b16 %v3232, %v3226
    %v3569 = vpack.c.b16 %v3233, %v3227
    %v3570 = vpack.c.b16 %v3234, %v3228
    %v3571 = vpack.c.b16 %v3235, %v3229
    %v3572 = vpack.c.b16 %v3242, %v3236
    %v3573 = vpack.c.b16 %v3243, %v3237
    %v3574 = vpack.c.b16 %v3244, %v3238
    %v3575 = vpack.c.b16 %v3245, %v3239
    %v3576 = vpack.c.b16 %v3246, %v3240
    %v3577 = vpack.c.b16 %v3247, %v3241
    %v3578 = vpack.c.b16 %v3254, %v3248
    %v3579 = vpack.c.b16 %v3255, %v3249
    %v3580 = vpack.c.b16 %v3256, %v3250
    %v3581 = vpack.c.b16 %v3257, %v3251
    %v3582 = vpack.c.b16 %v3258, %v3252
    %v3583 = vpack.c.b16 %v3259, %v3253
    %v3584 = vpack.c.b16 %v3266, %v3260
    %v3585 = vpack.c.b16 %v3267, %v3261
    %v3586 = vpack.c.b16 %v3268, %v3262
    %v3587 = vpack.c.b16 %v3269, %v3263
    %v3588 = vpack.c.b16 %v3270, %v3264
    %v3589 = vpack.c.b16 %v3271, %v3265
    %v3590 = vpack.c.b16 %v3278, %v3272
    %v3591 = vpack.c.b16 %v3279, %v3273
    %v3592 = vpack.c.b16 %v3280, %v3274
    %v3593 = vpack.c.b16 %v3281, %v3275
    %v3594 = vpack.c.b16 %v3282, %v3276
    %v3595 = vpack.c.b16 %v3283, %v3277
    %v3596 = vpack.c.b16 %v3290, %v3284
    %v3597 = vpack.c.b16 %v3291, %v3285
    %v3598 = vpack.c.b16 %v3292, %v3286
    %v3599 = vpack.c.b16 %v3293, %v3287
    %v3600 = vpack.c.b16 %v3294, %v3288
    %v3601 = vpack.c.b16 %v3295, %v3289
    %v3602 = vpack.c.b16 %v3302, %v3296
    %v3603 = vpack.c.b16 %v3303, %v3297
    %v3604 = vpack.c.b16 %v3304, %v3298
    %v3605 = vpack.c.b16 %v3305, %v3299
    %v3606 = vpack.c.b16 %v3306, %v3300
    %v3607 = vpack.c.b16 %v3307, %v3301
    %v3608 = vpack.c.b16 %v3314, %v3308
    %v3609 = vpack.c.b16 %v3315, %v3309
    %v3610 = vpack.c.b16 %v3316, %v3310
    %v3611 = vpack.c.b16 %v3317, %v3311
    %v3612 = vpack.c.b16 %v3318, %v3312
    %v3613 = vpack.c.b16 %v3319, %v3313
    %v3614 = vpack.c.b16 %v3326, %v3320
    %v3615 = vpack.c.b16 %v3327, %v3321
    %v3616 = vpack.c.b16 %v3328, %v3322
    %v3617 = vpack.c.b16 %v3329, %v3323
    %v3618 = vpack.c.b16 %v3330, %v3324
    %v3619 = vpack.c.b16 %v3331, %v3325
    %3908 = vmatpush.bf16.msra.mxu0 %v3374
    %3909 = vmatpush.bf16.msra.mxu0 %v3368
    %3910 = vmatpush.bf16.msra.mxu0 %v3362
    %3911 = vmatpush.bf16.msra.mxu0 %v3356
    %3912 = vmatpush.bf16.msra.mxu0 %v3350
    %3913 = vmatpush.bf16.msra.mxu0 %v3344
    %3914 = vmatpush.bf16.msra.mxu0 %v3338
    %3915 = vmatpush.bf16.msra.mxu0 %v3332
    %3916 = vmatmul.bf16.gmra.mxu0 %v2156
    %v3917 = vpop.f32.mrf.mxu0
    %v3918 = vadd.f32 %v2456, %v3917
    %v3919 = vpop.f32.mrf.mxu0
    %v3920 = vadd.f32 %v2456, %v3919
    %3921 = vdwg.mxu0
    %3922 = vmatpush.bf16.msra.mxu0 %v3422
    %3923 = vmatpush.bf16.msra.mxu0 %v3416
    %3924 = vmatpush.bf16.msra.mxu0 %v3410
    %3925 = vmatpush.bf16.msra.mxu0 %v3404
    %3926 = vmatpush.bf16.msra.mxu0 %v3398
    %3927 = vmatpush.bf16.msra.mxu0 %v3392
    %3928 = vmatpush.bf16.msra.mxu0 %v3386
    %3929 = vmatpush.bf16.msra.mxu0 %v3380
    %3930 = vmatmul.bf16.gmra.mxu0 %v2157
    %v3931 = vpop.f32.mrf.mxu0
    %v3932 = vadd.f32 %v3918, %v3931
    %v3933 = vpop.f32.mrf.mxu0
    %v3934 = vadd.f32 %v3920, %v3933
    %3935 = vdwg.mxu0
    %3936 = vmatpush.bf16.msra.mxu0 %v3470
    %3937 = vmatpush.bf16.msra.mxu0 %v3464
    %3938 = vmatpush.bf16.msra.mxu0 %v3458
    %3939 = vmatpush.bf16.msra.mxu0 %v3452
    %3940 = vmatpush.bf16.msra.mxu0 %v3446
    %3941 = vmatpush.bf16.msra.mxu0 %v3440
    %3942 = vmatpush.bf16.msra.mxu0 %v3434
    %3943 = vmatpush.bf16.msra.mxu0 %v3428
    %3944 = vmatmul.bf16.gmra.mxu0 %v2158
    %v3945 = vpop.f32.mrf.mxu0
    %v3946 = vadd.f32 %v3932, %v3945
    %v3947 = vpop.f32.mrf.mxu0
    %v3948 = vadd.f32 %v3934, %v3947
    %3949 = vdwg.mxu0
    %3950 = vmatpush.bf16.msra.mxu0 %v3518
    %3951 = vmatpush.bf16.msra.mxu0 %v3512
    %3952 = vmatpush.bf16.msra.mxu0 %v3506
    %3953 = vmatpush.bf16.msra.mxu0 %v3500
    %3954 = vmatpush.bf16.msra.mxu0 %v3494
    %3955 = vmatpush.bf16.msra.mxu0 %v3488
    %3956 = vmatpush.bf16.msra.mxu0 %v3482
    %3957 = vmatpush.bf16.msra.mxu0 %v3476
    %3958 = vmatmul.bf16.gmra.mxu0 %v2159
    %v3959 = vpop.f32.mrf.mxu0
    %v3960 = vadd.f32 %v3946, %v3959
    %v3961 = vpop.f32.mrf.mxu0
    %v3962 = vadd.f32 %v3948, %v3961
    %3963 = vdwg.mxu0
    %3964 = vmatpush.bf16.msra.mxu0 %v3566
    %3965 = vmatpush.bf16.msra.mxu0 %v3560
    %3966 = vmatpush.bf16.msra.mxu0 %v3554
    %3967 = vmatpush.bf16.msra.mxu0 %v3548
    %3968 = vmatpush.bf16.msra.mxu0 %v3542
    %3969 = vmatpush.bf16.msra.mxu0 %v3536
    %3970 = vmatpush.bf16.msra.mxu0 %v3530
    %3971 = vmatpush.bf16.msra.mxu0 %v3524
    %3972 = vmatmul.bf16.gmra.mxu0 %v2160
    %v3973 = vpop.f32.mrf.mxu0
    %v3974 = vadd.f32 %v3960, %v3973
    %v3975 = vpop.f32.mrf.mxu0
    %v3976 = vadd.f32 %v3962, %v3975
    %3977 = vdwg.mxu0
    %3978 = vmatpush.bf16.msra.mxu0 %v3614
    %3979 = vmatpush.bf16.msra.mxu0 %v3608
    %3980 = vmatpush.bf16.msra.mxu0 %v3602
    %3981 = vmatpush.bf16.msra.mxu0 %v3596
    %3982 = vmatpush.bf16.msra.mxu0 %v3590
    %3983 = vmatpush.bf16.msra.mxu0 %v3584
    %3984 = vmatpush.bf16.msra.mxu0 %v3578
    %3985 = vmatpush.bf16.msra.mxu0 %v3572
    %3986 = vmatmul.bf16.gmra.mxu0 %v2161
    %v3987 = vpop.f32.mrf.mxu0
    %v3988 = vadd.f32 %v3974, %v3987
    %v3989 = vpop.f32.mrf.mxu0
    %v3990 = vadd.f32 %v3976, %v3989
    %3991 = vdwg.mxu0
    %3992 = vmatpush.bf16.msra.mxu0 %v3375
    %3993 = vmatpush.bf16.msra.mxu0 %v3369
    %3994 = vmatpush.bf16.msra.mxu0 %v3363
    %3995 = vmatpush.bf16.msra.mxu0 %v3357
    %3996 = vmatpush.bf16.msra.mxu0 %v3351
    %3997 = vmatpush.bf16.msra.mxu0 %v3345
    %3998 = vmatpush.bf16.msra.mxu0 %v3339
    %3999 = vmatpush.bf16.msra.mxu0 %v3333
    %4000 = vmatmul.bf16.gmra.mxu0 %v2156
    %v4001 = vpop.f32.mrf.mxu0
    %v4002 = vadd.f32 %v2457, %v4001
    %v4003 = vpop.f32.mrf.mxu0
    %v4004 = vadd.f32 %v2457, %v4003
    %4005 = vdwg.mxu0
    %4006 = vmatpush.bf16.msra.mxu0 %v3423
    %4007 = vmatpush.bf16.msra.mxu0 %v3417
    %4008 = vmatpush.bf16.msra.mxu0 %v3411
    %4009 = vmatpush.bf16.msra.mxu0 %v3405
    %4010 = vmatpush.bf16.msra.mxu0 %v3399
    %4011 = vmatpush.bf16.msra.mxu0 %v3393
    %4012 = vmatpush.bf16.msra.mxu0 %v3387
    %4013 = vmatpush.bf16.msra.mxu0 %v3381
    %4014 = vmatmul.bf16.gmra.mxu0 %v2157
    %v4015 = vpop.f32.mrf.mxu0
    %v4016 = vadd.f32 %v4002, %v4015
    %v4017 = vpop.f32.mrf.mxu0
    %v4018 = vadd.f32 %v4004, %v4017
    %4019 = vdwg.mxu0
    %4020 = vmatpush.bf16.msra.mxu0 %v3471
    %4021 = vmatpush.bf16.msra.mxu0 %v3465
    %4022 = vmatpush.bf16.msra.mxu0 %v3459
    %4023 = vmatpush.bf16.msra.mxu0 %v3453
    %4024 = vmatpush.bf16.msra.mxu0 %v3447
    %4025 = vmatpush.bf16.msra.mxu0 %v3441
    %4026 = vmatpush.bf16.msra.mxu0 %v3435
    %4027 = vmatpush.bf16.msra.mxu0 %v3429
    %4028 = vmatmul.bf16.gmra.mxu0 %v2158
    %v4029 = vpop.f32.mrf.mxu0
    %v4030 = vadd.f32 %v4016, %v4029
    %v4031 = vpop.f32.mrf.mxu0
    %v4032 = vadd.f32 %v4018, %v4031
    %4033 = vdwg.mxu0
    %4034 = vmatpush.bf16.msra.mxu0 %v3519
    %4035 = vmatpush.bf16.msra.mxu0 %v3513
    %4036 = vmatpush.bf16.msra.mxu0 %v3507
    %4037 = vmatpush.bf16.msra.mxu0 %v3501
    %4038 = vmatpush.bf16.msra.mxu0 %v3495
    %4039 = vmatpush.bf16.msra.mxu0 %v3489
    %4040 = vmatpush.bf16.msra.mxu0 %v3483
    %4041 = vmatpush.bf16.msra.mxu0 %v3477
    %4042 = vmatmul.bf16.gmra.mxu0 %v2159
    %v4043 = vpop.f32.mrf.mxu0
    %v4044 = vadd.f32 %v4030, %v4043
    %v4045 = vpop.f32.mrf.mxu0
    %v4046 = vadd.f32 %v4032, %v4045
    %4047 = vdwg.mxu0
    %4048 = vmatpush.bf16.msra.mxu0 %v3567
    %4049 = vmatpush.bf16.msra.mxu0 %v3561
    %4050 = vmatpush.bf16.msra.mxu0 %v3555
    %4051 = vmatpush.bf16.msra.mxu0 %v3549
    %4052 = vmatpush.bf16.msra.mxu0 %v3543
    %4053 = vmatpush.bf16.msra.mxu0 %v3537
    %4054 = vmatpush.bf16.msra.mxu0 %v3531
    %4055 = vmatpush.bf16.msra.mxu0 %v3525
    %4056 = vmatmul.bf16.gmra.mxu0 %v2160
    %v4057 = vpop.f32.mrf.mxu0
    %v4058 = vadd.f32 %v4044, %v4057
    %v4059 = vpop.f32.mrf.mxu0
    %v4060 = vadd.f32 %v4046, %v4059
    %4061 = vdwg.mxu0
    %4062 = vmatpush.bf16.msra.mxu0 %v3615
    %4063 = vmatpush.bf16.msra.mxu0 %v3609
    %4064 = vmatpush.bf16.msra.mxu0 %v3603
    %4065 = vmatpush.bf16.msra.mxu0 %v3597
    %4066 = vmatpush.bf16.msra.mxu0 %v3591
    %4067 = vmatpush.bf16.msra.mxu0 %v3585
    %4068 = vmatpush.bf16.msra.mxu0 %v3579
    %4069 = vmatpush.bf16.msra.mxu0 %v3573
    %4070 = vmatmul.bf16.gmra.mxu0 %v2161
    %v4071 = vpop.f32.mrf.mxu0
    %v4072 = vadd.f32 %v4058, %v4071
    %v4073 = vpop.f32.mrf.mxu0
    %v4074 = vadd.f32 %v4060, %v4073
    %4075 = vdwg.mxu0
    %4076 = vmatpush.bf16.msra.mxu0 %v3376
    %4077 = vmatpush.bf16.msra.mxu0 %v3370
    %4078 = vmatpush.bf16.msra.mxu0 %v3364
    %4079 = vmatpush.bf16.msra.mxu0 %v3358
    %4080 = vmatpush.bf16.msra.mxu0 %v3352
    %4081 = vmatpush.bf16.msra.mxu0 %v3346
    %4082 = vmatpush.bf16.msra.mxu0 %v3340
    %4083 = vmatpush.bf16.msra.mxu0 %v3334
    %4084 = vmatmul.bf16.gmra.mxu0 %v2156
    %v4085 = vpop.f32.mrf.mxu0
    %v4086 = vadd.f32 %v2458, %v4085
    %v4087 = vpop.f32.mrf.mxu0
    %v4088 = vadd.f32 %v2458, %v4087
    %4089 = vdwg.mxu0
    %4090 = vmatpush.bf16.msra.mxu0 %v3424
    %4091 = vmatpush.bf16.msra.mxu0 %v3418
    %4092 = vmatpush.bf16.msra.mxu0 %v3412
    %4093 = vmatpush.bf16.msra.mxu0 %v3406
    %4094 = vmatpush.bf16.msra.mxu0 %v3400
    %4095 = vmatpush.bf16.msra.mxu0 %v3394
    %4096 = vmatpush.bf16.msra.mxu0 %v3388
    %4097 = vmatpush.bf16.msra.mxu0 %v3382
    %4098 = vmatmul.bf16.gmra.mxu0 %v2157
    %v4099 = vpop.f32.mrf.mxu0
    %v4100 = vadd.f32 %v4086, %v4099
    %v4101 = vpop.f32.mrf.mxu0
    %v4102 = vadd.f32 %v4088, %v4101
    %4103 = vdwg.mxu0
    %4104 = vmatpush.bf16.msra.mxu0 %v3472
    %4105 = vmatpush.bf16.msra.mxu0 %v3466
    %4106 = vmatpush.bf16.msra.mxu0 %v3460
    %4107 = vmatpush.bf16.msra.mxu0 %v3454
    %4108 = vmatpush.bf16.msra.mxu0 %v3448
    %4109 = vmatpush.bf16.msra.mxu0 %v3442
    %4110 = vmatpush.bf16.msra.mxu0 %v3436
    %4111 = vmatpush.bf16.msra.mxu0 %v3430
    %4112 = vmatmul.bf16.gmra.mxu0 %v2158
    %v4113 = vpop.f32.mrf.mxu0
    %v4114 = vadd.f32 %v4100, %v4113
    %v4115 = vpop.f32.mrf.mxu0
    %v4116 = vadd.f32 %v4102, %v4115
    %4117 = vdwg.mxu0
    %4118 = vmatpush.bf16.msra.mxu0 %v3520
    %4119 = vmatpush.bf16.msra.mxu0 %v3514
    %4120 = vmatpush.bf16.msra.mxu0 %v3508
    %4121 = vmatpush.bf16.msra.mxu0 %v3502
    %4122 = vmatpush.bf16.msra.mxu0 %v3496
    %4123 = vmatpush.bf16.msra.mxu0 %v3490
    %4124 = vmatpush.bf16.msra.mxu0 %v3484
    %4125 = vmatpush.bf16.msra.mxu0 %v3478
    %4126 = vmatmul.bf16.gmra.mxu0 %v2159
    %v4127 = vpop.f32.mrf.mxu0
    %v4128 = vadd.f32 %v4114, %v4127
    %v4129 = vpop.f32.mrf.mxu0
    %v4130 = vadd.f32 %v4116, %v4129
    %4131 = vdwg.mxu0
    %4132 = vmatpush.bf16.msra.mxu0 %v3568
    %4133 = vmatpush.bf16.msra.mxu0 %v3562
    %4134 = vmatpush.bf16.msra.mxu0 %v3556
    %4135 = vmatpush.bf16.msra.mxu0 %v3550
    %4136 = vmatpush.bf16.msra.mxu0 %v3544
    %4137 = vmatpush.bf16.msra.mxu0 %v3538
    %4138 = vmatpush.bf16.msra.mxu0 %v3532
    %4139 = vmatpush.bf16.msra.mxu0 %v3526
    %4140 = vmatmul.bf16.gmra.mxu0 %v2160
    %v4141 = vpop.f32.mrf.mxu0
    %v4142 = vadd.f32 %v4128, %v4141
    %v4143 = vpop.f32.mrf.mxu0
    %v4144 = vadd.f32 %v4130, %v4143
    %4145 = vdwg.mxu0
    %4146 = vmatpush.bf16.msra.mxu0 %v3616
    %4147 = vmatpush.bf16.msra.mxu0 %v3610
    %4148 = vmatpush.bf16.msra.mxu0 %v3604
    %4149 = vmatpush.bf16.msra.mxu0 %v3598
    %4150 = vmatpush.bf16.msra.mxu0 %v3592
    %4151 = vmatpush.bf16.msra.mxu0 %v3586
    %4152 = vmatpush.bf16.msra.mxu0 %v3580
    %4153 = vmatpush.bf16.msra.mxu0 %v3574
    %4154 = vmatmul.bf16.gmra.mxu0 %v2161
    %v4155 = vpop.f32.mrf.mxu0
    %v4156 = vadd.f32 %v4142, %v4155
    %v4157 = vpop.f32.mrf.mxu0
    %v4158 = vadd.f32 %v4144, %v4157
    %4159 = vdwg.mxu0
    %4160 = vmatpush.bf16.msra.mxu0 %v3377
    %4161 = vmatpush.bf16.msra.mxu0 %v3371
    %4162 = vmatpush.bf16.msra.mxu0 %v3365
    %4163 = vmatpush.bf16.msra.mxu0 %v3359
    %4164 = vmatpush.bf16.msra.mxu0 %v3353
    %4165 = vmatpush.bf16.msra.mxu0 %v3347
    %4166 = vmatpush.bf16.msra.mxu0 %v3341
    %4167 = vmatpush.bf16.msra.mxu0 %v3335
    %4168 = vmatmul.bf16.gmra.mxu0 %v2156
    %v4169 = vpop.f32.mrf.mxu0
    %v4170 = vadd.f32 %v2459, %v4169
    %v4171 = vpop.f32.mrf.mxu0
    %v4172 = vadd.f32 %v2459, %v4171
    %4173 = vdwg.mxu0
    %4174 = vmatpush.bf16.msra.mxu0 %v3425
    %4175 = vmatpush.bf16.msra.mxu0 %v3419
    %4176 = vmatpush.bf16.msra.mxu0 %v3413
    %4177 = vmatpush.bf16.msra.mxu0 %v3407
    %4178 = vmatpush.bf16.msra.mxu0 %v3401
    %4179 = vmatpush.bf16.msra.mxu0 %v3395
    %4180 = vmatpush.bf16.msra.mxu0 %v3389
    %4181 = vmatpush.bf16.msra.mxu0 %v3383
    %4182 = vmatmul.bf16.gmra.mxu0 %v2157
    %v4183 = vpop.f32.mrf.mxu0
    %v4184 = vadd.f32 %v4170, %v4183
    %v4185 = vpop.f32.mrf.mxu0
    %v4186 = vadd.f32 %v4172, %v4185
    %4187 = vdwg.mxu0
    %4188 = vmatpush.bf16.msra.mxu0 %v3473
    %4189 = vmatpush.bf16.msra.mxu0 %v3467
    %4190 = vmatpush.bf16.msra.mxu0 %v3461
    %4191 = vmatpush.bf16.msra.mxu0 %v3455
    %4192 = vmatpush.bf16.msra.mxu0 %v3449
    %4193 = vmatpush.bf16.msra.mxu0 %v3443
    %4194 = vmatpush.bf16.msra.mxu0 %v3437
    %4195 = vmatpush.bf16.msra.mxu0 %v3431
    %4196 = vmatmul.bf16.gmra.mxu0 %v2158
    %v4197 = vpop.f32.mrf.mxu0
    %v4198 = vadd.f32 %v4184, %v4197
    %v4199 = vpop.f32.mrf.mxu0
    %v4200 = vadd.f32 %v4186, %v4199
    %4201 = vdwg.mxu0
    %4202 = vmatpush.bf16.msra.mxu0 %v3521
    %4203 = vmatpush.bf16.msra.mxu0 %v3515
    %4204 = vmatpush.bf16.msra.mxu0 %v3509
    %4205 = vmatpush.bf16.msra.mxu0 %v3503
    %4206 = vmatpush.bf16.msra.mxu0 %v3497
    %4207 = vmatpush.bf16.msra.mxu0 %v3491
    %4208 = vmatpush.bf16.msra.mxu0 %v3485
    %4209 = vmatpush.bf16.msra.mxu0 %v3479
    %4210 = vmatmul.bf16.gmra.mxu0 %v2159
    %v4211 = vpop.f32.mrf.mxu0
    %v4212 = vadd.f32 %v4198, %v4211
    %v4213 = vpop.f32.mrf.mxu0
    %v4214 = vadd.f32 %v4200, %v4213
    %4215 = vdwg.mxu0
    %4216 = vmatpush.bf16.msra.mxu0 %v3569
    %4217 = vmatpush.bf16.msra.mxu0 %v3563
    %4218 = vmatpush.bf16.msra.mxu0 %v3557
    %4219 = vmatpush.bf16.msra.mxu0 %v3551
    %4220 = vmatpush.bf16.msra.mxu0 %v3545
    %4221 = vmatpush.bf16.msra.mxu0 %v3539
    %4222 = vmatpush.bf16.msra.mxu0 %v3533
    %4223 = vmatpush.bf16.msra.mxu0 %v3527
    %4224 = vmatmul.bf16.gmra.mxu0 %v2160
    %v4225 = vpop.f32.mrf.mxu0
    %v4226 = vadd.f32 %v4212, %v4225
    %v4227 = vpop.f32.mrf.mxu0
    %v4228 = vadd.f32 %v4214, %v4227
    %4229 = vdwg.mxu0
    %4230 = vmatpush.bf16.msra.mxu0 %v3617
    %4231 = vmatpush.bf16.msra.mxu0 %v3611
    %4232 = vmatpush.bf16.msra.mxu0 %v3605
    %4233 = vmatpush.bf16.msra.mxu0 %v3599
    %4234 = vmatpush.bf16.msra.mxu0 %v3593
    %4235 = vmatpush.bf16.msra.mxu0 %v3587
    %4236 = vmatpush.bf16.msra.mxu0 %v3581
    %4237 = vmatpush.bf16.msra.mxu0 %v3575
    %4238 = vmatmul.bf16.gmra.mxu0 %v2161
    %v4239 = vpop.f32.mrf.mxu0
    %v4240 = vadd.f32 %v4226, %v4239
    %v4241 = vpop.f32.mrf.mxu0
    %v4242 = vadd.f32 %v4228, %v4241
    %4243 = vdwg.mxu0
    %4244 = vmatpush.bf16.msra.mxu0 %v3378
    %4245 = vmatpush.bf16.msra.mxu0 %v3372
    %4246 = vmatpush.bf16.msra.mxu0 %v3366
    %4247 = vmatpush.bf16.msra.mxu0 %v3360
    %4248 = vmatpush.bf16.msra.mxu0 %v3354
    %4249 = vmatpush.bf16.msra.mxu0 %v3348
    %4250 = vmatpush.bf16.msra.mxu0 %v3342
    %4251 = vmatpush.bf16.msra.mxu0 %v3336
    %4252 = vmatmul.bf16.gmra.mxu0 %v2156
    %v4253 = vpop.f32.mrf.mxu0
    %v4254 = vadd.f32 %v2460, %v4253
    %v4255 = vpop.f32.mrf.mxu0
    %v4256 = vadd.f32 %v2460, %v4255
    %4257 = vdwg.mxu0
    %4258 = vmatpush.bf16.msra.mxu0 %v3426
    %4259 = vmatpush.bf16.msra.mxu0 %v3420
    %4260 = vmatpush.bf16.msra.mxu0 %v3414
    %4261 = vmatpush.bf16.msra.mxu0 %v3408
    %4262 = vmatpush.bf16.msra.mxu0 %v3402
    %4263 = vmatpush.bf16.msra.mxu0 %v3396
    %4264 = vmatpush.bf16.msra.mxu0 %v3390
    %4265 = vmatpush.bf16.msra.mxu0 %v3384
    %4266 = vmatmul.bf16.gmra.mxu0 %v2157
    %v4267 = vpop.f32.mrf.mxu0
    %v4268 = vadd.f32 %v4254, %v4267
    %v4269 = vpop.f32.mrf.mxu0
    %v4270 = vadd.f32 %v4256, %v4269
    %4271 = vdwg.mxu0
    %4272 = vmatpush.bf16.msra.mxu0 %v3474
    %4273 = vmatpush.bf16.msra.mxu0 %v3468
    %4274 = vmatpush.bf16.msra.mxu0 %v3462
    %4275 = vmatpush.bf16.msra.mxu0 %v3456
    %4276 = vmatpush.bf16.msra.mxu0 %v3450
    %4277 = vmatpush.bf16.msra.mxu0 %v3444
    %4278 = vmatpush.bf16.msra.mxu0 %v3438
    %4279 = vmatpush.bf16.msra.mxu0 %v3432
    %4280 = vmatmul.bf16.gmra.mxu0 %v2158
    %v4281 = vpop.f32.mrf.mxu0
    %v4282 = vadd.f32 %v4268, %v4281
    %v4283 = vpop.f32.mrf.mxu0
    %v4284 = vadd.f32 %v4270, %v4283
    %4285 = vdwg.mxu0
    %4286 = vmatpush.bf16.msra.mxu0 %v3522
    %4287 = vmatpush.bf16.msra.mxu0 %v3516
    %4288 = vmatpush.bf16.msra.mxu0 %v3510
    %4289 = vmatpush.bf16.msra.mxu0 %v3504
    %4290 = vmatpush.bf16.msra.mxu0 %v3498
    %4291 = vmatpush.bf16.msra.mxu0 %v3492
    %4292 = vmatpush.bf16.msra.mxu0 %v3486
    %4293 = vmatpush.bf16.msra.mxu0 %v3480
    %4294 = vmatmul.bf16.gmra.mxu0 %v2159
    %v4295 = vpop.f32.mrf.mxu0
    %v4296 = vadd.f32 %v4282, %v4295
    %v4297 = vpop.f32.mrf.mxu0
    %v4298 = vadd.f32 %v4284, %v4297
    %4299 = vdwg.mxu0
    %4300 = vmatpush.bf16.msra.mxu0 %v3570
    %4301 = vmatpush.bf16.msra.mxu0 %v3564
    %4302 = vmatpush.bf16.msra.mxu0 %v3558
    %4303 = vmatpush.bf16.msra.mxu0 %v3552
    %4304 = vmatpush.bf16.msra.mxu0 %v3546
    %4305 = vmatpush.bf16.msra.mxu0 %v3540
    %4306 = vmatpush.bf16.msra.mxu0 %v3534
    %4307 = vmatpush.bf16.msra.mxu0 %v3528
    %4308 = vmatmul.bf16.gmra.mxu0 %v2160
    %v4309 = vpop.f32.mrf.mxu0
    %v4310 = vadd.f32 %v4296, %v4309
    %v4311 = vpop.f32.mrf.mxu0
    %v4312 = vadd.f32 %v4298, %v4311
    %4313 = vdwg.mxu0
    %4314 = vmatpush.bf16.msra.mxu0 %v3618
    %4315 = vmatpush.bf16.msra.mxu0 %v3612
    %4316 = vmatpush.bf16.msra.mxu0 %v3606
    %4317 = vmatpush.bf16.msra.mxu0 %v3600
    %4318 = vmatpush.bf16.msra.mxu0 %v3594
    %4319 = vmatpush.bf16.msra.mxu0 %v3588
    %4320 = vmatpush.bf16.msra.mxu0 %v3582
    %4321 = vmatpush.bf16.msra.mxu0 %v3576
    %4322 = vmatmul.bf16.gmra.mxu0 %v2161
    %v4323 = vpop.f32.mrf.mxu0
    %v4324 = vadd.f32 %v4310, %v4323
    %v4325 = vpop.f32.mrf.mxu0
    %v4326 = vadd.f32 %v4312, %v4325
    %4327 = vdwg.mxu0
    %4328 = vmatpush.bf16.msra.mxu0 %v3379
    %4329 = vmatpush.bf16.msra.mxu0 %v3373
    %4330 = vmatpush.bf16.msra.mxu0 %v3367
    %4331 = vmatpush.bf16.msra.mxu0 %v3361
    %4332 = vmatpush.bf16.msra.mxu0 %v3355
    %4333 = vmatpush.bf16.msra.mxu0 %v3349
    %4334 = vmatpush.bf16.msra.mxu0 %v3343
    %4335 = vmatpush.bf16.msra.mxu0 %v3337
    %4336 = vmatmul.bf16.gmra.mxu0 %v2156
    %v4337 = vpop.f32.mrf.mxu0
    %v4338 = vadd.f32 %v2461, %v4337
    %v4339 = vpop.f32.mrf.mxu0
    %v4340 = vadd.f32 %v2461, %v4339
    %4341 = vdwg.mxu0
    %4342 = vmatpush.bf16.msra.mxu0 %v3427
    %4343 = vmatpush.bf16.msra.mxu0 %v3421
    %4344 = vmatpush.bf16.msra.mxu0 %v3415
    %4345 = vmatpush.bf16.msra.mxu0 %v3409
    %4346 = vmatpush.bf16.msra.mxu0 %v3403
    %4347 = vmatpush.bf16.msra.mxu0 %v3397
    %4348 = vmatpush.bf16.msra.mxu0 %v3391
    %4349 = vmatpush.bf16.msra.mxu0 %v3385
    %4350 = vmatmul.bf16.gmra.mxu0 %v2157
    %v4351 = vpop.f32.mrf.mxu0
    %v4352 = vadd.f32 %v4338, %v4351
    %v4353 = vpop.f32.mrf.mxu0
    %v4354 = vadd.f32 %v4340, %v4353
    %4355 = vdwg.mxu0
    %4356 = vmatpush.bf16.msra.mxu0 %v3475
    %4357 = vmatpush.bf16.msra.mxu0 %v3469
    %4358 = vmatpush.bf16.msra.mxu0 %v3463
    %4359 = vmatpush.bf16.msra.mxu0 %v3457
    %4360 = vmatpush.bf16.msra.mxu0 %v3451
    %4361 = vmatpush.bf16.msra.mxu0 %v3445
    %4362 = vmatpush.bf16.msra.mxu0 %v3439
    %4363 = vmatpush.bf16.msra.mxu0 %v3433
    %4364 = vmatmul.bf16.gmra.mxu0 %v2158
    %v4365 = vpop.f32.mrf.mxu0
    %v4366 = vadd.f32 %v4352, %v4365
    %v4367 = vpop.f32.mrf.mxu0
    %v4368 = vadd.f32 %v4354, %v4367
    %4369 = vdwg.mxu0
    %4370 = vmatpush.bf16.msra.mxu0 %v3523
    %4371 = vmatpush.bf16.msra.mxu0 %v3517
    %4372 = vmatpush.bf16.msra.mxu0 %v3511
    %4373 = vmatpush.bf16.msra.mxu0 %v3505
    %4374 = vmatpush.bf16.msra.mxu0 %v3499
    %4375 = vmatpush.bf16.msra.mxu0 %v3493
    %4376 = vmatpush.bf16.msra.mxu0 %v3487
    %4377 = vmatpush.bf16.msra.mxu0 %v3481
    %4378 = vmatmul.bf16.gmra.mxu0 %v2159
    %v4379 = vpop.f32.mrf.mxu0
    %v4380 = vadd.f32 %v4366, %v4379
    %v4381 = vpop.f32.mrf.mxu0
    %v4382 = vadd.f32 %v4368, %v4381
    %4383 = vdwg.mxu0
    %4384 = vmatpush.bf16.msra.mxu0 %v3571
    %4385 = vmatpush.bf16.msra.mxu0 %v3565
    %4386 = vmatpush.bf16.msra.mxu0 %v3559
    %4387 = vmatpush.bf16.msra.mxu0 %v3553
    %4388 = vmatpush.bf16.msra.mxu0 %v3547
    %4389 = vmatpush.bf16.msra.mxu0 %v3541
    %4390 = vmatpush.bf16.msra.mxu0 %v3535
    %4391 = vmatpush.bf16.msra.mxu0 %v3529
    %4392 = vmatmul.bf16.gmra.mxu0 %v2160
    %v4393 = vpop.f32.mrf.mxu0
    %v4394 = vadd.f32 %v4380, %v4393
    %v4395 = vpop.f32.mrf.mxu0
    %v4396 = vadd.f32 %v4382, %v4395
    %4397 = vdwg.mxu0
    %4398 = vmatpush.bf16.msra.mxu0 %v3619
    %4399 = vmatpush.bf16.msra.mxu0 %v3613
    %4400 = vmatpush.bf16.msra.mxu0 %v3607
    %4401 = vmatpush.bf16.msra.mxu0 %v3601
    %4402 = vmatpush.bf16.msra.mxu0 %v3595
    %4403 = vmatpush.bf16.msra.mxu0 %v3589
    %4404 = vmatpush.bf16.msra.mxu0 %v3583
    %4405 = vmatpush.bf16.msra.mxu0 %v3577
    %4406 = vmatmul.bf16.gmra.mxu0 %v2161
    %v4407 = vpop.f32.mrf.mxu0
    %v4408 = vadd.f32 %v4394, %v4407
    %v4409 = vpop.f32.mrf.mxu0
    %v4410 = vadd.f32 %v4396, %v4409
    %4411 = vdwg.mxu0
    %v4412 = vadd.f32 %v3988, %v4072
    %v4413 = vadd.f32 %v4412, %v4156
    %v4414 = vadd.f32 %v4413, %v4240
    %v4415 = vadd.f32 %v4414, %v4324
    %v4416 = vadd.f32 %v4415, %v4408
    %4417 = vadd.xlane.f32.xlu0 %v4416
    %v4418 = vpop.xlane.xlu0 %4417
    %v4419 = vadd.f32 %v3990, %v4074
    %v4420 = vadd.f32 %v4419, %v4158
    %v4421 = vadd.f32 %v4420, %v4242
    %v4422 = vadd.f32 %v4421, %v4326
    %v4423 = vadd.f32 %v4422, %v4410
    %4424 = vadd.xlane.f32.xlu0 %v4423
    %v4425 = vpop.xlane.xlu0 %4424
    %v4426 = vrcp.pop 768.0
    %v4427 = vmul.f32 768.0, %v4426
    %v4428 = vsub.f32 1.0, %v4427
    %v4429 = vmul.f32 %v4426, %v4428
    %v4430 = vadd.f32 %v4426, %v4429
    %vm4431 = vweird.f32 %v4426
    %v4432 = vsel %vm4431, %v4426, %v4430
    %v4433 = vmul.f32 %v4418, %v4432
    %v4434 = vmul.f32 %v4425, %v4432
    %v4435 = vsub.f32 %v3988, %v4433
    %v4436 = vsub.f32 %v4072, %v4433
    %v4437 = vsub.f32 %v4156, %v4433
    %v4438 = vsub.f32 %v4240, %v4433
    %v4439 = vsub.f32 %v4324, %v4433
    %v4440 = vsub.f32 %v4408, %v4433
    %v4441 = vsub.f32 %v3990, %v4434
    %v4442 = vsub.f32 %v4074, %v4434
    %v4443 = vsub.f32 %v4158, %v4434
    %v4444 = vsub.f32 %v4242, %v4434
    %v4445 = vsub.f32 %v4326, %v4434
    %v4446 = vsub.f32 %v4410, %v4434
    %v4447 = vmul.f32 %v4435, %v4435
    %v4448 = vmul.f32 %v4436, %v4436
    %v4449 = vmul.f32 %v4437, %v4437
    %v4450 = vmul.f32 %v4438, %v4438
    %v4451 = vmul.f32 %v4439, %v4439
    %v4452 = vmul.f32 %v4440, %v4440
    %v4453 = vmul.f32 %v4441, %v4441
    %v4454 = vmul.f32 %v4442, %v4442
    %v4455 = vmul.f32 %v4443, %v4443
    %v4456 = vmul.f32 %v4444, %v4444
    %v4457 = vmul.f32 %v4445, %v4445
    %v4458 = vmul.f32 %v4446, %v4446
    %v4459 = vadd.f32 %v4447, %v4448
    %v4460 = vadd.f32 %v4459, %v4449
    %v4461 = vadd.f32 %v4460, %v4450
    %v4462 = vadd.f32 %v4461, %v4451
    %v4463 = vadd.f32 %v4462, %v4452
    %4464 = vadd.xlane.f32.xlu0 %v4463
    %v4465 = vpop.xlane.xlu0 %4464
    %v4466 = vadd.f32 %v4453, %v4454
    %v4467 = vadd.f32 %v4466, %v4455
    %v4468 = vadd.f32 %v4467, %v4456
    %v4469 = vadd.f32 %v4468, %v4457
    %v4470 = vadd.f32 %v4469, %v4458
    %4471 = vadd.xlane.f32.xlu0 %v4470
    %v4472 = vpop.xlane.xlu0 %4471
    %v4473 = vmul.f32 %v4465, %v4432
    %v4474 = vmul.f32 %v4472, %v4432
    %v4475 = vadd.f32 %v4473, 1e-12
    %v4476 = vadd.f32 %v4474, 1e-12
    %v4477 = vrsqrt.pop %v4475
    %v4478 = vmul.f32 %v4477, %v4475
    %v4479 = vmul.f32 %v4478, %v4477
    %v4480 = vmul.f32 0.5, %v4479
    %v4481 = vsub.f32 1.5, %v4480
    %v4482 = vmul.f32 %v4477, %v4481
    %vm4483 = vweird.f32 %v4475
    %vm4484 = vweird.f32 %v4477
    %vm4485 = vmor %vm4483, %vm4484
    %v4486 = vsel %vm4485, %v4477, %v4482
    %v4487 = vrsqrt.pop %v4476
    %v4488 = vmul.f32 %v4487, %v4476
    %v4489 = vmul.f32 %v4488, %v4487
    %v4490 = vmul.f32 0.5, %v4489
    %v4491 = vsub.f32 1.5, %v4490
    %v4492 = vmul.f32 %v4487, %v4491
    %vm4493 = vweird.f32 %v4476
    %vm4494 = vweird.f32 %v4487
    %vm4495 = vmor %vm4493, %vm4494
    %v4496 = vsel %vm4495, %v4487, %v4492
    %v4497 = vmul.f32 %v4435, %v4486
    %v4498 = vmul.f32 %v4436, %v4486
    %v4499 = vmul.f32 %v4437, %v4486
    %v4500 = vmul.f32 %v4438, %v4486
    %v4501 = vmul.f32 %v4439, %v4486
    %v4502 = vmul.f32 %v4440, %v4486
    %v4503 = vmul.f32 %v4441, %v4496
    %v4504 = vmul.f32 %v4442, %v4496
    %v4505 = vmul.f32 %v4443, %v4496
    %v4506 = vmul.f32 %v4444, %v4496
    %v4507 = vmul.f32 %v4445, %v4496
    %v4508 = vmul.f32 %v4446, %v4496
    %s4509 = scalar_lea.vmem %s10, 1
    %v4510 = vld [vmem:[%s4509] ss:$4 sm:$0x3f]
    %v4512 = vperm.slane %v4510, 0
    %v4513 = vperm.slane %v4510, 1
    %v4514 = vperm.slane %v4510, 2
    %v4515 = vperm.slane %v4510, 3
    %v4516 = vperm.slane %v4510, 4
    %v4517 = vperm.slane %v4510, 5
    %v4524 = vmul.f32 %v4512, %v4497
    %v4525 = vmul.f32 %v4513, %v4498
    %v4526 = vmul.f32 %v4514, %v4499
    %v4527 = vmul.f32 %v4515, %v4500
    %v4528 = vmul.f32 %v4516, %v4501
    %v4529 = vmul.f32 %v4517, %v4502
    %v4530 = vmul.f32 %v4512, %v4503
    %v4531 = vmul.f32 %v4513, %v4504
    %v4532 = vmul.f32 %v4514, %v4505
    %v4533 = vmul.f32 %v4515, %v4506
    %v4534 = vmul.f32 %v4516, %v4507
    %v4535 = vmul.f32 %v4517, %v4508
    %s4536 = scalar_lea.vmem %s10, 2
    %v4537 = vld [vmem:[%s4536] ss:$4 sm:$0x3f]
    %v4539 = vperm.slane %v4537, 0
    %v4540 = vperm.slane %v4537, 1
    %v4541 = vperm.slane %v4537, 2
    %v4542 = vperm.slane %v4537, 3
    %v4543 = vperm.slane %v4537, 4
    %v4544 = vperm.slane %v4537, 5
    %v4551 = vadd.f32 %v4524, %v4539
    %v4552 = vadd.f32 %v4525, %v4540
    %v4553 = vadd.f32 %v4526, %v4541
    %v4554 = vadd.f32 %v4527, %v4542
    %v4555 = vadd.f32 %v4528, %v4543
    %v4556 = vadd.f32 %v4529, %v4544
    %v4557 = vadd.f32 %v4530, %v4539
    %v4558 = vadd.f32 %v4531, %v4540
    %v4559 = vadd.f32 %v4532, %v4541
    %v4560 = vadd.f32 %v4533, %v4542
    %v4561 = vadd.f32 %v4534, %v4543
    %v4562 = vadd.f32 %v4535, %v4544
    %v4569 = vrot.slane %v4557, 7
    %v4570 = vrot.slane %v4558, 7
    %v4571 = vrot.slane %v4559, 7
    %v4572 = vrot.slane %v4560, 7
    %v4573 = vrot.slane %v4561, 7
    %v4574 = vrot.slane %v4562, 7
    %vm4581 = vcmask 1040384
    %v4582 = vsel %vm4581, %v4551, %v4569
    %v4583 = vsel %vm4581, %v4552, %v4570
    %v4584 = vsel %vm4581, %v4553, %v4571
    %v4585 = vsel %vm4581, %v4554, %v4572
    %v4586 = vsel %vm4581, %v4555, %v4573
    %v4587 = vsel %vm4581, %v4556, %v4574
    %s4588 = scalar_lea.vmem %s10, 3
    %v4589 = vld [vmem:[%s4588] ss:$4 sm:$0x3f]
    %v4591 = vperm.slane %v4589, 0
    %v4592 = vperm.slane %v4589, 1
    %v4593 = vperm.slane %v4589, 2
    %v4594 = vperm.slane %v4589, 3
    %v4595 = vperm.slane %v4589, 4
    %v4596 = vperm.slane %v4589, 5
    %v4603 = vmul.f32 %v4582, %v4591
    %v4604 = vmul.f32 %v4583, %v4592
    %v4605 = vmul.f32 %v4584, %v4593
    %v4606 = vmul.f32 %v4585, %v4594
    %v4607 = vmul.f32 %v4586, %v4595
    %v4608 = vmul.f32 %v4587, %v4596
    %vm4609 = vcmask 1041408
    %v4610 = vsel %vm4609, %v4603, 0.0
    %v4611 = vsel %vm4609, %v4604, 0.0
    %v4612 = vadd.f32 %v4610, %v4611
    %v4613 = vsel %vm4609, %v4605, 0.0
    %v4614 = vadd.f32 %v4612, %v4613
    %v4615 = vsel %vm4609, %v4606, 0.0
    %v4616 = vadd.f32 %v4614, %v4615
    %v4617 = vsel %vm4609, %v4607, 0.0
    %v4618 = vadd.f32 %v4616, %v4617
    %v4619 = vsel %vm4609, %v4608, 0.0
    %v4620 = vadd.f32 %v4618, %v4619
    %4621 = vadd.xlane.f32.xlu0 %v4620
    %v4622 = vpop.xlane.xlu0 %4621
    %v4623 = vstv %s107
    %v4624 = vadd.f32 %v4622, %v4623
    %vm4625 = vcmask 1024
    %4626 = vst.msk [vmem:[%s12] sm:$0x3] %vm4625, %v4624
    // Predicated region
    $region81: #{_lambda_.1} parent=1 // pred_check
      _
    $region82: #{_lambda_.1} parent=1 // pred_check_branch
      %4628 = sbr.rel (0) target = $region84
    $region83: #{_lambda_.1} parent=1 // pred_region
      _
    $region84: #{_lambda_.1} parent=1 // pred_fallthru
      _
    // Predicated region
    $region85: #{_lambda_.1} parent=1 // pred_check
      _
    $region86: #{_lambda_.1} parent=1 // pred_check_branch
      %4630 = sbr.rel (0) target = $region88
    $region87: #{_lambda_.1} parent=1 // pred_region
      %4632 = vsyncadd [#allocation6], 0
      %s4633 = sshll.u32 [#allocation12], 4
      %s4634 = int_to_ptr.vmem [resolvable:$true] %s4633
      %s4635 = sshll.u32 %s13, 4
      %s4636 = int_to_ptr.hbm [resolvable:$true] %s4635
      %4641 = dma.vmem_to_hbm [thread:$0]  %s4634, 256, %s4636, [#allocation6], 128, 128, 8
    $region88: #{_lambda_.1} parent=1 // pred_fallthru
      _
    // Predicated region
    $region89: #{_lambda_.1} parent=1 // pred_check
      _
    $region90: #{_lambda_.1} parent=1 // pred_check_branch
      %4643 = sbr.rel (0) target = $region92
    $region91: #{_lambda_.1} parent=1 // pred_region
      %4645 = vsyncadd [#allocation14], 0
      %s4646 = sshll.u32 [#allocation13], 4
      %s4647 = int_to_ptr.vmem [resolvable:$true] %s4646
      %s4648 = sshll.u32 %s14, 4
      %s4649 = int_to_ptr.hbm [resolvable:$true] %s4648
      %4654 = dma.vmem_to_hbm [thread:$0]  %s4647, 256, %s4649, [#allocation14], 128, 128, 8
    $region92: #{_lambda_.1} parent=1 // pred_fallthru
      _
    // Predicated region
    $region93: #{_lambda_.1} parent=1 // pred_check
      _
    $region94: #{_lambda_.1} parent=1 // pred_check_branch
      %4656 = sbr.rel (0) target = $region96
    $region95: #{_lambda_.1} parent=1 // pred_region
      _
    $region96: #{_lambda_.1} parent=1 // pred_fallthru
      _
    // Predicated region
    $region97: #{_lambda_.1} parent=1 // pred_check
      _
    $region98: #{_lambda_.1} parent=1 // pred_check_branch
      %4658 = sbr.rel (0) target = $region100
    $region99: #{_lambda_.1} parent=1 // pred_region
      %4660 = dma.done [#allocation6], 256
    $region100: #{_lambda_.1} parent=1 // pred_fallthru
      _
    // Predicated region
    $region101: #{_lambda_.1} parent=1 // pred_check
      _
    $region102: #{_lambda_.1} parent=1 // pred_check_branch
      %4662 = sbr.rel (0) target = $region104
    $region103: #{_lambda_.1} parent=1 // pred_region
      %4664 = dma.done [#allocation14], 256
    $region104: #{_lambda_.1} parent=1 // pred_fallthru
      _
    %4665 = vsyncpa [#allocation5], 1
    %4666 = vsyncpa [#allocation10], 1
    %4667 = vsyncpa [#allocation6], 1
    %4668 = vsyncpa [#allocation14], 1
    %4669 = vsyncpa [#allocation7], 1
  %4670 = vsyncmov [#allocation3]
  %s4671 = vpop.sfrf %4670
  %p4672 = scmp.eq.s32.totalorder %s4671, 0
  %p4673 = pneg %p4672
  %4675 = shalt.err (%p4673)

</llo_original>
